<compile_context>
chip_gen: v7x
topology: tpu7x:2x2x1
jax: 0.10.0
libtpu: 0.0.40
codegen_flags: <defaults>
</compile_context>

<pallas_src>
import jax
import jax.numpy as jnp
from jax.experimental import pallas as pl
from jax.experimental.pallas import tpu as pltpu


def _round_up(x, m):
    return (x + m - 1) // m * m


def _ngram_kernel(idx_ref, e_ref, b13_ref, w2_ref, out_ref):
    """One batch tile of the fused NGram forward.

    idx_ref : (Bt, n_ctx)        int32  token ids
    e_ref   : (n_ctx*V, Hp+V)    bf16   embedding gather folded into [W1_pad|W3]
    b13_ref : (1, Hp+V)          f32    fused [b1_pad | b3]
    w2_ref  : (Hp, V)            bf16   zero-row-padded W2 (in->out layout)
    out_ref : (Bt, V)            f32    log-probabilities
    """
    bt, n_ctx = idx_ref.shape
    kv = e_ref.shape[0]                                   # n_ctx * V
    hp, v = w2_ref.shape

    tok = idx_ref[...]                                    # (Bt, n_ctx) int32

    # Fat one-hot over the fused gather axis: lane p*V + tok[:, p] is hot.
    # Stay in int32/bool math; cast to the matmul dtype exactly once.
    lane = jax.lax.broadcasted_iota(jnp.int32, (bt, kv), 1)
    hit = lane == tok[:, 0:1]
    for p in range(1, n_ctx):
        hit = jnp.logical_or(hit, lane == (tok[:, p:p + 1] + p * v))
    onehot = hit.astype(e_ref.dtype)                      # (Bt, n_ctx*V)

    # Matmul 1: embedding gather + x@[W1|W3] in one MXU pass.
    z = jnp.dot(onehot, e_ref[...], preferred_element_type=jnp.float32)
    z = jnp.maximum(z + b13_ref[...], 0.0)                # (Bt, Hp+V) f32

    h = z[:, :hp].astype(w2_ref.dtype)                    # (Bt, Hp)  bf16
    out2 = z[:, hp:]                                      # (Bt, V)   == relu(linear3)

    # Matmul 2: hidden -> vocab, plus the relu(linear3) branch.
    logits = jnp.dot(h, w2_ref[...], preferred_element_type=jnp.float32) + out2

    # Row-wise log_softmax (dim=1).
    m = jnp.max(logits, axis=-1, keepdims=True)
    shifted = logits - m
    lse = jnp.log(jnp.sum(jnp.exp(shifted), axis=-1, keepdims=True))
    out_ref[...] = shifted - lse


def _prepare_weights(emb_table, w1, b1, w2, w3, b3, weight_dtype):
    """Pad hidden to 128-multiple, fuse W1|W3 + b1|b3, fold in the embedding.

    Returns (E, b13, W2_pad, Hp) where
      E[p*V + t, :] = emb[t] @ [W1_pad | W3][p*D:(p+1)*D, :]   (bf16)
    so that one-hot(token ids) @ E == flatten(embeds) @ [W1_pad | W3].
    (Runs once per wrapper call; cache the result for repeated inference.)
    """
    in_dim, hidden = w1.shape
    v, d = emb_table.shape
    n_ctx = in_dim // d
    hp = _round_up(hidden, 128)                           # 600 -> 640

    w1p = jnp.zeros((in_dim, hp), jnp.float32).at[:, :hidden].set(w1)
    b1p = jnp.zeros((hp,), jnp.float32).at[:hidden].set(b1)
    w2p = jnp.zeros((hp, v), jnp.float32).at[:hidden, :].set(w2)

    w13 = jnp.concatenate([w1p, w3.astype(jnp.float32)], axis=1)   # (in_dim, Hp+V)
    b13 = jnp.concatenate([b1p, b3.astype(jnp.float32)]).reshape(1, -1)

    # Fold the embedding gather into W13 (computed in f32, stored in bf16).
    w13_pos = w13.reshape(n_ctx, d, hp + v)                        # (n_ctx, D, Hp+V)
    e_mat = jnp.einsum('vd,pdo->pvo', emb_table.astype(jnp.float32),
                       w13_pos).reshape(n_ctx * v, hp + v)

    return e_mat.astype(weight_dtype), b13, w2p.astype(weight_dtype), hp


def ngram_forward_batched(token_ids, emb_table, w1, b1, w2, w3, b3, *,
                          block_b=None, weight_dtype=jnp.bfloat16):
    """Batched forward: (B, 2*context_size) int ids -> (B, vocab) log-probs."""
    token_ids = token_ids.astype(jnp.int32)
    b, n_ctx = token_ids.shape
    v, d = emb_table.shape
    assert w1.shape[0] == n_ctx * d

    e_mat, b13, w2p, hp = _prepare_weights(emb_table, w1, b1, w2, w3, b3,
                                           weight_dtype)
    kv = n_ctx * v

    if block_b is None:
        # Small batches: a single fat grid step.  Large batches: 512-row tiles
        # (fills MXU rows, amortizes ~0.35us/step).  Pass an explicit block_b
        # (e.g. cdiv(B,2) rounded to 256) to force >=2 steps for v7x megacore.
        block_b = min(_round_up(max(b, 1), 8), 512)

    b_pad = _round_up(b, block_b)
    if b_pad != b:
        token_ids = jnp.concatenate(
            [token_ids, jnp.zeros((b_pad - b, n_ctx), jnp.int32)], axis=0)

    out = pl.pallas_call(
        _ngram_kernel,
        out_shape=jax.ShapeDtypeStruct((b_pad, v), jnp.float32),
        grid=(b_pad // block_b,),
        in_specs=[
            pl.BlockSpec((block_b, n_ctx), lambda i: (i, 0)),   # token ids (tiled)
            pl.BlockSpec((kv, hp + v), lambda i: (0, 0)),       # gather+W1|W3 table
            pl.BlockSpec((1, hp + v), lambda i: (0, 0)),        # fused bias
            pl.BlockSpec((hp, v), lambda i: (0, 0)),            # padded W2
        ],
        out_specs=pl.BlockSpec((block_b, v), lambda i: (i, 0)),
        compiler_params=pltpu.CompilerParams(
            # Batch tiles are independent; weights use constant index maps so
            # they are fetched once and stay VMEM-resident (~1.7 MiB total).
            dimension_semantics=("parallel",),
        ),
    )(token_ids, e_mat, b13, w2p)
    return out[:b]


def ngram_forward(inputs, emb_table, w1, b1, w2, w3, b3, **kw):
    """Single-context forward matching NGramLanguageModeler.forward -> (1, vocab)."""
    return ngram_forward_batched(inputs.reshape(1, -1),
                                 emb_table, w1, b1, w2, w3, b3, **kw)


if __name__ == "__main__":
    vocab_size = 128
    embedding_dim = 16
    context_size = 4                       # forward consumes context_size*2 tokens
    n_ctx = 2 * context_size
    in_dim = n_ctx * embedding_dim         # 128
    hidden = 600                           # module-fixed; padded to 640 internally
    batch = 16

    key = jax.random.PRNGKey(0)
    k_emb, k_w1, k_b1, k_w2, k_w3, k_b3, k_in = jax.random.split(key, 7)

    emb_table = jax.random.normal(k_emb, (vocab_size, embedding_dim), jnp.float32) * 0.1
    w1 = jax.random.normal(k_w1, (in_dim, hidden), jnp.float32) * 0.05   # linear1.weight.T
    b1 = jax.random.normal(k_b1, (hidden,), jnp.float32) * 0.05
    w2 = jax.random.normal(k_w2, (hidden, vocab_size), jnp.float32) * 0.05
    w3 = jax.random.normal(k_w3, (in_dim, vocab_size), jnp.float32) * 0.05
    b3 = jax.random.normal(k_b3, (vocab_size,), jnp.float32) * 0.05

    token_ids = jax.random.randint(k_in, (batch, n_ctx), 0, vocab_size, jnp.int32)

    log_probs = jax.block_until_ready(
        ngram_forward_batched(token_ids, emb_table, w1, b1, w2, w3, b3))
    assert log_probs.shape == (batch, vocab_size)

    # --- Reference 1: exact mirror of the kernel's bf16 math (tight check) ---
    e_mat, b13, w2p, hp = _prepare_weights(emb_table, w1, b1, w2, w3, b3,
                                           jnp.bfloat16)
    rows = token_ids + (jnp.arange(n_ctx, dtype=jnp.int32) * vocab_size)[None, :]
    z = e_mat.astype(jnp.float32)[rows].sum(axis=1) + b13
    z = jnp.maximum(z, 0.0)
    logits = jnp.dot(z[:, :hp].astype(jnp.bfloat16), w2p,
                     preferred_element_type=jnp.float32) + z[:, hp:]
    ref_bf16 = jax.nn.log_softmax(logits, axis=-1)
    assert jnp.allclose(log_probs, ref_bf16, atol=5e-4, rtol=5e-4), \
        float(jnp.max(jnp.abs(log_probs - ref_bf16)))

    # --- Reference 2: plain f32 math of the PyTorch module (loose check,
    #     tolerance covers bf16 weight quantization) --------------------------
    x = emb_table[token_ids].reshape(batch, -1)
    h_f = jnp.maximum(x @ w1 + b1, 0.0)
    logits_f = h_f @ w2 + jnp.maximum(x @ w3 + b3, 0.0)
    ref_f32 = jax.nn.log_softmax(logits_f, axis=-1)
    assert jnp.allclose(log_probs, ref_f32, atol=5e-2), \
        float(jnp.max(jnp.abs(log_probs - ref_f32)))

    # Single-context path: exactly the module's forward signature/output.
    one = jax.block_until_ready(
        ngram_forward(token_ids[0], emb_table, w1, b1, w2, w3, b3))
    assert one.shape == (1, vocab_size)
    assert jnp.allclose(one, ref_bf16[:1], atol=5e-4, rtol=5e-4)

    print("KERNEL_OK")
</pallas_src>

<mosaic_0001>
module attributes {stable_mosaic.version = 11 : i64} {
  func.func @_ngram_kernel(%arg0: i32, %arg1: memref<16x8xi32, #tpu.memory_space<vmem>>, %arg2: memref<1024x768xbf16, #tpu.memory_space<vmem>>, %arg3: memref<1x768xf32, #tpu.memory_space<vmem>>, %arg4: memref<640x128xbf16, #tpu.memory_space<vmem>>, %arg5: memref<16x128xf32, #tpu.memory_space<vmem>>) attributes {dimension_semantics = [#tpu.dimension_semantics<parallel>], iteration_bounds = array<i64: 1>, scalar_prefetch = 0 : i64, scratch_operands = 0 : i64, tpu.core_type = #tpu.core_type<tc>, window_params = [{transform_indices = @transform_0, window_bounds = array<i64: 16, 8>}, {pipeline_mode = #tpu.pipeline_mode<synchronous>, transform_indices = @transform_1, window_bounds = array<i64: 1024, 768>}, {pipeline_mode = #tpu.pipeline_mode<synchronous>, transform_indices = @transform_2, window_bounds = array<i64: 1, 768>}, {pipeline_mode = #tpu.pipeline_mode<synchronous>, transform_indices = @transform_3, window_bounds = array<i64: 640, 128>}, {transform_indices = @transform_4, window_bounds = array<i64: 16, 128>}]} {
    %c0 = arith.constant 0 : index
    %c0_0 = arith.constant 0 : index
    %0 = vector.load %arg1[%c0, %c0_0] : memref<16x8xi32, #tpu.memory_space<vmem>>, vector<16x8xi32>
    %1 = tpu.iota {dimensions = array<i32: 1>} : vector<16x1024xi32>
    %2 = vector.extract_strided_slice %0 {offsets = [0, 0], sizes = [16, 1], strides = [1, 1]} : vector<16x8xi32> to vector<16x1xi32>
    %3 = vector.broadcast %2 : vector<16x1xi32> to vector<16x1024xi32>
    %4 = arith.cmpi eq, %1, %3 : vector<16x1024xi32>
    %5 = vector.extract_strided_slice %0 {offsets = [0, 1], sizes = [16, 1], strides = [1, 1]} : vector<16x8xi32> to vector<16x1xi32>
    %c128_i32 = arith.constant 128 : i32
    %6 = vector.broadcast %c128_i32 : i32 to vector<16x1xi32>
    %7 = arith.addi %5, %6 : vector<16x1xi32>
    %8 = vector.broadcast %7 : vector<16x1xi32> to vector<16x1024xi32>
    %9 = arith.cmpi eq, %1, %8 : vector<16x1024xi32>
    %10 = arith.ori %4, %9 : vector<16x1024xi1>
    %11 = vector.extract_strided_slice %0 {offsets = [0, 2], sizes = [16, 1], strides = [1, 1]} : vector<16x8xi32> to vector<16x1xi32>
    %c256_i32 = arith.constant 256 : i32
    %12 = vector.broadcast %c256_i32 : i32 to vector<16x1xi32>
    %13 = arith.addi %11, %12 : vector<16x1xi32>
    %14 = vector.broadcast %13 : vector<16x1xi32> to vector<16x1024xi32>
    %15 = arith.cmpi eq, %1, %14 : vector<16x1024xi32>
    %16 = arith.ori %10, %15 : vector<16x1024xi1>
    %17 = vector.extract_strided_slice %0 {offsets = [0, 3], sizes = [16, 1], strides = [1, 1]} : vector<16x8xi32> to vector<16x1xi32>
    %c384_i32 = arith.constant 384 : i32
    %18 = vector.broadcast %c384_i32 : i32 to vector<16x1xi32>
    %19 = arith.addi %17, %18 : vector<16x1xi32>
    %20 = vector.broadcast %19 : vector<16x1xi32> to vector<16x1024xi32>
    %21 = arith.cmpi eq, %1, %20 : vector<16x1024xi32>
    %22 = arith.ori %16, %21 : vector<16x1024xi1>
    %23 = vector.extract_strided_slice %0 {offsets = [0, 4], sizes = [16, 1], strides = [1, 1]} : vector<16x8xi32> to vector<16x1xi32>
    %c512_i32 = arith.constant 512 : i32
    %24 = vector.broadcast %c512_i32 : i32 to vector<16x1xi32>
    %25 = arith.addi %23, %24 : vector<16x1xi32>
    %26 = vector.broadcast %25 : vector<16x1xi32> to vector<16x1024xi32>
    %27 = arith.cmpi eq, %1, %26 : vector<16x1024xi32>
    %28 = arith.ori %22, %27 : vector<16x1024xi1>
    %29 = vector.extract_strided_slice %0 {offsets = [0, 5], sizes = [16, 1], strides = [1, 1]} : vector<16x8xi32> to vector<16x1xi32>
    %c640_i32 = arith.constant 640 : i32
    %30 = vector.broadcast %c640_i32 : i32 to vector<16x1xi32>
    %31 = arith.addi %29, %30 : vector<16x1xi32>
    %32 = vector.broadcast %31 : vector<16x1xi32> to vector<16x1024xi32>
    %33 = arith.cmpi eq, %1, %32 : vector<16x1024xi32>
    %34 = arith.ori %28, %33 : vector<16x1024xi1>
    %35 = vector.extract_strided_slice %0 {offsets = [0, 6], sizes = [16, 1], strides = [1, 1]} : vector<16x8xi32> to vector<16x1xi32>
    %c768_i32 = arith.constant 768 : i32
    %36 = vector.broadcast %c768_i32 : i32 to vector<16x1xi32>
    %37 = arith.addi %35, %36 : vector<16x1xi32>
    %38 = vector.broadcast %37 : vector<16x1xi32> to vector<16x1024xi32>
    %39 = arith.cmpi eq, %1, %38 : vector<16x1024xi32>
    %40 = arith.ori %34, %39 : vector<16x1024xi1>
    %41 = vector.extract_strided_slice %0 {offsets = [0, 7], sizes = [16, 1], strides = [1, 1]} : vector<16x8xi32> to vector<16x1xi32>
    %c896_i32 = arith.constant 896 : i32
    %42 = vector.broadcast %c896_i32 : i32 to vector<16x1xi32>
    %43 = arith.addi %41, %42 : vector<16x1xi32>
    %44 = vector.broadcast %43 : vector<16x1xi32> to vector<16x1024xi32>
    %45 = arith.cmpi eq, %1, %44 : vector<16x1024xi32>
    %46 = arith.ori %40, %45 : vector<16x1024xi1>
    %47 = arith.extui %46 : vector<16x1024xi1> to vector<16x1024xi32>
    %48 = arith.sitofp %47 : vector<16x1024xi32> to vector<16x1024xf32>
    %49 = arith.truncf %48 : vector<16x1024xf32> to vector<16x1024xbf16>
    %c0_1 = arith.constant 0 : index
    %c0_2 = arith.constant 0 : index
    %50 = vector.load %arg2[%c0_1, %c0_2] : memref<1024x768xbf16, #tpu.memory_space<vmem>>, vector<1024x768xbf16>
    %cst = arith.constant dense<0.000000e+00> : vector<16x768xf32>
    %51 = tpu.matmul %49, %50, %cst {dimension_numbers = #tpu.dot_dimension_numbers<[1], [0], [0], [1], [0, 0, 1, 1], [], []>} : vector<16x1024xbf16>, vector<1024x768xbf16>, vector<16x768xf32> -> vector<16x768xf32>
    %c0_3 = arith.constant 0 : index
    %c0_4 = arith.constant 0 : index
    %52 = vector.load %arg3[%c0_3, %c0_4] : memref<1x768xf32, #tpu.memory_space<vmem>>, vector<1x768xf32>
    %53 = vector.broadcast %52 : vector<1x768xf32> to vector<16x768xf32>
    %54 = arith.addf %51, %53 : vector<16x768xf32>
    %cst_5 = arith.constant 0.000000e+00 : f32
    %55 = vector.broadcast %cst_5 : f32 to vector<16x768xf32>
    %56 = arith.maximumf %54, %55 : vector<16x768xf32>
    %57 = vector.extract_strided_slice %56 {offsets = [0, 0], sizes = [16, 640], strides = [1, 1]} : vector<16x768xf32> to vector<16x640xf32>
    %58 = arith.truncf %57 : vector<16x640xf32> to vector<16x640xbf16>
    %59 = vector.extract_strided_slice %56 {offsets = [0, 640], sizes = [16, 128], strides = [1, 1]} : vector<16x768xf32> to vector<16x128xf32>
    %c0_6 = arith.constant 0 : index
    %c0_7 = arith.constant 0 : index
    %60 = vector.load %arg4[%c0_6, %c0_7] : memref<640x128xbf16, #tpu.memory_space<vmem>>, vector<640x128xbf16>
    %cst_8 = arith.constant dense<0.000000e+00> : vector<16x128xf32>
    %61 = tpu.matmul %58, %60, %cst_8 {dimension_numbers = #tpu.dot_dimension_numbers<[1], [0], [0], [1], [0, 0, 1, 1], [], []>} : vector<16x640xbf16>, vector<640x128xbf16>, vector<16x128xf32> -> vector<16x128xf32>
    %62 = arith.addf %61, %59 : vector<16x128xf32>
    %cst_9 = arith.constant dense<0xFF800000> : vector<16xf32>
    %63 = vector.multi_reduction <maximumf>, %62, %cst_9 [1] : vector<16x128xf32> to vector<16xf32>
    %64 = vector.shape_cast %63 : vector<16xf32> to vector<16x1xf32>
    %65 = vector.broadcast %64 : vector<16x1xf32> to vector<16x128xf32>
    %66 = arith.subf %62, %65 : vector<16x128xf32>
    %67 = math.exp %66 : vector<16x128xf32>
    %cst_10 = arith.constant dense<0.000000e+00> : vector<16xf32>
    %68 = vector.multi_reduction <add>, %67, %cst_10 [1] : vector<16x128xf32> to vector<16xf32>
    %69 = vector.shape_cast %68 : vector<16xf32> to vector<16x1xf32>
    %70 = math.log %69 : vector<16x1xf32>
    %71 = vector.broadcast %70 : vector<16x1xf32> to vector<16x128xf32>
    %72 = arith.subf %66, %71 : vector<16x128xf32>
    %c0_11 = arith.constant 0 : index
    %c0_12 = arith.constant 0 : index
    %73 = vector.load %arg5[%c0_11, %c0_12] : memref<16x128xf32, #tpu.memory_space<vmem>>, vector<16x128xf32>
    tpu.vector_store %arg5[%c0_11, %c0_12], %72 {strides = array<i32>} : memref<16x128xf32, #tpu.memory_space<vmem>>, vector<16x128xf32>,
    return
  }
  func.func @transform_0(%arg0: i32) -> (i32, i32) {
    %c0_i32 = arith.constant 0 : i32
    %c0_i32_0 = arith.constant 0 : i32
    return %arg0, %c0_i32 : i32, i32
  }
  func.func @transform_1(%arg0: i32) -> (i32, i32) {
    %c0_i32 = arith.constant 0 : i32
    %c0_i32_0 = arith.constant 0 : i32
    %c0_i32_1 = arith.constant 0 : i32
    return %c0_i32, %c0_i32_0 : i32, i32
  }
  func.func @transform_2(%arg0: i32) -> (i32, i32) {
    %c0_i32 = arith.constant 0 : i32
    %c0_i32_0 = arith.constant 0 : i32
    %c0_i32_1 = arith.constant 0 : i32
    return %c0_i32, %c0_i32_0 : i32, i32
  }
  func.func @transform_3(%arg0: i32) -> (i32, i32) {
    %c0_i32 = arith.constant 0 : i32
    %c0_i32_0 = arith.constant 0 : i32
    %c0_i32_1 = arith.constant 0 : i32
    return %c0_i32, %c0_i32_0 : i32, i32
  }
  func.func @transform_4(%arg0: i32) -> (i32, i32) {
    %c0_i32 = arith.constant 0 : i32
    %c0_i32_0 = arith.constant 0 : i32
    return %arg0, %c0_i32 : i32, i32
  }
}

</mosaic_0001>

<llo_original>
// kernel: tpu_custom_call.1
$region0: #{tpu_custom_call.1}
  #allocation0 [shape = 'u32[]', space=smem, size = 0x4, offset = 0x4, fixed_abs, tag = 'smem constant byte address 0x4 - core index']
  #allocation1 [shape = 'u32[144,128]{1,0:T(1,128)}', space=vmem, size = 0x12000, scoped, tag = 'internal scratch']
  %s0 = inlined_call_operand.vmem [shape: s32[16,8], index: 0, kind: input, shape index: {}]
  %s1 = inlined_call_operand.hbm [shape: bf16[1024,768], index: 1, kind: input, shape index: {}]
  %s2 = inlined_call_operand.hbm [shape: f32[1,768], index: 2, kind: input, shape index: {}]
  %s3 = inlined_call_operand.hbm [shape: bf16[640,128], index: 3, kind: input, shape index: {}]
  %s4 = inlined_call_operand.hbm [shape: f32[16,128], index: 4, kind: output, shape index: {}]
  %s5 = sld [smem:[#allocation0]]
  $region38: #{tpu_custom_call.1} parent=0
    _
  %s7 = ssub.s32 1, %s5
  %s8 = scalar_select 0, %s7, %s5
  $region1: #{tpu_custom_call.1} parent=0
    #allocation2 [shape = 'u8[1572864]{0}', space=vmem, size = 0x180000, scoped, tag = 'input window, operand 1, single buffered']
    #allocation3 [shape = 's32[1]{0}', space=sflag, size = 0x4, scoped, tag = 'scoped memory for tpu_custom_call.1']
    #allocation4 [shape = 's32[1]{0}', space=sflag, size = 0x4, scoped, tag = 'scoped memory for tpu_custom_call.1']
    #allocation5 [shape = 'u8[3072]{0}', space=vmem, size = 0xc00, scoped, tag = 'input window, operand 2, single buffered']
    #allocation6 [shape = 's32[1]{0}', space=sflag, size = 0x4, scoped, tag = 'scoped memory for tpu_custom_call.1']
    #allocation7 [shape = 'u8[163840]{0}', space=vmem, size = 0x28000, scoped, tag = 'input window, operand 3, single buffered']
    #allocation8 [shape = 'u8[8192]{0}', space=vmem, size = 0x2000, scoped, tag = 'output window, operand 0, single buffered']
    %9 = vsyncpa [#allocation3], 0
    %10 = vsyncpa [#allocation6], 0
    %11 = vsyncpa [#allocation4], 0
    // Predicated region
    $region2: #{tpu_custom_call.1} parent=1 // pred_check
      _
    $region3: #{tpu_custom_call.1} parent=1 // pred_check_branch
      %13 = sbr.rel (0) target = $region5
    $region4: #{tpu_custom_call.1} parent=1 // pred_region
      _
    $region5: #{tpu_custom_call.1} parent=1 // pred_fallthru
      _
    // Predicated region
    $region6: #{tpu_custom_call.1} parent=1 // pred_check
      _
    $region7: #{tpu_custom_call.1} parent=1 // pred_check_branch
      %15 = sbr.rel (0) target = $region9
    $region8: #{tpu_custom_call.1} parent=1 // pred_region
      %s17 = ssub.s32 49152, 49152
      %18 = vsyncadd [#allocation3], %s17
      %s19 = sshll.u32 [#allocation2], 4
      %s20 = int_to_ptr.vmem [resolvable:$true] %s19
      %25 = dma.hbm_to_vmem [thread:$0]  %s1, 49152, %s20, [#allocation3], 384, 384, 24
    $region9: #{tpu_custom_call.1} parent=1 // pred_fallthru
      _
    // Predicated region
    $region10: #{tpu_custom_call.1} parent=1 // pred_check
      _
    $region11: #{tpu_custom_call.1} parent=1 // pred_check_branch
      %27 = sbr.rel (0) target = $region13
    $region12: #{tpu_custom_call.1} parent=1 // pred_region
      %s29 = ssub.s32 96, 96
      %30 = vsyncadd [#allocation6], %s29
      %s32 = sshll.u32 [#allocation5], 4
      %s33 = int_to_ptr.vmem [resolvable:$true] %s32
      %35 = dma.hbm_to_vmem [thread:$0]  %s2, 96, %s33, [#allocation6]
    $region13: #{tpu_custom_call.1} parent=1 // pred_fallthru
      _
    // Predicated region
    $region14: #{tpu_custom_call.1} parent=1 // pred_check
      _
    $region15: #{tpu_custom_call.1} parent=1 // pred_check_branch
      %37 = sbr.rel (0) target = $region17
    $region16: #{tpu_custom_call.1} parent=1 // pred_region
      %s39 = ssub.s32 5120, 5120
      %40 = vsyncadd [#allocation6], %s39
      %s41 = sshll.u32 [#allocation7], 4
      %s42 = int_to_ptr.vmem [resolvable:$true] %s41
      %47 = dma.hbm_to_vmem [thread:$0]  %s3, 5120, %s42, [#allocation6], 64, 64, 4
    $region17: #{tpu_custom_call.1} parent=1 // pred_fallthru
      _
    // Predicated region
    $region18: #{tpu_custom_call.1} parent=1 // pred_check
      _
    $region19: #{tpu_custom_call.1} parent=1 // pred_check_branch
      %49 = sbr.rel (0) target = $region21
    $region20: #{tpu_custom_call.1} parent=1 // pred_region
      %50 = dma.done [#allocation3], 49152
    $region21: #{tpu_custom_call.1} parent=1 // pred_fallthru
      _
    // Predicated region
    $region22: #{tpu_custom_call.1} parent=1 // pred_check
      _
    $region23: #{tpu_custom_call.1} parent=1 // pred_check_branch
      %52 = sbr.rel (0) target = $region25
    $region24: #{tpu_custom_call.1} parent=1 // pred_region
      %53 = dma.done [#allocation6], 96
    $region25: #{tpu_custom_call.1} parent=1 // pred_fallthru
      _
    // Predicated region
    $region26: #{tpu_custom_call.1} parent=1 // pred_check
      _
    $region27: #{tpu_custom_call.1} parent=1 // pred_check_branch
      %55 = sbr.rel (0) target = $region29
    $region28: #{tpu_custom_call.1} parent=1 // pred_region
      %56 = dma.done [#allocation6], 5120
    $region29: #{tpu_custom_call.1} parent=1 // pred_fallthru
      _
    %v58 = vld [vmem:[%s0] sm:$0xff]
    %v59 = vld [vmem:[%s0 + $0x8] sm:$0xff]
    %v60 = vlaneseq
    %v61 = vand.u32 %v60, 127
    %v62 = vadd.s32 %v61, 128
    %v63 = vadd.s32 %v61, 256
    %v64 = vadd.s32 %v61, 384
    %v65 = vadd.s32 %v61, 512
    %v66 = vadd.s32 %v61, 640
    %v67 = vadd.s32 %v61, 768
    %v68 = vadd.s32 %v61, 896
    %69 = vset.pattern.permute.xlu0 0
    %70 = vperm.xlu0 %69, %v58
    %v71 = vpop.permute.xlu0 %70
    %72 = vset.pattern.permute.xlu0 0
    %73 = vperm.xlu0 %72, %v59
    %v74 = vpop.permute.xlu0 %73
    %vm75 = vcmp.eq.s32.totalorder %v61, %v71
    %vm76 = vcmp.eq.s32.totalorder %v62, %v71
    %vm77 = vcmp.eq.s32.totalorder %v63, %v71
    %vm78 = vcmp.eq.s32.totalorder %v64, %v71
    %vm79 = vcmp.eq.s32.totalorder %v65, %v71
    %vm80 = vcmp.eq.s32.totalorder %v66, %v71
    %vm81 = vcmp.eq.s32.totalorder %v67, %v71
    %vm82 = vcmp.eq.s32.totalorder %v68, %v71
    %vm83 = vcmp.eq.s32.totalorder %v61, %v74
    %vm84 = vcmp.eq.s32.totalorder %v62, %v74
    %vm85 = vcmp.eq.s32.totalorder %v63, %v74
    %vm86 = vcmp.eq.s32.totalorder %v64, %v74
    %vm87 = vcmp.eq.s32.totalorder %v65, %v74
    %vm88 = vcmp.eq.s32.totalorder %v66, %v74
    %vm89 = vcmp.eq.s32.totalorder %v67, %v74
    %vm90 = vcmp.eq.s32.totalorder %v68, %v74
    %v91 = vadd.s32 %v58, 128
    %v92 = vadd.s32 %v59, 128
    %93 = vset.pattern.permute.xlu0 1
    %94 = vperm.xlu0 %93, %v91
    %v95 = vpop.permute.xlu0 %94
    %96 = vset.pattern.permute.xlu0 1
    %97 = vperm.xlu0 %96, %v92
    %v98 = vpop.permute.xlu0 %97
    %vm99 = vcmp.eq.s32.totalorder %v61, %v95
    %vm100 = vcmp.eq.s32.totalorder %v62, %v95
    %vm101 = vcmp.eq.s32.totalorder %v63, %v95
    %vm102 = vcmp.eq.s32.totalorder %v64, %v95
    %vm103 = vcmp.eq.s32.totalorder %v65, %v95
    %vm104 = vcmp.eq.s32.totalorder %v66, %v95
    %vm105 = vcmp.eq.s32.totalorder %v67, %v95
    %vm106 = vcmp.eq.s32.totalorder %v68, %v95
    %vm107 = vcmp.eq.s32.totalorder %v61, %v98
    %vm108 = vcmp.eq.s32.totalorder %v62, %v98
    %vm109 = vcmp.eq.s32.totalorder %v63, %v98
    %vm110 = vcmp.eq.s32.totalorder %v64, %v98
    %vm111 = vcmp.eq.s32.totalorder %v65, %v98
    %vm112 = vcmp.eq.s32.totalorder %v66, %v98
    %vm113 = vcmp.eq.s32.totalorder %v67, %v98
    %vm114 = vcmp.eq.s32.totalorder %v68, %v98
    %vm115 = vmor %vm75, %vm99
    %vm116 = vmor %vm76, %vm100
    %vm117 = vmor %vm77, %vm101
    %vm118 = vmor %vm78, %vm102
    %vm119 = vmor %vm79, %vm103
    %vm120 = vmor %vm80, %vm104
    %vm121 = vmor %vm81, %vm105
    %vm122 = vmor %vm82, %vm106
    %vm123 = vmor %vm83, %vm107
    %vm124 = vmor %vm84, %vm108
    %vm125 = vmor %vm85, %vm109
    %vm126 = vmor %vm86, %vm110
    %vm127 = vmor %vm87, %vm111
    %vm128 = vmor %vm88, %vm112
    %vm129 = vmor %vm89, %vm113
    %vm130 = vmor %vm90, %vm114
    %v131 = vadd.s32 %v58, 256
    %v132 = vadd.s32 %v59, 256
    %133 = vset.pattern.permute.xlu0 2
    %134 = vperm.xlu0 %133, %v131
    %v135 = vpop.permute.xlu0 %134
    %136 = vset.pattern.permute.xlu0 2
    %137 = vperm.xlu0 %136, %v132
    %v138 = vpop.permute.xlu0 %137
    %vm139 = vcmp.eq.s32.totalorder %v61, %v135
    %vm140 = vcmp.eq.s32.totalorder %v62, %v135
    %vm141 = vcmp.eq.s32.totalorder %v63, %v135
    %vm142 = vcmp.eq.s32.totalorder %v64, %v135
    %vm143 = vcmp.eq.s32.totalorder %v65, %v135
    %vm144 = vcmp.eq.s32.totalorder %v66, %v135
    %vm145 = vcmp.eq.s32.totalorder %v67, %v135
    %vm146 = vcmp.eq.s32.totalorder %v68, %v135
    %vm147 = vcmp.eq.s32.totalorder %v61, %v138
    %vm148 = vcmp.eq.s32.totalorder %v62, %v138
    %vm149 = vcmp.eq.s32.totalorder %v63, %v138
    %vm150 = vcmp.eq.s32.totalorder %v64, %v138
    %vm151 = vcmp.eq.s32.totalorder %v65, %v138
    %vm152 = vcmp.eq.s32.totalorder %v66, %v138
    %vm153 = vcmp.eq.s32.totalorder %v67, %v138
    %vm154 = vcmp.eq.s32.totalorder %v68, %v138
    %vm155 = vmor %vm115, %vm139
    %vm156 = vmor %vm116, %vm140
    %vm157 = vmor %vm117, %vm141
    %vm158 = vmor %vm118, %vm142
    %vm159 = vmor %vm119, %vm143
    %vm160 = vmor %vm120, %vm144
    %vm161 = vmor %vm121, %vm145
    %vm162 = vmor %vm122, %vm146
    %vm163 = vmor %vm123, %vm147
    %vm164 = vmor %vm124, %vm148
    %vm165 = vmor %vm125, %vm149
    %vm166 = vmor %vm126, %vm150
    %vm167 = vmor %vm127, %vm151
    %vm168 = vmor %vm128, %vm152
    %vm169 = vmor %vm129, %vm153
    %vm170 = vmor %vm130, %vm154
    %v171 = vadd.s32 %v58, 384
    %v172 = vadd.s32 %v59, 384
    %173 = vset.pattern.permute.xlu0 3
    %174 = vperm.xlu0 %173, %v171
    %v175 = vpop.permute.xlu0 %174
    %176 = vset.pattern.permute.xlu0 3
    %177 = vperm.xlu0 %176, %v172
    %v178 = vpop.permute.xlu0 %177
    %vm179 = vcmp.eq.s32.totalorder %v61, %v175
    %vm180 = vcmp.eq.s32.totalorder %v62, %v175
    %vm181 = vcmp.eq.s32.totalorder %v63, %v175
    %vm182 = vcmp.eq.s32.totalorder %v64, %v175
    %vm183 = vcmp.eq.s32.totalorder %v65, %v175
    %vm184 = vcmp.eq.s32.totalorder %v66, %v175
    %vm185 = vcmp.eq.s32.totalorder %v67, %v175
    %vm186 = vcmp.eq.s32.totalorder %v68, %v175
    %vm187 = vcmp.eq.s32.totalorder %v61, %v178
    %vm188 = vcmp.eq.s32.totalorder %v62, %v178
    %vm189 = vcmp.eq.s32.totalorder %v63, %v178
    %vm190 = vcmp.eq.s32.totalorder %v64, %v178
    %vm191 = vcmp.eq.s32.totalorder %v65, %v178
    %vm192 = vcmp.eq.s32.totalorder %v66, %v178
    %vm193 = vcmp.eq.s32.totalorder %v67, %v178
    %vm194 = vcmp.eq.s32.totalorder %v68, %v178
    %vm195 = vmor %vm155, %vm179
    %vm196 = vmor %vm156, %vm180
    %vm197 = vmor %vm157, %vm181
    %vm198 = vmor %vm158, %vm182
    %vm199 = vmor %vm159, %vm183
    %vm200 = vmor %vm160, %vm184
    %vm201 = vmor %vm161, %vm185
    %vm202 = vmor %vm162, %vm186
    %vm203 = vmor %vm163, %vm187
    %vm204 = vmor %vm164, %vm188
    %vm205 = vmor %vm165, %vm189
    %vm206 = vmor %vm166, %vm190
    %vm207 = vmor %vm167, %vm191
    %vm208 = vmor %vm168, %vm192
    %vm209 = vmor %vm169, %vm193
    %vm210 = vmor %vm170, %vm194
    %v211 = vadd.s32 %v58, 512
    %v212 = vadd.s32 %v59, 512
    %213 = vset.pattern.permute.xlu0 4
    %214 = vperm.xlu0 %213, %v211
    %v215 = vpop.permute.xlu0 %214
    %216 = vset.pattern.permute.xlu0 4
    %217 = vperm.xlu0 %216, %v212
    %v218 = vpop.permute.xlu0 %217
    %vm219 = vcmp.eq.s32.totalorder %v61, %v215
    %vm220 = vcmp.eq.s32.totalorder %v62, %v215
    %vm221 = vcmp.eq.s32.totalorder %v63, %v215
    %vm222 = vcmp.eq.s32.totalorder %v64, %v215
    %vm223 = vcmp.eq.s32.totalorder %v65, %v215
    %vm224 = vcmp.eq.s32.totalorder %v66, %v215
    %vm225 = vcmp.eq.s32.totalorder %v67, %v215
    %vm226 = vcmp.eq.s32.totalorder %v68, %v215
    %vm227 = vcmp.eq.s32.totalorder %v61, %v218
    %vm228 = vcmp.eq.s32.totalorder %v62, %v218
    %vm229 = vcmp.eq.s32.totalorder %v63, %v218
    %vm230 = vcmp.eq.s32.totalorder %v64, %v218
    %vm231 = vcmp.eq.s32.totalorder %v65, %v218
    %vm232 = vcmp.eq.s32.totalorder %v66, %v218
    %vm233 = vcmp.eq.s32.totalorder %v67, %v218
    %vm234 = vcmp.eq.s32.totalorder %v68, %v218
    %vm235 = vmor %vm195, %vm219
    %vm236 = vmor %vm196, %vm220
    %vm237 = vmor %vm197, %vm221
    %vm238 = vmor %vm198, %vm222
    %vm239 = vmor %vm199, %vm223
    %vm240 = vmor %vm200, %vm224
    %vm241 = vmor %vm201, %vm225
    %vm242 = vmor %vm202, %vm226
    %vm243 = vmor %vm203, %vm227
    %vm244 = vmor %vm204, %vm228
    %vm245 = vmor %vm205, %vm229
    %vm246 = vmor %vm206, %vm230
    %vm247 = vmor %vm207, %vm231
    %vm248 = vmor %vm208, %vm232
    %vm249 = vmor %vm209, %vm233
    %vm250 = vmor %vm210, %vm234
    %v251 = vadd.s32 %v58, 640
    %v252 = vadd.s32 %v59, 640
    %253 = vset.pattern.permute.xlu0 5
    %254 = vperm.xlu0 %253, %v251
    %v255 = vpop.permute.xlu0 %254
    %256 = vset.pattern.permute.xlu0 5
    %257 = vperm.xlu0 %256, %v252
    %v258 = vpop.permute.xlu0 %257
    %vm259 = vcmp.eq.s32.totalorder %v61, %v255
    %vm260 = vcmp.eq.s32.totalorder %v62, %v255
    %vm261 = vcmp.eq.s32.totalorder %v63, %v255
    %vm262 = vcmp.eq.s32.totalorder %v64, %v255
    %vm263 = vcmp.eq.s32.totalorder %v65, %v255
    %vm264 = vcmp.eq.s32.totalorder %v66, %v255
    %vm265 = vcmp.eq.s32.totalorder %v67, %v255
    %vm266 = vcmp.eq.s32.totalorder %v68, %v255
    %vm267 = vcmp.eq.s32.totalorder %v61, %v258
    %vm268 = vcmp.eq.s32.totalorder %v62, %v258
    %vm269 = vcmp.eq.s32.totalorder %v63, %v258
    %vm270 = vcmp.eq.s32.totalorder %v64, %v258
    %vm271 = vcmp.eq.s32.totalorder %v65, %v258
    %vm272 = vcmp.eq.s32.totalorder %v66, %v258
    %vm273 = vcmp.eq.s32.totalorder %v67, %v258
    %vm274 = vcmp.eq.s32.totalorder %v68, %v258
    %vm275 = vmor %vm235, %vm259
    %vm276 = vmor %vm236, %vm260
    %vm277 = vmor %vm237, %vm261
    %vm278 = vmor %vm238, %vm262
    %vm279 = vmor %vm239, %vm263
    %vm280 = vmor %vm240, %vm264
    %vm281 = vmor %vm241, %vm265
    %vm282 = vmor %vm242, %vm266
    %vm283 = vmor %vm243, %vm267
    %vm284 = vmor %vm244, %vm268
    %vm285 = vmor %vm245, %vm269
    %vm286 = vmor %vm246, %vm270
    %vm287 = vmor %vm247, %vm271
    %vm288 = vmor %vm248, %vm272
    %vm289 = vmor %vm249, %vm273
    %vm290 = vmor %vm250, %vm274
    %v291 = vadd.s32 %v58, 768
    %v292 = vadd.s32 %v59, 768
    %293 = vset.pattern.permute.xlu0 6
    %294 = vperm.xlu0 %293, %v291
    %v295 = vpop.permute.xlu0 %294
    %296 = vset.pattern.permute.xlu0 6
    %297 = vperm.xlu0 %296, %v292
    %v298 = vpop.permute.xlu0 %297
    %vm299 = vcmp.eq.s32.totalorder %v61, %v295
    %vm300 = vcmp.eq.s32.totalorder %v62, %v295
    %vm301 = vcmp.eq.s32.totalorder %v63, %v295
    %vm302 = vcmp.eq.s32.totalorder %v64, %v295
    %vm303 = vcmp.eq.s32.totalorder %v65, %v295
    %vm304 = vcmp.eq.s32.totalorder %v66, %v295
    %vm305 = vcmp.eq.s32.totalorder %v67, %v295
    %vm306 = vcmp.eq.s32.totalorder %v68, %v295
    %vm307 = vcmp.eq.s32.totalorder %v61, %v298
    %vm308 = vcmp.eq.s32.totalorder %v62, %v298
    %vm309 = vcmp.eq.s32.totalorder %v63, %v298
    %vm310 = vcmp.eq.s32.totalorder %v64, %v298
    %vm311 = vcmp.eq.s32.totalorder %v65, %v298
    %vm312 = vcmp.eq.s32.totalorder %v66, %v298
    %vm313 = vcmp.eq.s32.totalorder %v67, %v298
    %vm314 = vcmp.eq.s32.totalorder %v68, %v298
    %vm315 = vmor %vm275, %vm299
    %vm316 = vmor %vm276, %vm300
    %vm317 = vmor %vm277, %vm301
    %vm318 = vmor %vm278, %vm302
    %vm319 = vmor %vm279, %vm303
    %vm320 = vmor %vm280, %vm304
    %vm321 = vmor %vm281, %vm305
    %vm322 = vmor %vm282, %vm306
    %vm323 = vmor %vm283, %vm307
    %vm324 = vmor %vm284, %vm308
    %vm325 = vmor %vm285, %vm309
    %vm326 = vmor %vm286, %vm310
    %vm327 = vmor %vm287, %vm311
    %vm328 = vmor %vm288, %vm312
    %vm329 = vmor %vm289, %vm313
    %vm330 = vmor %vm290, %vm314
    %v331 = vadd.s32 %v58, 896
    %v332 = vadd.s32 %v59, 896
    %333 = vset.pattern.permute.xlu0 7
    %334 = vperm.xlu0 %333, %v331
    %v335 = vpop.permute.xlu0 %334
    %336 = vset.pattern.permute.xlu0 7
    %337 = vperm.xlu0 %336, %v332
    %v338 = vpop.permute.xlu0 %337
    %vm339 = vcmp.eq.s32.totalorder %v61, %v335
    %vm340 = vcmp.eq.s32.totalorder %v62, %v335
    %vm341 = vcmp.eq.s32.totalorder %v63, %v335
    %vm342 = vcmp.eq.s32.totalorder %v64, %v335
    %vm343 = vcmp.eq.s32.totalorder %v65, %v335
    %vm344 = vcmp.eq.s32.totalorder %v66, %v335
    %vm345 = vcmp.eq.s32.totalorder %v67, %v335
    %vm346 = vcmp.eq.s32.totalorder %v68, %v335
    %vm347 = vcmp.eq.s32.totalorder %v61, %v338
    %vm348 = vcmp.eq.s32.totalorder %v62, %v338
    %vm349 = vcmp.eq.s32.totalorder %v63, %v338
    %vm350 = vcmp.eq.s32.totalorder %v64, %v338
    %vm351 = vcmp.eq.s32.totalorder %v65, %v338
    %vm352 = vcmp.eq.s32.totalorder %v66, %v338
    %vm353 = vcmp.eq.s32.totalorder %v67, %v338
    %vm354 = vcmp.eq.s32.totalorder %v68, %v338
    %vm355 = vmor %vm315, %vm339
    %vm356 = vmor %vm316, %vm340
    %vm357 = vmor %vm317, %vm341
    %vm358 = vmor %vm318, %vm342
    %vm359 = vmor %vm319, %vm343
    %vm360 = vmor %vm320, %vm344
    %vm361 = vmor %vm321, %vm345
    %vm362 = vmor %vm322, %vm346
    %vm363 = vmor %vm323, %vm347
    %vm364 = vmor %vm324, %vm348
    %vm365 = vmor %vm325, %vm349
    %vm366 = vmor %vm326, %vm350
    %vm367 = vmor %vm327, %vm351
    %vm368 = vmor %vm328, %vm352
    %vm369 = vmor %vm329, %vm353
    %vm370 = vmor %vm330, %vm354
    %v371 = vsel %vm355, 1, 0
    %v372 = vsel %vm356, 1, 0
    %v373 = vsel %vm357, 1, 0
    %v374 = vsel %vm358, 1, 0
    %v375 = vsel %vm359, 1, 0
    %v376 = vsel %vm360, 1, 0
    %v377 = vsel %vm361, 1, 0
    %v378 = vsel %vm362, 1, 0
    %v379 = vsel %vm363, 1, 0
    %v380 = vsel %vm364, 1, 0
    %v381 = vsel %vm365, 1, 0
    %v382 = vsel %vm366, 1, 0
    %v383 = vsel %vm367, 1, 0
    %v384 = vsel %vm368, 1, 0
    %v385 = vsel %vm369, 1, 0
    %v386 = vsel %vm370, 1, 0
    %v387 = vcvt.s32.f32 %v371
    %v388 = vcvt.s32.f32 %v372
    %v389 = vcvt.s32.f32 %v373
    %v390 = vcvt.s32.f32 %v374
    %v391 = vcvt.s32.f32 %v375
    %v392 = vcvt.s32.f32 %v376
    %v393 = vcvt.s32.f32 %v377
    %v394 = vcvt.s32.f32 %v378
    %v395 = vcvt.s32.f32 %v379
    %v396 = vcvt.s32.f32 %v380
    %v397 = vcvt.s32.f32 %v381
    %v398 = vcvt.s32.f32 %v382
    %v399 = vcvt.s32.f32 %v383
    %v400 = vcvt.s32.f32 %v384
    %v401 = vcvt.s32.f32 %v385
    %v402 = vcvt.s32.f32 %v386
    %v403 = vpack.c.bf16 %v395, %v387
    %v404 = vpack.c.bf16 %v396, %v388
    %v405 = vpack.c.bf16 %v397, %v389
    %v406 = vpack.c.bf16 %v398, %v390
    %v407 = vpack.c.bf16 %v399, %v391
    %v408 = vpack.c.bf16 %v400, %v392
    %v409 = vpack.c.bf16 %v401, %v393
    %v410 = vpack.c.bf16 %v402, %v394
    %v411 = vld [vmem:[#allocation2] sm:$0xff]
    %v412 = vld [vmem:[#allocation2 + $0x8] sm:$0xff]
    %v413 = vld [vmem:[#allocation2 + $0x10] sm:$0xff]
    %v414 = vld [vmem:[#allocation2 + $0x18] sm:$0xff]
    %v415 = vld [vmem:[#allocation2 + $0x20] sm:$0xff]
    %v416 = vld [vmem:[#allocation2 + $0x28] sm:$0xff]
    %v417 = vld [vmem:[#allocation2 + $0x30] sm:$0xff]
    %v418 = vld [vmem:[#allocation2 + $0x38] sm:$0xff]
    %v419 = vld [vmem:[#allocation2 + $0x40] sm:$0xff]
    %v420 = vld [vmem:[#allocation2 + $0x48] sm:$0xff]
    %v421 = vld [vmem:[#allocation2 + $0x50] sm:$0xff]
    %v422 = vld [vmem:[#allocation2 + $0x58] sm:$0xff]
    %v423 = vld [vmem:[#allocation2 + $0x60] sm:$0xff]
    %v424 = vld [vmem:[#allocation2 + $0x68] sm:$0xff]
    %v425 = vld [vmem:[#allocation2 + $0x70] sm:$0xff]
    %v426 = vld [vmem:[#allocation2 + $0x78] sm:$0xff]
    %v427 = vld [vmem:[#allocation2 + $0x80] sm:$0xff]
    %v428 = vld [vmem:[#allocation2 + $0x88] sm:$0xff]
    %v429 = vld [vmem:[#allocation2 + $0x90] sm:$0xff]
    %v430 = vld [vmem:[#allocation2 + $0x98] sm:$0xff]
    %v431 = vld [vmem:[#allocation2 + $0xa0] sm:$0xff]
    %v432 = vld [vmem:[#allocation2 + $0xa8] sm:$0xff]
    %v433 = vld [vmem:[#allocation2 + $0xb0] sm:$0xff]
    %v434 = vld [vmem:[#allocation2 + $0xb8] sm:$0xff]
    %v435 = vld [vmem:[#allocation2 + $0xc0] sm:$0xff]
    %v436 = vld [vmem:[#allocation2 + $0xc8] sm:$0xff]
    %v437 = vld [vmem:[#allocation2 + $0xd0] sm:$0xff]
    %v438 = vld [vmem:[#allocation2 + $0xd8] sm:$0xff]
    %v439 = vld [vmem:[#allocation2 + $0xe0] sm:$0xff]
    %v440 = vld [vmem:[#allocation2 + $0xe8] sm:$0xff]
    %v441 = vld [vmem:[#allocation2 + $0xf0] sm:$0xff]
    %v442 = vld [vmem:[#allocation2 + $0xf8] sm:$0xff]
    %v443 = vld [vmem:[#allocation2 + $0x100] sm:$0xff]
    %v444 = vld [vmem:[#allocation2 + $0x108] sm:$0xff]
    %v445 = vld [vmem:[#allocation2 + $0x110] sm:$0xff]
    %v446 = vld [vmem:[#allocation2 + $0x118] sm:$0xff]
    %v447 = vld [vmem:[#allocation2 + $0x120] sm:$0xff]
    %v448 = vld [vmem:[#allocation2 + $0x128] sm:$0xff]
    %v449 = vld [vmem:[#allocation2 + $0x130] sm:$0xff]
    %v450 = vld [vmem:[#allocation2 + $0x138] sm:$0xff]
    %v451 = vld [vmem:[#allocation2 + $0x140] sm:$0xff]
    %v452 = vld [vmem:[#allocation2 + $0x148] sm:$0xff]
    %v453 = vld [vmem:[#allocation2 + $0x150] sm:$0xff]
    %v454 = vld [vmem:[#allocation2 + $0x158] sm:$0xff]
    %v455 = vld [vmem:[#allocation2 + $0x160] sm:$0xff]
    %v456 = vld [vmem:[#allocation2 + $0x168] sm:$0xff]
    %v457 = vld [vmem:[#allocation2 + $0x170] sm:$0xff]
    %v458 = vld [vmem:[#allocation2 + $0x178] sm:$0xff]
    %v459 = vld [vmem:[#allocation2 + $0x180] sm:$0xff]
    %v460 = vld [vmem:[#allocation2 + $0x188] sm:$0xff]
    %v461 = vld [vmem:[#allocation2 + $0x190] sm:$0xff]
    %v462 = vld [vmem:[#allocation2 + $0x198] sm:$0xff]
    %v463 = vld [vmem:[#allocation2 + $0x1a0] sm:$0xff]
    %v464 = vld [vmem:[#allocation2 + $0x1a8] sm:$0xff]
    %v465 = vld [vmem:[#allocation2 + $0x1b0] sm:$0xff]
    %v466 = vld [vmem:[#allocation2 + $0x1b8] sm:$0xff]
    %v467 = vld [vmem:[#allocation2 + $0x1c0] sm:$0xff]
    %v468 = vld [vmem:[#allocation2 + $0x1c8] sm:$0xff]
    %v469 = vld [vmem:[#allocation2 + $0x1d0] sm:$0xff]
    %v470 = vld [vmem:[#allocation2 + $0x1d8] sm:$0xff]
    %v471 = vld [vmem:[#allocation2 + $0x1e0] sm:$0xff]
    %v472 = vld [vmem:[#allocation2 + $0x1e8] sm:$0xff]
    %v473 = vld [vmem:[#allocation2 + $0x1f0] sm:$0xff]
    %v474 = vld [vmem:[#allocation2 + $0x1f8] sm:$0xff]
    %v475 = vld [vmem:[#allocation2 + $0x200] sm:$0xff]
    %v476 = vld [vmem:[#allocation2 + $0x208] sm:$0xff]
    %v477 = vld [vmem:[#allocation2 + $0x210] sm:$0xff]
    %v478 = vld [vmem:[#allocation2 + $0x218] sm:$0xff]
    %v479 = vld [vmem:[#allocation2 + $0x220] sm:$0xff]
    %v480 = vld [vmem:[#allocation2 + $0x228] sm:$0xff]
    %v481 = vld [vmem:[#allocation2 + $0x230] sm:$0xff]
    %v482 = vld [vmem:[#allocation2 + $0x238] sm:$0xff]
    %v483 = vld [vmem:[#allocation2 + $0x240] sm:$0xff]
    %v484 = vld [vmem:[#allocation2 + $0x248] sm:$0xff]
    %v485 = vld [vmem:[#allocation2 + $0x250] sm:$0xff]
    %v486 = vld [vmem:[#allocation2 + $0x258] sm:$0xff]
    %v487 = vld [vmem:[#allocation2 + $0x260] sm:$0xff]
    %v488 = vld [vmem:[#allocation2 + $0x268] sm:$0xff]
    %v489 = vld [vmem:[#allocation2 + $0x270] sm:$0xff]
    %v490 = vld [vmem:[#allocation2 + $0x278] sm:$0xff]
    %v491 = vld [vmem:[#allocation2 + $0x280] sm:$0xff]
    %v492 = vld [vmem:[#allocation2 + $0x288] sm:$0xff]
    %v493 = vld [vmem:[#allocation2 + $0x290] sm:$0xff]
    %v494 = vld [vmem:[#allocation2 + $0x298] sm:$0xff]
    %v495 = vld [vmem:[#allocation2 + $0x2a0] sm:$0xff]
    %v496 = vld [vmem:[#allocation2 + $0x2a8] sm:$0xff]
    %v497 = vld [vmem:[#allocation2 + $0x2b0] sm:$0xff]
    %v498 = vld [vmem:[#allocation2 + $0x2b8] sm:$0xff]
    %v499 = vld [vmem:[#allocation2 + $0x2c0] sm:$0xff]
    %v500 = vld [vmem:[#allocation2 + $0x2c8] sm:$0xff]
    %v501 = vld [vmem:[#allocation2 + $0x2d0] sm:$0xff]
    %v502 = vld [vmem:[#allocation2 + $0x2d8] sm:$0xff]
    %v503 = vld [vmem:[#allocation2 + $0x2e0] sm:$0xff]
    %v504 = vld [vmem:[#allocation2 + $0x2e8] sm:$0xff]
    %v505 = vld [vmem:[#allocation2 + $0x2f0] sm:$0xff]
    %v506 = vld [vmem:[#allocation2 + $0x2f8] sm:$0xff]
    %v507 = vld [vmem:[#allocation2 + $0x300] sm:$0xff]
    %v508 = vld [vmem:[#allocation2 + $0x308] sm:$0xff]
    %v509 = vld [vmem:[#allocation2 + $0x310] sm:$0xff]
    %v510 = vld [vmem:[#allocation2 + $0x318] sm:$0xff]
    %v511 = vld [vmem:[#allocation2 + $0x320] sm:$0xff]
    %v512 = vld [vmem:[#allocation2 + $0x328] sm:$0xff]
    %v513 = vld [vmem:[#allocation2 + $0x330] sm:$0xff]
    %v514 = vld [vmem:[#allocation2 + $0x338] sm:$0xff]
    %v515 = vld [vmem:[#allocation2 + $0x340] sm:$0xff]
    %v516 = vld [vmem:[#allocation2 + $0x348] sm:$0xff]
    %v517 = vld [vmem:[#allocation2 + $0x350] sm:$0xff]
    %v518 = vld [vmem:[#allocation2 + $0x358] sm:$0xff]
    %v519 = vld [vmem:[#allocation2 + $0x360] sm:$0xff]
    %v520 = vld [vmem:[#allocation2 + $0x368] sm:$0xff]
    %v521 = vld [vmem:[#allocation2 + $0x370] sm:$0xff]
    %v522 = vld [vmem:[#allocation2 + $0x378] sm:$0xff]
    %v523 = vld [vmem:[#allocation2 + $0x380] sm:$0xff]
    %v524 = vld [vmem:[#allocation2 + $0x388] sm:$0xff]
    %v525 = vld [vmem:[#allocation2 + $0x390] sm:$0xff]
    %v526 = vld [vmem:[#allocation2 + $0x398] sm:$0xff]
    %v527 = vld [vmem:[#allocation2 + $0x3a0] sm:$0xff]
    %v528 = vld [vmem:[#allocation2 + $0x3a8] sm:$0xff]
    %v529 = vld [vmem:[#allocation2 + $0x3b0] sm:$0xff]
    %v530 = vld [vmem:[#allocation2 + $0x3b8] sm:$0xff]
    %v531 = vld [vmem:[#allocation2 + $0x3c0] sm:$0xff]
    %v532 = vld [vmem:[#allocation2 + $0x3c8] sm:$0xff]
    %v533 = vld [vmem:[#allocation2 + $0x3d0] sm:$0xff]
    %v534 = vld [vmem:[#allocation2 + $0x3d8] sm:$0xff]
    %v535 = vld [vmem:[#allocation2 + $0x3e0] sm:$0xff]
    %v536 = vld [vmem:[#allocation2 + $0x3e8] sm:$0xff]
    %v537 = vld [vmem:[#allocation2 + $0x3f0] sm:$0xff]
    %v538 = vld [vmem:[#allocation2 + $0x3f8] sm:$0xff]
    %v539 = vld [vmem:[#allocation2 + $0x400] sm:$0xff]
    %v540 = vld [vmem:[#allocation2 + $0x408] sm:$0xff]
    %v541 = vld [vmem:[#allocation2 + $0x410] sm:$0xff]
    %v542 = vld [vmem:[#allocation2 + $0x418] sm:$0xff]
    %v543 = vld [vmem:[#allocation2 + $0x420] sm:$0xff]
    %v544 = vld [vmem:[#allocation2 + $0x428] sm:$0xff]
    %v545 = vld [vmem:[#allocation2 + $0x430] sm:$0xff]
    %v546 = vld [vmem:[#allocation2 + $0x438] sm:$0xff]
    %v547 = vld [vmem:[#allocation2 + $0x440] sm:$0xff]
    %v548 = vld [vmem:[#allocation2 + $0x448] sm:$0xff]
    %v549 = vld [vmem:[#allocation2 + $0x450] sm:$0xff]
    %v550 = vld [vmem:[#allocation2 + $0x458] sm:$0xff]
    %v551 = vld [vmem:[#allocation2 + $0x460] sm:$0xff]
    %v552 = vld [vmem:[#allocation2 + $0x468] sm:$0xff]
    %v553 = vld [vmem:[#allocation2 + $0x470] sm:$0xff]
    %v554 = vld [vmem:[#allocation2 + $0x478] sm:$0xff]
    %v555 = vld [vmem:[#allocation2 + $0x480] sm:$0xff]
    %v556 = vld [vmem:[#allocation2 + $0x488] sm:$0xff]
    %v557 = vld [vmem:[#allocation2 + $0x490] sm:$0xff]
    %v558 = vld [vmem:[#allocation2 + $0x498] sm:$0xff]
    %v559 = vld [vmem:[#allocation2 + $0x4a0] sm:$0xff]
    %v560 = vld [vmem:[#allocation2 + $0x4a8] sm:$0xff]
    %v561 = vld [vmem:[#allocation2 + $0x4b0] sm:$0xff]
    %v562 = vld [vmem:[#allocation2 + $0x4b8] sm:$0xff]
    %v563 = vld [vmem:[#allocation2 + $0x4c0] sm:$0xff]
    %v564 = vld [vmem:[#allocation2 + $0x4c8] sm:$0xff]
    %v565 = vld [vmem:[#allocation2 + $0x4d0] sm:$0xff]
    %v566 = vld [vmem:[#allocation2 + $0x4d8] sm:$0xff]
    %v567 = vld [vmem:[#allocation2 + $0x4e0] sm:$0xff]
    %v568 = vld [vmem:[#allocation2 + $0x4e8] sm:$0xff]
    %v569 = vld [vmem:[#allocation2 + $0x4f0] sm:$0xff]
    %v570 = vld [vmem:[#allocation2 + $0x4f8] sm:$0xff]
    %v571 = vld [vmem:[#allocation2 + $0x500] sm:$0xff]
    %v572 = vld [vmem:[#allocation2 + $0x508] sm:$0xff]
    %v573 = vld [vmem:[#allocation2 + $0x510] sm:$0xff]
    %v574 = vld [vmem:[#allocation2 + $0x518] sm:$0xff]
    %v575 = vld [vmem:[#allocation2 + $0x520] sm:$0xff]
    %v576 = vld [vmem:[#allocation2 + $0x528] sm:$0xff]
    %v577 = vld [vmem:[#allocation2 + $0x530] sm:$0xff]
    %v578 = vld [vmem:[#allocation2 + $0x538] sm:$0xff]
    %v579 = vld [vmem:[#allocation2 + $0x540] sm:$0xff]
    %v580 = vld [vmem:[#allocation2 + $0x548] sm:$0xff]
    %v581 = vld [vmem:[#allocation2 + $0x550] sm:$0xff]
    %v582 = vld [vmem:[#allocation2 + $0x558] sm:$0xff]
    %v583 = vld [vmem:[#allocation2 + $0x560] sm:$0xff]
    %v584 = vld [vmem:[#allocation2 + $0x568] sm:$0xff]
    %v585 = vld [vmem:[#allocation2 + $0x570] sm:$0xff]
    %v586 = vld [vmem:[#allocation2 + $0x578] sm:$0xff]
    %v587 = vld [vmem:[#allocation2 + $0x580] sm:$0xff]
    %v588 = vld [vmem:[#allocation2 + $0x588] sm:$0xff]
    %v589 = vld [vmem:[#allocation2 + $0x590] sm:$0xff]
    %v590 = vld [vmem:[#allocation2 + $0x598] sm:$0xff]
    %v591 = vld [vmem:[#allocation2 + $0x5a0] sm:$0xff]
    %v592 = vld [vmem:[#allocation2 + $0x5a8] sm:$0xff]
    %v593 = vld [vmem:[#allocation2 + $0x5b0] sm:$0xff]
    %v594 = vld [vmem:[#allocation2 + $0x5b8] sm:$0xff]
    %v595 = vld [vmem:[#allocation2 + $0x5c0] sm:$0xff]
    %v596 = vld [vmem:[#allocation2 + $0x5c8] sm:$0xff]
    %v597 = vld [vmem:[#allocation2 + $0x5d0] sm:$0xff]
    %v598 = vld [vmem:[#allocation2 + $0x5d8] sm:$0xff]
    %v599 = vld [vmem:[#allocation2 + $0x5e0] sm:$0xff]
    %v600 = vld [vmem:[#allocation2 + $0x5e8] sm:$0xff]
    %v601 = vld [vmem:[#allocation2 + $0x5f0] sm:$0xff]
    %v602 = vld [vmem:[#allocation2 + $0x5f8] sm:$0xff]
    %v603 = vld [vmem:[#allocation2 + $0x600] sm:$0xff]
    %v604 = vld [vmem:[#allocation2 + $0x608] sm:$0xff]
    %v605 = vld [vmem:[#allocation2 + $0x610] sm:$0xff]
    %v606 = vld [vmem:[#allocation2 + $0x618] sm:$0xff]
    %v607 = vld [vmem:[#allocation2 + $0x620] sm:$0xff]
    %v608 = vld [vmem:[#allocation2 + $0x628] sm:$0xff]
    %v609 = vld [vmem:[#allocation2 + $0x630] sm:$0xff]
    %v610 = vld [vmem:[#allocation2 + $0x638] sm:$0xff]
    %v611 = vld [vmem:[#allocation2 + $0x640] sm:$0xff]
    %v612 = vld [vmem:[#allocation2 + $0x648] sm:$0xff]
    %v613 = vld [vmem:[#allocation2 + $0x650] sm:$0xff]
    %v614 = vld [vmem:[#allocation2 + $0x658] sm:$0xff]
    %v615 = vld [vmem:[#allocation2 + $0x660] sm:$0xff]
    %v616 = vld [vmem:[#allocation2 + $0x668] sm:$0xff]
    %v617 = vld [vmem:[#allocation2 + $0x670] sm:$0xff]
    %v618 = vld [vmem:[#allocation2 + $0x678] sm:$0xff]
    %v619 = vld [vmem:[#allocation2 + $0x680] sm:$0xff]
    %v620 = vld [vmem:[#allocation2 + $0x688] sm:$0xff]
    %v621 = vld [vmem:[#allocation2 + $0x690] sm:$0xff]
    %v622 = vld [vmem:[#allocation2 + $0x698] sm:$0xff]
    %v623 = vld [vmem:[#allocation2 + $0x6a0] sm:$0xff]
    %v624 = vld [vmem:[#allocation2 + $0x6a8] sm:$0xff]
    %v625 = vld [vmem:[#allocation2 + $0x6b0] sm:$0xff]
    %v626 = vld [vmem:[#allocation2 + $0x6b8] sm:$0xff]
    %v627 = vld [vmem:[#allocation2 + $0x6c0] sm:$0xff]
    %v628 = vld [vmem:[#allocation2 + $0x6c8] sm:$0xff]
    %v629 = vld [vmem:[#allocation2 + $0x6d0] sm:$0xff]
    %v630 = vld [vmem:[#allocation2 + $0x6d8] sm:$0xff]
    %v631 = vld [vmem:[#allocation2 + $0x6e0] sm:$0xff]
    %v632 = vld [vmem:[#allocation2 + $0x6e8] sm:$0xff]
    %v633 = vld [vmem:[#allocation2 + $0x6f0] sm:$0xff]
    %v634 = vld [vmem:[#allocation2 + $0x6f8] sm:$0xff]
    %v635 = vld [vmem:[#allocation2 + $0x700] sm:$0xff]
    %v636 = vld [vmem:[#allocation2 + $0x708] sm:$0xff]
    %v637 = vld [vmem:[#allocation2 + $0x710] sm:$0xff]
    %v638 = vld [vmem:[#allocation2 + $0x718] sm:$0xff]
    %v639 = vld [vmem:[#allocation2 + $0x720] sm:$0xff]
    %v640 = vld [vmem:[#allocation2 + $0x728] sm:$0xff]
    %v641 = vld [vmem:[#allocation2 + $0x730] sm:$0xff]
    %v642 = vld [vmem:[#allocation2 + $0x738] sm:$0xff]
    %v643 = vld [vmem:[#allocation2 + $0x740] sm:$0xff]
    %v644 = vld [vmem:[#allocation2 + $0x748] sm:$0xff]
    %v645 = vld [vmem:[#allocation2 + $0x750] sm:$0xff]
    %v646 = vld [vmem:[#allocation2 + $0x758] sm:$0xff]
    %v647 = vld [vmem:[#allocation2 + $0x760] sm:$0xff]
    %v648 = vld [vmem:[#allocation2 + $0x768] sm:$0xff]
    %v649 = vld [vmem:[#allocation2 + $0x770] sm:$0xff]
    %v650 = vld [vmem:[#allocation2 + $0x778] sm:$0xff]
    %v651 = vld [vmem:[#allocation2 + $0x780] sm:$0xff]
    %v652 = vld [vmem:[#allocation2 + $0x788] sm:$0xff]
    %v653 = vld [vmem:[#allocation2 + $0x790] sm:$0xff]
    %v654 = vld [vmem:[#allocation2 + $0x798] sm:$0xff]
    %v655 = vld [vmem:[#allocation2 + $0x7a0] sm:$0xff]
    %v656 = vld [vmem:[#allocation2 + $0x7a8] sm:$0xff]
    %v657 = vld [vmem:[#allocation2 + $0x7b0] sm:$0xff]
    %v658 = vld [vmem:[#allocation2 + $0x7b8] sm:$0xff]
    %v659 = vld [vmem:[#allocation2 + $0x7c0] sm:$0xff]
    %v660 = vld [vmem:[#allocation2 + $0x7c8] sm:$0xff]
    %v661 = vld [vmem:[#allocation2 + $0x7d0] sm:$0xff]
    %v662 = vld [vmem:[#allocation2 + $0x7d8] sm:$0xff]
    %v663 = vld [vmem:[#allocation2 + $0x7e0] sm:$0xff]
    %v664 = vld [vmem:[#allocation2 + $0x7e8] sm:$0xff]
    %v665 = vld [vmem:[#allocation2 + $0x7f0] sm:$0xff]
    %v666 = vld [vmem:[#allocation2 + $0x7f8] sm:$0xff]
    %v667 = vld [vmem:[#allocation2 + $0x800] sm:$0xff]
    %v668 = vld [vmem:[#allocation2 + $0x808] sm:$0xff]
    %v669 = vld [vmem:[#allocation2 + $0x810] sm:$0xff]
    %v670 = vld [vmem:[#allocation2 + $0x818] sm:$0xff]
    %v671 = vld [vmem:[#allocation2 + $0x820] sm:$0xff]
    %v672 = vld [vmem:[#allocation2 + $0x828] sm:$0xff]
    %v673 = vld [vmem:[#allocation2 + $0x830] sm:$0xff]
    %v674 = vld [vmem:[#allocation2 + $0x838] sm:$0xff]
    %v675 = vld [vmem:[#allocation2 + $0x840] sm:$0xff]
    %v676 = vld [vmem:[#allocation2 + $0x848] sm:$0xff]
    %v677 = vld [vmem:[#allocation2 + $0x850] sm:$0xff]
    %v678 = vld [vmem:[#allocation2 + $0x858] sm:$0xff]
    %v679 = vld [vmem:[#allocation2 + $0x860] sm:$0xff]
    %v680 = vld [vmem:[#allocation2 + $0x868] sm:$0xff]
    %v681 = vld [vmem:[#allocation2 + $0x870] sm:$0xff]
    %v682 = vld [vmem:[#allocation2 + $0x878] sm:$0xff]
    %v683 = vld [vmem:[#allocation2 + $0x880] sm:$0xff]
    %v684 = vld [vmem:[#allocation2 + $0x888] sm:$0xff]
    %v685 = vld [vmem:[#allocation2 + $0x890] sm:$0xff]
    %v686 = vld [vmem:[#allocation2 + $0x898] sm:$0xff]
    %v687 = vld [vmem:[#allocation2 + $0x8a0] sm:$0xff]
    %v688 = vld [vmem:[#allocation2 + $0x8a8] sm:$0xff]
    %v689 = vld [vmem:[#allocation2 + $0x8b0] sm:$0xff]
    %v690 = vld [vmem:[#allocation2 + $0x8b8] sm:$0xff]
    %v691 = vld [vmem:[#allocation2 + $0x8c0] sm:$0xff]
    %v692 = vld [vmem:[#allocation2 + $0x8c8] sm:$0xff]
    %v693 = vld [vmem:[#allocation2 + $0x8d0] sm:$0xff]
    %v694 = vld [vmem:[#allocation2 + $0x8d8] sm:$0xff]
    %v695 = vld [vmem:[#allocation2 + $0x8e0] sm:$0xff]
    %v696 = vld [vmem:[#allocation2 + $0x8e8] sm:$0xff]
    %v697 = vld [vmem:[#allocation2 + $0x8f0] sm:$0xff]
    %v698 = vld [vmem:[#allocation2 + $0x8f8] sm:$0xff]
    %v699 = vld [vmem:[#allocation2 + $0x900] sm:$0xff]
    %v700 = vld [vmem:[#allocation2 + $0x908] sm:$0xff]
    %v701 = vld [vmem:[#allocation2 + $0x910] sm:$0xff]
    %v702 = vld [vmem:[#allocation2 + $0x918] sm:$0xff]
    %v703 = vld [vmem:[#allocation2 + $0x920] sm:$0xff]
    %v704 = vld [vmem:[#allocation2 + $0x928] sm:$0xff]
    %v705 = vld [vmem:[#allocation2 + $0x930] sm:$0xff]
    %v706 = vld [vmem:[#allocation2 + $0x938] sm:$0xff]
    %v707 = vld [vmem:[#allocation2 + $0x940] sm:$0xff]
    %v708 = vld [vmem:[#allocation2 + $0x948] sm:$0xff]
    %v709 = vld [vmem:[#allocation2 + $0x950] sm:$0xff]
    %v710 = vld [vmem:[#allocation2 + $0x958] sm:$0xff]
    %v711 = vld [vmem:[#allocation2 + $0x960] sm:$0xff]
    %v712 = vld [vmem:[#allocation2 + $0x968] sm:$0xff]
    %v713 = vld [vmem:[#allocation2 + $0x970] sm:$0xff]
    %v714 = vld [vmem:[#allocation2 + $0x978] sm:$0xff]
    %v715 = vld [vmem:[#allocation2 + $0x980] sm:$0xff]
    %v716 = vld [vmem:[#allocation2 + $0x988] sm:$0xff]
    %v717 = vld [vmem:[#allocation2 + $0x990] sm:$0xff]
    %v718 = vld [vmem:[#allocation2 + $0x998] sm:$0xff]
    %v719 = vld [vmem:[#allocation2 + $0x9a0] sm:$0xff]
    %v720 = vld [vmem:[#allocation2 + $0x9a8] sm:$0xff]
    %v721 = vld [vmem:[#allocation2 + $0x9b0] sm:$0xff]
    %v722 = vld [vmem:[#allocation2 + $0x9b8] sm:$0xff]
    %v723 = vld [vmem:[#allocation2 + $0x9c0] sm:$0xff]
    %v724 = vld [vmem:[#allocation2 + $0x9c8] sm:$0xff]
    %v725 = vld [vmem:[#allocation2 + $0x9d0] sm:$0xff]
    %v726 = vld [vmem:[#allocation2 + $0x9d8] sm:$0xff]
    %v727 = vld [vmem:[#allocation2 + $0x9e0] sm:$0xff]
    %v728 = vld [vmem:[#allocation2 + $0x9e8] sm:$0xff]
    %v729 = vld [vmem:[#allocation2 + $0x9f0] sm:$0xff]
    %v730 = vld [vmem:[#allocation2 + $0x9f8] sm:$0xff]
    %v731 = vld [vmem:[#allocation2 + $0xa00] sm:$0xff]
    %v732 = vld [vmem:[#allocation2 + $0xa08] sm:$0xff]
    %v733 = vld [vmem:[#allocation2 + $0xa10] sm:$0xff]
    %v734 = vld [vmem:[#allocation2 + $0xa18] sm:$0xff]
    %v735 = vld [vmem:[#allocation2 + $0xa20] sm:$0xff]
    %v736 = vld [vmem:[#allocation2 + $0xa28] sm:$0xff]
    %v737 = vld [vmem:[#allocation2 + $0xa30] sm:$0xff]
    %v738 = vld [vmem:[#allocation2 + $0xa38] sm:$0xff]
    %v739 = vld [vmem:[#allocation2 + $0xa40] sm:$0xff]
    %v740 = vld [vmem:[#allocation2 + $0xa48] sm:$0xff]
    %v741 = vld [vmem:[#allocation2 + $0xa50] sm:$0xff]
    %v742 = vld [vmem:[#allocation2 + $0xa58] sm:$0xff]
    %v743 = vld [vmem:[#allocation2 + $0xa60] sm:$0xff]
    %v744 = vld [vmem:[#allocation2 + $0xa68] sm:$0xff]
    %v745 = vld [vmem:[#allocation2 + $0xa70] sm:$0xff]
    %v746 = vld [vmem:[#allocation2 + $0xa78] sm:$0xff]
    %v747 = vld [vmem:[#allocation2 + $0xa80] sm:$0xff]
    %v748 = vld [vmem:[#allocation2 + $0xa88] sm:$0xff]
    %v749 = vld [vmem:[#allocation2 + $0xa90] sm:$0xff]
    %v750 = vld [vmem:[#allocation2 + $0xa98] sm:$0xff]
    %v751 = vld [vmem:[#allocation2 + $0xaa0] sm:$0xff]
    %v752 = vld [vmem:[#allocation2 + $0xaa8] sm:$0xff]
    %v753 = vld [vmem:[#allocation2 + $0xab0] sm:$0xff]
    %v754 = vld [vmem:[#allocation2 + $0xab8] sm:$0xff]
    %v755 = vld [vmem:[#allocation2 + $0xac0] sm:$0xff]
    %v756 = vld [vmem:[#allocation2 + $0xac8] sm:$0xff]
    %v757 = vld [vmem:[#allocation2 + $0xad0] sm:$0xff]
    %v758 = vld [vmem:[#allocation2 + $0xad8] sm:$0xff]
    %v759 = vld [vmem:[#allocation2 + $0xae0] sm:$0xff]
    %v760 = vld [vmem:[#allocation2 + $0xae8] sm:$0xff]
    %v761 = vld [vmem:[#allocation2 + $0xaf0] sm:$0xff]
    %v762 = vld [vmem:[#allocation2 + $0xaf8] sm:$0xff]
    %v763 = vld [vmem:[#allocation2 + $0xb00] sm:$0xff]
    %v764 = vld [vmem:[#allocation2 + $0xb08] sm:$0xff]
    %v765 = vld [vmem:[#allocation2 + $0xb10] sm:$0xff]
    %v766 = vld [vmem:[#allocation2 + $0xb18] sm:$0xff]
    %v767 = vld [vmem:[#allocation2 + $0xb20] sm:$0xff]
    %v768 = vld [vmem:[#allocation2 + $0xb28] sm:$0xff]
    %v769 = vld [vmem:[#allocation2 + $0xb30] sm:$0xff]
    %v770 = vld [vmem:[#allocation2 + $0xb38] sm:$0xff]
    %v771 = vld [vmem:[#allocation2 + $0xb40] sm:$0xff]
    %v772 = vld [vmem:[#allocation2 + $0xb48] sm:$0xff]
    %v773 = vld [vmem:[#allocation2 + $0xb50] sm:$0xff]
    %v774 = vld [vmem:[#allocation2 + $0xb58] sm:$0xff]
    %v775 = vld [vmem:[#allocation2 + $0xb60] sm:$0xff]
    %v776 = vld [vmem:[#allocation2 + $0xb68] sm:$0xff]
    %v777 = vld [vmem:[#allocation2 + $0xb70] sm:$0xff]
    %v778 = vld [vmem:[#allocation2 + $0xb78] sm:$0xff]
    %v779 = vld [vmem:[#allocation2 + $0xb80] sm:$0xff]
    %v780 = vld [vmem:[#allocation2 + $0xb88] sm:$0xff]
    %v781 = vld [vmem:[#allocation2 + $0xb90] sm:$0xff]
    %v782 = vld [vmem:[#allocation2 + $0xb98] sm:$0xff]
    %v783 = vld [vmem:[#allocation2 + $0xba0] sm:$0xff]
    %v784 = vld [vmem:[#allocation2 + $0xba8] sm:$0xff]
    %v785 = vld [vmem:[#allocation2 + $0xbb0] sm:$0xff]
    %v786 = vld [vmem:[#allocation2 + $0xbb8] sm:$0xff]
    %v787 = vld [vmem:[#allocation2 + $0xbc0] sm:$0xff]
    %v788 = vld [vmem:[#allocation2 + $0xbc8] sm:$0xff]
    %v789 = vld [vmem:[#allocation2 + $0xbd0] sm:$0xff]
    %v790 = vld [vmem:[#allocation2 + $0xbd8] sm:$0xff]
    %v791 = vld [vmem:[#allocation2 + $0xbe0] sm:$0xff]
    %v792 = vld [vmem:[#allocation2 + $0xbe8] sm:$0xff]
    %v793 = vld [vmem:[#allocation2 + $0xbf0] sm:$0xff]
    %v794 = vld [vmem:[#allocation2 + $0xbf8] sm:$0xff]
    %v795 = vld [vmem:[#allocation5] sm:$0x3f]
    %v797 = vlaneseq
    %v798 = vshrl.u32 %v797, 7
    %v799 = vsub.s32 0, %v798
    %v800 = vrot.slane %v795, %v799
    %v801 = vlaneseq
    %v802 = vshrl.u32 %v801, 7
    %v803 = vsub.s32 1, %v802
    %v804 = vrot.slane %v795, %v803
    %v805 = vlaneseq
    %v806 = vshrl.u32 %v805, 7
    %v807 = vsub.s32 2, %v806
    %v808 = vrot.slane %v795, %v807
    %v809 = vlaneseq
    %v810 = vshrl.u32 %v809, 7
    %v811 = vsub.s32 3, %v810
    %v812 = vrot.slane %v795, %v811
    %v813 = vlaneseq
    %v814 = vshrl.u32 %v813, 7
    %v815 = vsub.s32 4, %v814
    %v816 = vrot.slane %v795, %v815
    %v817 = vlaneseq
    %v818 = vshrl.u32 %v817, 7
    %v819 = vsub.s32 5, %v818
    %v820 = vrot.slane %v795, %v819
    %v1211 = vunpack.c.l.b16 %v411
    %v1212 = vunpack.c.h.b16 %v411
    %v1213 = vunpack.c.l.b16 %v412
    %v1214 = vunpack.c.h.b16 %v412
    %v1215 = vunpack.c.l.b16 %v413
    %v1216 = vunpack.c.h.b16 %v413
    %v1217 = vunpack.c.l.b16 %v414
    %v1218 = vunpack.c.h.b16 %v414
    %v1219 = vunpack.c.l.b16 %v415
    %v1220 = vunpack.c.h.b16 %v415
    %v1221 = vunpack.c.l.b16 %v416
    %v1222 = vunpack.c.h.b16 %v416
    %v1223 = vunpack.c.l.b16 %v417
    %v1224 = vunpack.c.h.b16 %v417
    %v1225 = vunpack.c.l.b16 %v418
    %v1226 = vunpack.c.h.b16 %v418
    %v1227 = vunpack.c.l.b16 %v419
    %v1228 = vunpack.c.h.b16 %v419
    %v1229 = vunpack.c.l.b16 %v420
    %v1230 = vunpack.c.h.b16 %v420
    %v1231 = vunpack.c.l.b16 %v421
    %v1232 = vunpack.c.h.b16 %v421
    %v1233 = vunpack.c.l.b16 %v422
    %v1234 = vunpack.c.h.b16 %v422
    %v1235 = vunpack.c.l.b16 %v423
    %v1236 = vunpack.c.h.b16 %v423
    %v1237 = vunpack.c.l.b16 %v424
    %v1238 = vunpack.c.h.b16 %v424
    %v1239 = vunpack.c.l.b16 %v425
    %v1240 = vunpack.c.h.b16 %v425
    %v1241 = vunpack.c.l.b16 %v426
    %v1242 = vunpack.c.h.b16 %v426
    %v1243 = vunpack.c.l.b16 %v427
    %v1244 = vunpack.c.h.b16 %v427
    %v1245 = vunpack.c.l.b16 %v428
    %v1246 = vunpack.c.h.b16 %v428
    %v1247 = vunpack.c.l.b16 %v429
    %v1248 = vunpack.c.h.b16 %v429
    %v1249 = vunpack.c.l.b16 %v430
    %v1250 = vunpack.c.h.b16 %v430
    %v1251 = vunpack.c.l.b16 %v431
    %v1252 = vunpack.c.h.b16 %v431
    %v1253 = vunpack.c.l.b16 %v432
    %v1254 = vunpack.c.h.b16 %v432
    %v1255 = vunpack.c.l.b16 %v433
    %v1256 = vunpack.c.h.b16 %v433
    %v1257 = vunpack.c.l.b16 %v434
    %v1258 = vunpack.c.h.b16 %v434
    %v1259 = vunpack.c.l.b16 %v435
    %v1260 = vunpack.c.h.b16 %v435
    %v1261 = vunpack.c.l.b16 %v436
    %v1262 = vunpack.c.h.b16 %v436
    %v1263 = vunpack.c.l.b16 %v437
    %v1264 = vunpack.c.h.b16 %v437
    %v1265 = vunpack.c.l.b16 %v438
    %v1266 = vunpack.c.h.b16 %v438
    %v1267 = vunpack.c.l.b16 %v439
    %v1268 = vunpack.c.h.b16 %v439
    %v1269 = vunpack.c.l.b16 %v440
    %v1270 = vunpack.c.h.b16 %v440
    %v1271 = vunpack.c.l.b16 %v441
    %v1272 = vunpack.c.h.b16 %v441
    %v1273 = vunpack.c.l.b16 %v442
    %v1274 = vunpack.c.h.b16 %v442
    %v1275 = vunpack.c.l.b16 %v443
    %v1276 = vunpack.c.h.b16 %v443
    %v1277 = vunpack.c.l.b16 %v444
    %v1278 = vunpack.c.h.b16 %v444
    %v1279 = vunpack.c.l.b16 %v445
    %v1280 = vunpack.c.h.b16 %v445
    %v1281 = vunpack.c.l.b16 %v446
    %v1282 = vunpack.c.h.b16 %v446
    %v1283 = vunpack.c.l.b16 %v447
    %v1284 = vunpack.c.h.b16 %v447
    %v1285 = vunpack.c.l.b16 %v448
    %v1286 = vunpack.c.h.b16 %v448
    %v1287 = vunpack.c.l.b16 %v449
    %v1288 = vunpack.c.h.b16 %v449
    %v1289 = vunpack.c.l.b16 %v450
    %v1290 = vunpack.c.h.b16 %v450
    %v1291 = vunpack.c.l.b16 %v451
    %v1292 = vunpack.c.h.b16 %v451
    %v1293 = vunpack.c.l.b16 %v452
    %v1294 = vunpack.c.h.b16 %v452
    %v1295 = vunpack.c.l.b16 %v453
    %v1296 = vunpack.c.h.b16 %v453
    %v1297 = vunpack.c.l.b16 %v454
    %v1298 = vunpack.c.h.b16 %v454
    %v1299 = vunpack.c.l.b16 %v455
    %v1300 = vunpack.c.h.b16 %v455
    %v1301 = vunpack.c.l.b16 %v456
    %v1302 = vunpack.c.h.b16 %v456
    %v1303 = vunpack.c.l.b16 %v457
    %v1304 = vunpack.c.h.b16 %v457
    %v1305 = vunpack.c.l.b16 %v458
    %v1306 = vunpack.c.h.b16 %v458
    %v1307 = vunpack.c.l.b16 %v459
    %v1308 = vunpack.c.h.b16 %v459
    %v1309 = vunpack.c.l.b16 %v460
    %v1310 = vunpack.c.h.b16 %v460
    %v1311 = vunpack.c.l.b16 %v461
    %v1312 = vunpack.c.h.b16 %v461
    %v1313 = vunpack.c.l.b16 %v462
    %v1314 = vunpack.c.h.b16 %v462
    %v1315 = vunpack.c.l.b16 %v463
    %v1316 = vunpack.c.h.b16 %v463
    %v1317 = vunpack.c.l.b16 %v464
    %v1318 = vunpack.c.h.b16 %v464
    %v1319 = vunpack.c.l.b16 %v465
    %v1320 = vunpack.c.h.b16 %v465
    %v1321 = vunpack.c.l.b16 %v466
    %v1322 = vunpack.c.h.b16 %v466
    %v1323 = vunpack.c.l.b16 %v467
    %v1324 = vunpack.c.h.b16 %v467
    %v1325 = vunpack.c.l.b16 %v468
    %v1326 = vunpack.c.h.b16 %v468
    %v1327 = vunpack.c.l.b16 %v469
    %v1328 = vunpack.c.h.b16 %v469
    %v1329 = vunpack.c.l.b16 %v470
    %v1330 = vunpack.c.h.b16 %v470
    %v1331 = vunpack.c.l.b16 %v471
    %v1332 = vunpack.c.h.b16 %v471
    %v1333 = vunpack.c.l.b16 %v472
    %v1334 = vunpack.c.h.b16 %v472
    %v1335 = vunpack.c.l.b16 %v473
    %v1336 = vunpack.c.h.b16 %v473
    %v1337 = vunpack.c.l.b16 %v474
    %v1338 = vunpack.c.h.b16 %v474
    %v1339 = vunpack.c.l.b16 %v475
    %v1340 = vunpack.c.h.b16 %v475
    %v1341 = vunpack.c.l.b16 %v476
    %v1342 = vunpack.c.h.b16 %v476
    %v1343 = vunpack.c.l.b16 %v477
    %v1344 = vunpack.c.h.b16 %v477
    %v1345 = vunpack.c.l.b16 %v478
    %v1346 = vunpack.c.h.b16 %v478
    %v1347 = vunpack.c.l.b16 %v479
    %v1348 = vunpack.c.h.b16 %v479
    %v1349 = vunpack.c.l.b16 %v480
    %v1350 = vunpack.c.h.b16 %v480
    %v1351 = vunpack.c.l.b16 %v481
    %v1352 = vunpack.c.h.b16 %v481
    %v1353 = vunpack.c.l.b16 %v482
    %v1354 = vunpack.c.h.b16 %v482
    %v1355 = vunpack.c.l.b16 %v483
    %v1356 = vunpack.c.h.b16 %v483
    %v1357 = vunpack.c.l.b16 %v484
    %v1358 = vunpack.c.h.b16 %v484
    %v1359 = vunpack.c.l.b16 %v485
    %v1360 = vunpack.c.h.b16 %v485
    %v1361 = vunpack.c.l.b16 %v486
    %v1362 = vunpack.c.h.b16 %v486
    %v1363 = vunpack.c.l.b16 %v487
    %v1364 = vunpack.c.h.b16 %v487
    %v1365 = vunpack.c.l.b16 %v488
    %v1366 = vunpack.c.h.b16 %v488
    %v1367 = vunpack.c.l.b16 %v489
    %v1368 = vunpack.c.h.b16 %v489
    %v1369 = vunpack.c.l.b16 %v490
    %v1370 = vunpack.c.h.b16 %v490
    %v1371 = vunpack.c.l.b16 %v491
    %v1372 = vunpack.c.h.b16 %v491
    %v1373 = vunpack.c.l.b16 %v492
    %v1374 = vunpack.c.h.b16 %v492
    %v1375 = vunpack.c.l.b16 %v493
    %v1376 = vunpack.c.h.b16 %v493
    %v1377 = vunpack.c.l.b16 %v494
    %v1378 = vunpack.c.h.b16 %v494
    %v1379 = vunpack.c.l.b16 %v495
    %v1380 = vunpack.c.h.b16 %v495
    %v1381 = vunpack.c.l.b16 %v496
    %v1382 = vunpack.c.h.b16 %v496
    %v1383 = vunpack.c.l.b16 %v497
    %v1384 = vunpack.c.h.b16 %v497
    %v1385 = vunpack.c.l.b16 %v498
    %v1386 = vunpack.c.h.b16 %v498
    %v1387 = vunpack.c.l.b16 %v499
    %v1388 = vunpack.c.h.b16 %v499
    %v1389 = vunpack.c.l.b16 %v500
    %v1390 = vunpack.c.h.b16 %v500
    %v1391 = vunpack.c.l.b16 %v501
    %v1392 = vunpack.c.h.b16 %v501
    %v1393 = vunpack.c.l.b16 %v502
    %v1394 = vunpack.c.h.b16 %v502
    %v1395 = vunpack.c.l.b16 %v503
    %v1396 = vunpack.c.h.b16 %v503
    %v1397 = vunpack.c.l.b16 %v504
    %v1398 = vunpack.c.h.b16 %v504
    %v1399 = vunpack.c.l.b16 %v505
    %v1400 = vunpack.c.h.b16 %v505
    %v1401 = vunpack.c.l.b16 %v506
    %v1402 = vunpack.c.h.b16 %v506
    %v1403 = vunpack.c.l.b16 %v507
    %v1404 = vunpack.c.h.b16 %v507
    %v1405 = vunpack.c.l.b16 %v508
    %v1406 = vunpack.c.h.b16 %v508
    %v1407 = vunpack.c.l.b16 %v509
    %v1408 = vunpack.c.h.b16 %v509
    %v1409 = vunpack.c.l.b16 %v510
    %v1410 = vunpack.c.h.b16 %v510
    %v1411 = vunpack.c.l.b16 %v511
    %v1412 = vunpack.c.h.b16 %v511
    %v1413 = vunpack.c.l.b16 %v512
    %v1414 = vunpack.c.h.b16 %v512
    %v1415 = vunpack.c.l.b16 %v513
    %v1416 = vunpack.c.h.b16 %v513
    %v1417 = vunpack.c.l.b16 %v514
    %v1418 = vunpack.c.h.b16 %v514
    %v1419 = vunpack.c.l.b16 %v515
    %v1420 = vunpack.c.h.b16 %v515
    %v1421 = vunpack.c.l.b16 %v516
    %v1422 = vunpack.c.h.b16 %v516
    %v1423 = vunpack.c.l.b16 %v517
    %v1424 = vunpack.c.h.b16 %v517
    %v1425 = vunpack.c.l.b16 %v518
    %v1426 = vunpack.c.h.b16 %v518
    %v1427 = vunpack.c.l.b16 %v519
    %v1428 = vunpack.c.h.b16 %v519
    %v1429 = vunpack.c.l.b16 %v520
    %v1430 = vunpack.c.h.b16 %v520
    %v1431 = vunpack.c.l.b16 %v521
    %v1432 = vunpack.c.h.b16 %v521
    %v1433 = vunpack.c.l.b16 %v522
    %v1434 = vunpack.c.h.b16 %v522
    %v1435 = vunpack.c.l.b16 %v523
    %v1436 = vunpack.c.h.b16 %v523
    %v1437 = vunpack.c.l.b16 %v524
    %v1438 = vunpack.c.h.b16 %v524
    %v1439 = vunpack.c.l.b16 %v525
    %v1440 = vunpack.c.h.b16 %v525
    %v1441 = vunpack.c.l.b16 %v526
    %v1442 = vunpack.c.h.b16 %v526
    %v1443 = vunpack.c.l.b16 %v527
    %v1444 = vunpack.c.h.b16 %v527
    %v1445 = vunpack.c.l.b16 %v528
    %v1446 = vunpack.c.h.b16 %v528
    %v1447 = vunpack.c.l.b16 %v529
    %v1448 = vunpack.c.h.b16 %v529
    %v1449 = vunpack.c.l.b16 %v530
    %v1450 = vunpack.c.h.b16 %v530
    %v1451 = vunpack.c.l.b16 %v531
    %v1452 = vunpack.c.h.b16 %v531
    %v1453 = vunpack.c.l.b16 %v532
    %v1454 = vunpack.c.h.b16 %v532
    %v1455 = vunpack.c.l.b16 %v533
    %v1456 = vunpack.c.h.b16 %v533
    %v1457 = vunpack.c.l.b16 %v534
    %v1458 = vunpack.c.h.b16 %v534
    %v1459 = vunpack.c.l.b16 %v535
    %v1460 = vunpack.c.h.b16 %v535
    %v1461 = vunpack.c.l.b16 %v536
    %v1462 = vunpack.c.h.b16 %v536
    %v1463 = vunpack.c.l.b16 %v537
    %v1464 = vunpack.c.h.b16 %v537
    %v1465 = vunpack.c.l.b16 %v538
    %v1466 = vunpack.c.h.b16 %v538
    %v1467 = vunpack.c.l.b16 %v539
    %v1468 = vunpack.c.h.b16 %v539
    %v1469 = vunpack.c.l.b16 %v540
    %v1470 = vunpack.c.h.b16 %v540
    %v1471 = vunpack.c.l.b16 %v541
    %v1472 = vunpack.c.h.b16 %v541
    %v1473 = vunpack.c.l.b16 %v542
    %v1474 = vunpack.c.h.b16 %v542
    %v1475 = vunpack.c.l.b16 %v543
    %v1476 = vunpack.c.h.b16 %v543
    %v1477 = vunpack.c.l.b16 %v544
    %v1478 = vunpack.c.h.b16 %v544
    %v1479 = vunpack.c.l.b16 %v545
    %v1480 = vunpack.c.h.b16 %v545
    %v1481 = vunpack.c.l.b16 %v546
    %v1482 = vunpack.c.h.b16 %v546
    %v1483 = vunpack.c.l.b16 %v547
    %v1484 = vunpack.c.h.b16 %v547
    %v1485 = vunpack.c.l.b16 %v548
    %v1486 = vunpack.c.h.b16 %v548
    %v1487 = vunpack.c.l.b16 %v549
    %v1488 = vunpack.c.h.b16 %v549
    %v1489 = vunpack.c.l.b16 %v550
    %v1490 = vunpack.c.h.b16 %v550
    %v1491 = vunpack.c.l.b16 %v551
    %v1492 = vunpack.c.h.b16 %v551
    %v1493 = vunpack.c.l.b16 %v552
    %v1494 = vunpack.c.h.b16 %v552
    %v1495 = vunpack.c.l.b16 %v553
    %v1496 = vunpack.c.h.b16 %v553
    %v1497 = vunpack.c.l.b16 %v554
    %v1498 = vunpack.c.h.b16 %v554
    %v1499 = vunpack.c.l.b16 %v555
    %v1500 = vunpack.c.h.b16 %v555
    %v1501 = vunpack.c.l.b16 %v556
    %v1502 = vunpack.c.h.b16 %v556
    %v1503 = vunpack.c.l.b16 %v557
    %v1504 = vunpack.c.h.b16 %v557
    %v1505 = vunpack.c.l.b16 %v558
    %v1506 = vunpack.c.h.b16 %v558
    %v1507 = vunpack.c.l.b16 %v559
    %v1508 = vunpack.c.h.b16 %v559
    %v1509 = vunpack.c.l.b16 %v560
    %v1510 = vunpack.c.h.b16 %v560
    %v1511 = vunpack.c.l.b16 %v561
    %v1512 = vunpack.c.h.b16 %v561
    %v1513 = vunpack.c.l.b16 %v562
    %v1514 = vunpack.c.h.b16 %v562
    %v1515 = vunpack.c.l.b16 %v563
    %v1516 = vunpack.c.h.b16 %v563
    %v1517 = vunpack.c.l.b16 %v564
    %v1518 = vunpack.c.h.b16 %v564
    %v1519 = vunpack.c.l.b16 %v565
    %v1520 = vunpack.c.h.b16 %v565
    %v1521 = vunpack.c.l.b16 %v566
    %v1522 = vunpack.c.h.b16 %v566
    %v1523 = vunpack.c.l.b16 %v567
    %v1524 = vunpack.c.h.b16 %v567
    %v1525 = vunpack.c.l.b16 %v568
    %v1526 = vunpack.c.h.b16 %v568
    %v1527 = vunpack.c.l.b16 %v569
    %v1528 = vunpack.c.h.b16 %v569
    %v1529 = vunpack.c.l.b16 %v570
    %v1530 = vunpack.c.h.b16 %v570
    %v1531 = vunpack.c.l.b16 %v571
    %v1532 = vunpack.c.h.b16 %v571
    %v1533 = vunpack.c.l.b16 %v572
    %v1534 = vunpack.c.h.b16 %v572
    %v1535 = vunpack.c.l.b16 %v573
    %v1536 = vunpack.c.h.b16 %v573
    %v1537 = vunpack.c.l.b16 %v574
    %v1538 = vunpack.c.h.b16 %v574
    %v1539 = vunpack.c.l.b16 %v575
    %v1540 = vunpack.c.h.b16 %v575
    %v1541 = vunpack.c.l.b16 %v576
    %v1542 = vunpack.c.h.b16 %v576
    %v1543 = vunpack.c.l.b16 %v577
    %v1544 = vunpack.c.h.b16 %v577
    %v1545 = vunpack.c.l.b16 %v578
    %v1546 = vunpack.c.h.b16 %v578
    %v1547 = vunpack.c.l.b16 %v579
    %v1548 = vunpack.c.h.b16 %v579
    %v1549 = vunpack.c.l.b16 %v580
    %v1550 = vunpack.c.h.b16 %v580
    %v1551 = vunpack.c.l.b16 %v581
    %v1552 = vunpack.c.h.b16 %v581
    %v1553 = vunpack.c.l.b16 %v582
    %v1554 = vunpack.c.h.b16 %v582
    %v1555 = vunpack.c.l.b16 %v583
    %v1556 = vunpack.c.h.b16 %v583
    %v1557 = vunpack.c.l.b16 %v584
    %v1558 = vunpack.c.h.b16 %v584
    %v1559 = vunpack.c.l.b16 %v585
    %v1560 = vunpack.c.h.b16 %v585
    %v1561 = vunpack.c.l.b16 %v586
    %v1562 = vunpack.c.h.b16 %v586
    %v1563 = vunpack.c.l.b16 %v587
    %v1564 = vunpack.c.h.b16 %v587
    %v1565 = vunpack.c.l.b16 %v588
    %v1566 = vunpack.c.h.b16 %v588
    %v1567 = vunpack.c.l.b16 %v589
    %v1568 = vunpack.c.h.b16 %v589
    %v1569 = vunpack.c.l.b16 %v590
    %v1570 = vunpack.c.h.b16 %v590
    %v1571 = vunpack.c.l.b16 %v591
    %v1572 = vunpack.c.h.b16 %v591
    %v1573 = vunpack.c.l.b16 %v592
    %v1574 = vunpack.c.h.b16 %v592
    %v1575 = vunpack.c.l.b16 %v593
    %v1576 = vunpack.c.h.b16 %v593
    %v1577 = vunpack.c.l.b16 %v594
    %v1578 = vunpack.c.h.b16 %v594
    %v1579 = vunpack.c.l.b16 %v595
    %v1580 = vunpack.c.h.b16 %v595
    %v1581 = vunpack.c.l.b16 %v596
    %v1582 = vunpack.c.h.b16 %v596
    %v1583 = vunpack.c.l.b16 %v597
    %v1584 = vunpack.c.h.b16 %v597
    %v1585 = vunpack.c.l.b16 %v598
    %v1586 = vunpack.c.h.b16 %v598
    %v1587 = vunpack.c.l.b16 %v599
    %v1588 = vunpack.c.h.b16 %v599
    %v1589 = vunpack.c.l.b16 %v600
    %v1590 = vunpack.c.h.b16 %v600
    %v1591 = vunpack.c.l.b16 %v601
    %v1592 = vunpack.c.h.b16 %v601
    %v1593 = vunpack.c.l.b16 %v602
    %v1594 = vunpack.c.h.b16 %v602
    %v1595 = vunpack.c.l.b16 %v603
    %v1596 = vunpack.c.h.b16 %v603
    %v1597 = vunpack.c.l.b16 %v604
    %v1598 = vunpack.c.h.b16 %v604
    %v1599 = vunpack.c.l.b16 %v605
    %v1600 = vunpack.c.h.b16 %v605
    %v1601 = vunpack.c.l.b16 %v606
    %v1602 = vunpack.c.h.b16 %v606
    %v1603 = vunpack.c.l.b16 %v607
    %v1604 = vunpack.c.h.b16 %v607
    %v1605 = vunpack.c.l.b16 %v608
    %v1606 = vunpack.c.h.b16 %v608
    %v1607 = vunpack.c.l.b16 %v609
    %v1608 = vunpack.c.h.b16 %v609
    %v1609 = vunpack.c.l.b16 %v610
    %v1610 = vunpack.c.h.b16 %v610
    %v1611 = vunpack.c.l.b16 %v611
    %v1612 = vunpack.c.h.b16 %v611
    %v1613 = vunpack.c.l.b16 %v612
    %v1614 = vunpack.c.h.b16 %v612
    %v1615 = vunpack.c.l.b16 %v613
    %v1616 = vunpack.c.h.b16 %v613
    %v1617 = vunpack.c.l.b16 %v614
    %v1618 = vunpack.c.h.b16 %v614
    %v1619 = vunpack.c.l.b16 %v615
    %v1620 = vunpack.c.h.b16 %v615
    %v1621 = vunpack.c.l.b16 %v616
    %v1622 = vunpack.c.h.b16 %v616
    %v1623 = vunpack.c.l.b16 %v617
    %v1624 = vunpack.c.h.b16 %v617
    %v1625 = vunpack.c.l.b16 %v618
    %v1626 = vunpack.c.h.b16 %v618
    %v1627 = vunpack.c.l.b16 %v619
    %v1628 = vunpack.c.h.b16 %v619
    %v1629 = vunpack.c.l.b16 %v620
    %v1630 = vunpack.c.h.b16 %v620
    %v1631 = vunpack.c.l.b16 %v621
    %v1632 = vunpack.c.h.b16 %v621
    %v1633 = vunpack.c.l.b16 %v622
    %v1634 = vunpack.c.h.b16 %v622
    %v1635 = vunpack.c.l.b16 %v623
    %v1636 = vunpack.c.h.b16 %v623
    %v1637 = vunpack.c.l.b16 %v624
    %v1638 = vunpack.c.h.b16 %v624
    %v1639 = vunpack.c.l.b16 %v625
    %v1640 = vunpack.c.h.b16 %v625
    %v1641 = vunpack.c.l.b16 %v626
    %v1642 = vunpack.c.h.b16 %v626
    %v1643 = vunpack.c.l.b16 %v627
    %v1644 = vunpack.c.h.b16 %v627
    %v1645 = vunpack.c.l.b16 %v628
    %v1646 = vunpack.c.h.b16 %v628
    %v1647 = vunpack.c.l.b16 %v629
    %v1648 = vunpack.c.h.b16 %v629
    %v1649 = vunpack.c.l.b16 %v630
    %v1650 = vunpack.c.h.b16 %v630
    %v1651 = vunpack.c.l.b16 %v631
    %v1652 = vunpack.c.h.b16 %v631
    %v1653 = vunpack.c.l.b16 %v632
    %v1654 = vunpack.c.h.b16 %v632
    %v1655 = vunpack.c.l.b16 %v633
    %v1656 = vunpack.c.h.b16 %v633
    %v1657 = vunpack.c.l.b16 %v634
    %v1658 = vunpack.c.h.b16 %v634
    %v1659 = vunpack.c.l.b16 %v635
    %v1660 = vunpack.c.h.b16 %v635
    %v1661 = vunpack.c.l.b16 %v636
    %v1662 = vunpack.c.h.b16 %v636
    %v1663 = vunpack.c.l.b16 %v637
    %v1664 = vunpack.c.h.b16 %v637
    %v1665 = vunpack.c.l.b16 %v638
    %v1666 = vunpack.c.h.b16 %v638
    %v1667 = vunpack.c.l.b16 %v639
    %v1668 = vunpack.c.h.b16 %v639
    %v1669 = vunpack.c.l.b16 %v640
    %v1670 = vunpack.c.h.b16 %v640
    %v1671 = vunpack.c.l.b16 %v641
    %v1672 = vunpack.c.h.b16 %v641
    %v1673 = vunpack.c.l.b16 %v642
    %v1674 = vunpack.c.h.b16 %v642
    %v1675 = vunpack.c.l.b16 %v643
    %v1676 = vunpack.c.h.b16 %v643
    %v1677 = vunpack.c.l.b16 %v644
    %v1678 = vunpack.c.h.b16 %v644
    %v1679 = vunpack.c.l.b16 %v645
    %v1680 = vunpack.c.h.b16 %v645
    %v1681 = vunpack.c.l.b16 %v646
    %v1682 = vunpack.c.h.b16 %v646
    %v1683 = vunpack.c.l.b16 %v647
    %v1684 = vunpack.c.h.b16 %v647
    %v1685 = vunpack.c.l.b16 %v648
    %v1686 = vunpack.c.h.b16 %v648
    %v1687 = vunpack.c.l.b16 %v649
    %v1688 = vunpack.c.h.b16 %v649
    %v1689 = vunpack.c.l.b16 %v650
    %v1690 = vunpack.c.h.b16 %v650
    %v1691 = vunpack.c.l.b16 %v651
    %v1692 = vunpack.c.h.b16 %v651
    %v1693 = vunpack.c.l.b16 %v652
    %v1694 = vunpack.c.h.b16 %v652
    %v1695 = vunpack.c.l.b16 %v653
    %v1696 = vunpack.c.h.b16 %v653
    %v1697 = vunpack.c.l.b16 %v654
    %v1698 = vunpack.c.h.b16 %v654
    %v1699 = vunpack.c.l.b16 %v655
    %v1700 = vunpack.c.h.b16 %v655
    %v1701 = vunpack.c.l.b16 %v656
    %v1702 = vunpack.c.h.b16 %v656
    %v1703 = vunpack.c.l.b16 %v657
    %v1704 = vunpack.c.h.b16 %v657
    %v1705 = vunpack.c.l.b16 %v658
    %v1706 = vunpack.c.h.b16 %v658
    %v1707 = vunpack.c.l.b16 %v659
    %v1708 = vunpack.c.h.b16 %v659
    %v1709 = vunpack.c.l.b16 %v660
    %v1710 = vunpack.c.h.b16 %v660
    %v1711 = vunpack.c.l.b16 %v661
    %v1712 = vunpack.c.h.b16 %v661
    %v1713 = vunpack.c.l.b16 %v662
    %v1714 = vunpack.c.h.b16 %v662
    %v1715 = vunpack.c.l.b16 %v663
    %v1716 = vunpack.c.h.b16 %v663
    %v1717 = vunpack.c.l.b16 %v664
    %v1718 = vunpack.c.h.b16 %v664
    %v1719 = vunpack.c.l.b16 %v665
    %v1720 = vunpack.c.h.b16 %v665
    %v1721 = vunpack.c.l.b16 %v666
    %v1722 = vunpack.c.h.b16 %v666
    %v1723 = vunpack.c.l.b16 %v667
    %v1724 = vunpack.c.h.b16 %v667
    %v1725 = vunpack.c.l.b16 %v668
    %v1726 = vunpack.c.h.b16 %v668
    %v1727 = vunpack.c.l.b16 %v669
    %v1728 = vunpack.c.h.b16 %v669
    %v1729 = vunpack.c.l.b16 %v670
    %v1730 = vunpack.c.h.b16 %v670
    %v1731 = vunpack.c.l.b16 %v671
    %v1732 = vunpack.c.h.b16 %v671
    %v1733 = vunpack.c.l.b16 %v672
    %v1734 = vunpack.c.h.b16 %v672
    %v1735 = vunpack.c.l.b16 %v673
    %v1736 = vunpack.c.h.b16 %v673
    %v1737 = vunpack.c.l.b16 %v674
    %v1738 = vunpack.c.h.b16 %v674
    %v1739 = vunpack.c.l.b16 %v675
    %v1740 = vunpack.c.h.b16 %v675
    %v1741 = vunpack.c.l.b16 %v676
    %v1742 = vunpack.c.h.b16 %v676
    %v1743 = vunpack.c.l.b16 %v677
    %v1744 = vunpack.c.h.b16 %v677
    %v1745 = vunpack.c.l.b16 %v678
    %v1746 = vunpack.c.h.b16 %v678
    %v1747 = vunpack.c.l.b16 %v679
    %v1748 = vunpack.c.h.b16 %v679
    %v1749 = vunpack.c.l.b16 %v680
    %v1750 = vunpack.c.h.b16 %v680
    %v1751 = vunpack.c.l.b16 %v681
    %v1752 = vunpack.c.h.b16 %v681
    %v1753 = vunpack.c.l.b16 %v682
    %v1754 = vunpack.c.h.b16 %v682
    %v1755 = vunpack.c.l.b16 %v683
    %v1756 = vunpack.c.h.b16 %v683
    %v1757 = vunpack.c.l.b16 %v684
    %v1758 = vunpack.c.h.b16 %v684
    %v1759 = vunpack.c.l.b16 %v685
    %v1760 = vunpack.c.h.b16 %v685
    %v1761 = vunpack.c.l.b16 %v686
    %v1762 = vunpack.c.h.b16 %v686
    %v1763 = vunpack.c.l.b16 %v687
    %v1764 = vunpack.c.h.b16 %v687
    %v1765 = vunpack.c.l.b16 %v688
    %v1766 = vunpack.c.h.b16 %v688
    %v1767 = vunpack.c.l.b16 %v689
    %v1768 = vunpack.c.h.b16 %v689
    %v1769 = vunpack.c.l.b16 %v690
    %v1770 = vunpack.c.h.b16 %v690
    %v1771 = vunpack.c.l.b16 %v691
    %v1772 = vunpack.c.h.b16 %v691
    %v1773 = vunpack.c.l.b16 %v692
    %v1774 = vunpack.c.h.b16 %v692
    %v1775 = vunpack.c.l.b16 %v693
    %v1776 = vunpack.c.h.b16 %v693
    %v1777 = vunpack.c.l.b16 %v694
    %v1778 = vunpack.c.h.b16 %v694
    %v1779 = vunpack.c.l.b16 %v695
    %v1780 = vunpack.c.h.b16 %v695
    %v1781 = vunpack.c.l.b16 %v696
    %v1782 = vunpack.c.h.b16 %v696
    %v1783 = vunpack.c.l.b16 %v697
    %v1784 = vunpack.c.h.b16 %v697
    %v1785 = vunpack.c.l.b16 %v698
    %v1786 = vunpack.c.h.b16 %v698
    %v1787 = vunpack.c.l.b16 %v699
    %v1788 = vunpack.c.h.b16 %v699
    %v1789 = vunpack.c.l.b16 %v700
    %v1790 = vunpack.c.h.b16 %v700
    %v1791 = vunpack.c.l.b16 %v701
    %v1792 = vunpack.c.h.b16 %v701
    %v1793 = vunpack.c.l.b16 %v702
    %v1794 = vunpack.c.h.b16 %v702
    %v1795 = vunpack.c.l.b16 %v703
    %v1796 = vunpack.c.h.b16 %v703
    %v1797 = vunpack.c.l.b16 %v704
    %v1798 = vunpack.c.h.b16 %v704
    %v1799 = vunpack.c.l.b16 %v705
    %v1800 = vunpack.c.h.b16 %v705
    %v1801 = vunpack.c.l.b16 %v706
    %v1802 = vunpack.c.h.b16 %v706
    %v1803 = vunpack.c.l.b16 %v707
    %v1804 = vunpack.c.h.b16 %v707
    %v1805 = vunpack.c.l.b16 %v708
    %v1806 = vunpack.c.h.b16 %v708
    %v1807 = vunpack.c.l.b16 %v709
    %v1808 = vunpack.c.h.b16 %v709
    %v1809 = vunpack.c.l.b16 %v710
    %v1810 = vunpack.c.h.b16 %v710
    %v1811 = vunpack.c.l.b16 %v711
    %v1812 = vunpack.c.h.b16 %v711
    %v1813 = vunpack.c.l.b16 %v712
    %v1814 = vunpack.c.h.b16 %v712
    %v1815 = vunpack.c.l.b16 %v713
    %v1816 = vunpack.c.h.b16 %v713
    %v1817 = vunpack.c.l.b16 %v714
    %v1818 = vunpack.c.h.b16 %v714
    %v1819 = vunpack.c.l.b16 %v715
    %v1820 = vunpack.c.h.b16 %v715
    %v1821 = vunpack.c.l.b16 %v716
    %v1822 = vunpack.c.h.b16 %v716
    %v1823 = vunpack.c.l.b16 %v717
    %v1824 = vunpack.c.h.b16 %v717
    %v1825 = vunpack.c.l.b16 %v718
    %v1826 = vunpack.c.h.b16 %v718
    %v1827 = vunpack.c.l.b16 %v719
    %v1828 = vunpack.c.h.b16 %v719
    %v1829 = vunpack.c.l.b16 %v720
    %v1830 = vunpack.c.h.b16 %v720
    %v1831 = vunpack.c.l.b16 %v721
    %v1832 = vunpack.c.h.b16 %v721
    %v1833 = vunpack.c.l.b16 %v722
    %v1834 = vunpack.c.h.b16 %v722
    %v1835 = vunpack.c.l.b16 %v723
    %v1836 = vunpack.c.h.b16 %v723
    %v1837 = vunpack.c.l.b16 %v724
    %v1838 = vunpack.c.h.b16 %v724
    %v1839 = vunpack.c.l.b16 %v725
    %v1840 = vunpack.c.h.b16 %v725
    %v1841 = vunpack.c.l.b16 %v726
    %v1842 = vunpack.c.h.b16 %v726
    %v1843 = vunpack.c.l.b16 %v727
    %v1844 = vunpack.c.h.b16 %v727
    %v1845 = vunpack.c.l.b16 %v728
    %v1846 = vunpack.c.h.b16 %v728
    %v1847 = vunpack.c.l.b16 %v729
    %v1848 = vunpack.c.h.b16 %v729
    %v1849 = vunpack.c.l.b16 %v730
    %v1850 = vunpack.c.h.b16 %v730
    %v1851 = vunpack.c.l.b16 %v731
    %v1852 = vunpack.c.h.b16 %v731
    %v1853 = vunpack.c.l.b16 %v732
    %v1854 = vunpack.c.h.b16 %v732
    %v1855 = vunpack.c.l.b16 %v733
    %v1856 = vunpack.c.h.b16 %v733
    %v1857 = vunpack.c.l.b16 %v734
    %v1858 = vunpack.c.h.b16 %v734
    %v1859 = vunpack.c.l.b16 %v735
    %v1860 = vunpack.c.h.b16 %v735
    %v1861 = vunpack.c.l.b16 %v736
    %v1862 = vunpack.c.h.b16 %v736
    %v1863 = vunpack.c.l.b16 %v737
    %v1864 = vunpack.c.h.b16 %v737
    %v1865 = vunpack.c.l.b16 %v738
    %v1866 = vunpack.c.h.b16 %v738
    %v1867 = vunpack.c.l.b16 %v739
    %v1868 = vunpack.c.h.b16 %v739
    %v1869 = vunpack.c.l.b16 %v740
    %v1870 = vunpack.c.h.b16 %v740
    %v1871 = vunpack.c.l.b16 %v741
    %v1872 = vunpack.c.h.b16 %v741
    %v1873 = vunpack.c.l.b16 %v742
    %v1874 = vunpack.c.h.b16 %v742
    %v1875 = vunpack.c.l.b16 %v743
    %v1876 = vunpack.c.h.b16 %v743
    %v1877 = vunpack.c.l.b16 %v744
    %v1878 = vunpack.c.h.b16 %v744
    %v1879 = vunpack.c.l.b16 %v745
    %v1880 = vunpack.c.h.b16 %v745
    %v1881 = vunpack.c.l.b16 %v746
    %v1882 = vunpack.c.h.b16 %v746
    %v1883 = vunpack.c.l.b16 %v747
    %v1884 = vunpack.c.h.b16 %v747
    %v1885 = vunpack.c.l.b16 %v748
    %v1886 = vunpack.c.h.b16 %v748
    %v1887 = vunpack.c.l.b16 %v749
    %v1888 = vunpack.c.h.b16 %v749
    %v1889 = vunpack.c.l.b16 %v750
    %v1890 = vunpack.c.h.b16 %v750
    %v1891 = vunpack.c.l.b16 %v751
    %v1892 = vunpack.c.h.b16 %v751
    %v1893 = vunpack.c.l.b16 %v752
    %v1894 = vunpack.c.h.b16 %v752
    %v1895 = vunpack.c.l.b16 %v753
    %v1896 = vunpack.c.h.b16 %v753
    %v1897 = vunpack.c.l.b16 %v754
    %v1898 = vunpack.c.h.b16 %v754
    %v1899 = vunpack.c.l.b16 %v755
    %v1900 = vunpack.c.h.b16 %v755
    %v1901 = vunpack.c.l.b16 %v756
    %v1902 = vunpack.c.h.b16 %v756
    %v1903 = vunpack.c.l.b16 %v757
    %v1904 = vunpack.c.h.b16 %v757
    %v1905 = vunpack.c.l.b16 %v758
    %v1906 = vunpack.c.h.b16 %v758
    %v1907 = vunpack.c.l.b16 %v759
    %v1908 = vunpack.c.h.b16 %v759
    %v1909 = vunpack.c.l.b16 %v760
    %v1910 = vunpack.c.h.b16 %v760
    %v1911 = vunpack.c.l.b16 %v761
    %v1912 = vunpack.c.h.b16 %v761
    %v1913 = vunpack.c.l.b16 %v762
    %v1914 = vunpack.c.h.b16 %v762
    %v1915 = vunpack.c.l.b16 %v763
    %v1916 = vunpack.c.h.b16 %v763
    %v1917 = vunpack.c.l.b16 %v764
    %v1918 = vunpack.c.h.b16 %v764
    %v1919 = vunpack.c.l.b16 %v765
    %v1920 = vunpack.c.h.b16 %v765
    %v1921 = vunpack.c.l.b16 %v766
    %v1922 = vunpack.c.h.b16 %v766
    %v1923 = vunpack.c.l.b16 %v767
    %v1924 = vunpack.c.h.b16 %v767
    %v1925 = vunpack.c.l.b16 %v768
    %v1926 = vunpack.c.h.b16 %v768
    %v1927 = vunpack.c.l.b16 %v769
    %v1928 = vunpack.c.h.b16 %v769
    %v1929 = vunpack.c.l.b16 %v770
    %v1930 = vunpack.c.h.b16 %v770
    %v1931 = vunpack.c.l.b16 %v771
    %v1932 = vunpack.c.h.b16 %v771
    %v1933 = vunpack.c.l.b16 %v772
    %v1934 = vunpack.c.h.b16 %v772
    %v1935 = vunpack.c.l.b16 %v773
    %v1936 = vunpack.c.h.b16 %v773
    %v1937 = vunpack.c.l.b16 %v774
    %v1938 = vunpack.c.h.b16 %v774
    %v1939 = vunpack.c.l.b16 %v775
    %v1940 = vunpack.c.h.b16 %v775
    %v1941 = vunpack.c.l.b16 %v776
    %v1942 = vunpack.c.h.b16 %v776
    %v1943 = vunpack.c.l.b16 %v777
    %v1944 = vunpack.c.h.b16 %v777
    %v1945 = vunpack.c.l.b16 %v778
    %v1946 = vunpack.c.h.b16 %v778
    %v1947 = vunpack.c.l.b16 %v779
    %v1948 = vunpack.c.h.b16 %v779
    %v1949 = vunpack.c.l.b16 %v780
    %v1950 = vunpack.c.h.b16 %v780
    %v1951 = vunpack.c.l.b16 %v781
    %v1952 = vunpack.c.h.b16 %v781
    %v1953 = vunpack.c.l.b16 %v782
    %v1954 = vunpack.c.h.b16 %v782
    %v1955 = vunpack.c.l.b16 %v783
    %v1956 = vunpack.c.h.b16 %v783
    %v1957 = vunpack.c.l.b16 %v784
    %v1958 = vunpack.c.h.b16 %v784
    %v1959 = vunpack.c.l.b16 %v785
    %v1960 = vunpack.c.h.b16 %v785
    %v1961 = vunpack.c.l.b16 %v786
    %v1962 = vunpack.c.h.b16 %v786
    %v1963 = vunpack.c.l.b16 %v787
    %v1964 = vunpack.c.h.b16 %v787
    %v1965 = vunpack.c.l.b16 %v788
    %v1966 = vunpack.c.h.b16 %v788
    %v1967 = vunpack.c.l.b16 %v789
    %v1968 = vunpack.c.h.b16 %v789
    %v1969 = vunpack.c.l.b16 %v790
    %v1970 = vunpack.c.h.b16 %v790
    %v1971 = vunpack.c.l.b16 %v791
    %v1972 = vunpack.c.h.b16 %v791
    %v1973 = vunpack.c.l.b16 %v792
    %v1974 = vunpack.c.h.b16 %v792
    %v1975 = vunpack.c.l.b16 %v793
    %v1976 = vunpack.c.h.b16 %v793
    %v1977 = vunpack.c.l.b16 %v794
    %v1978 = vunpack.c.h.b16 %v794
    %v1979 = vpack.c.b16 %v1217, %v1211
    %v1980 = vpack.c.b16 %v1218, %v1212
    %v1981 = vpack.c.b16 %v1219, %v1213
    %v1982 = vpack.c.b16 %v1220, %v1214
    %v1983 = vpack.c.b16 %v1221, %v1215
    %v1984 = vpack.c.b16 %v1222, %v1216
    %v1985 = vpack.c.b16 %v1229, %v1223
    %v1986 = vpack.c.b16 %v1230, %v1224
    %v1987 = vpack.c.b16 %v1231, %v1225
    %v1988 = vpack.c.b16 %v1232, %v1226
    %v1989 = vpack.c.b16 %v1233, %v1227
    %v1990 = vpack.c.b16 %v1234, %v1228
    %v1991 = vpack.c.b16 %v1241, %v1235
    %v1992 = vpack.c.b16 %v1242, %v1236
    %v1993 = vpack.c.b16 %v1243, %v1237
    %v1994 = vpack.c.b16 %v1244, %v1238
    %v1995 = vpack.c.b16 %v1245, %v1239
    %v1996 = vpack.c.b16 %v1246, %v1240
    %v1997 = vpack.c.b16 %v1253, %v1247
    %v1998 = vpack.c.b16 %v1254, %v1248
    %v1999 = vpack.c.b16 %v1255, %v1249
    %v2000 = vpack.c.b16 %v1256, %v1250
    %v2001 = vpack.c.b16 %v1257, %v1251
    %v2002 = vpack.c.b16 %v1258, %v1252
    %v2003 = vpack.c.b16 %v1265, %v1259
    %v2004 = vpack.c.b16 %v1266, %v1260
    %v2005 = vpack.c.b16 %v1267, %v1261
    %v2006 = vpack.c.b16 %v1268, %v1262
    %v2007 = vpack.c.b16 %v1269, %v1263
    %v2008 = vpack.c.b16 %v1270, %v1264
    %v2009 = vpack.c.b16 %v1277, %v1271
    %v2010 = vpack.c.b16 %v1278, %v1272
    %v2011 = vpack.c.b16 %v1279, %v1273
    %v2012 = vpack.c.b16 %v1280, %v1274
    %v2013 = vpack.c.b16 %v1281, %v1275
    %v2014 = vpack.c.b16 %v1282, %v1276
    %v2015 = vpack.c.b16 %v1289, %v1283
    %v2016 = vpack.c.b16 %v1290, %v1284
    %v2017 = vpack.c.b16 %v1291, %v1285
    %v2018 = vpack.c.b16 %v1292, %v1286
    %v2019 = vpack.c.b16 %v1293, %v1287
    %v2020 = vpack.c.b16 %v1294, %v1288
    %v2021 = vpack.c.b16 %v1301, %v1295
    %v2022 = vpack.c.b16 %v1302, %v1296
    %v2023 = vpack.c.b16 %v1303, %v1297
    %v2024 = vpack.c.b16 %v1304, %v1298
    %v2025 = vpack.c.b16 %v1305, %v1299
    %v2026 = vpack.c.b16 %v1306, %v1300
    %v2027 = vpack.c.b16 %v1313, %v1307
    %v2028 = vpack.c.b16 %v1314, %v1308
    %v2029 = vpack.c.b16 %v1315, %v1309
    %v2030 = vpack.c.b16 %v1316, %v1310
    %v2031 = vpack.c.b16 %v1317, %v1311
    %v2032 = vpack.c.b16 %v1318, %v1312
    %v2033 = vpack.c.b16 %v1325, %v1319
    %v2034 = vpack.c.b16 %v1326, %v1320
    %v2035 = vpack.c.b16 %v1327, %v1321
    %v2036 = vpack.c.b16 %v1328, %v1322
    %v2037 = vpack.c.b16 %v1329, %v1323
    %v2038 = vpack.c.b16 %v1330, %v1324
    %v2039 = vpack.c.b16 %v1337, %v1331
    %v2040 = vpack.c.b16 %v1338, %v1332
    %v2041 = vpack.c.b16 %v1339, %v1333
    %v2042 = vpack.c.b16 %v1340, %v1334
    %v2043 = vpack.c.b16 %v1341, %v1335
    %v2044 = vpack.c.b16 %v1342, %v1336
    %v2045 = vpack.c.b16 %v1349, %v1343
    %v2046 = vpack.c.b16 %v1350, %v1344
    %v2047 = vpack.c.b16 %v1351, %v1345
    %v2048 = vpack.c.b16 %v1352, %v1346
    %v2049 = vpack.c.b16 %v1353, %v1347
    %v2050 = vpack.c.b16 %v1354, %v1348
    %v2051 = vpack.c.b16 %v1361, %v1355
    %v2052 = vpack.c.b16 %v1362, %v1356
    %v2053 = vpack.c.b16 %v1363, %v1357
    %v2054 = vpack.c.b16 %v1364, %v1358
    %v2055 = vpack.c.b16 %v1365, %v1359
    %v2056 = vpack.c.b16 %v1366, %v1360
    %v2057 = vpack.c.b16 %v1373, %v1367
    %v2058 = vpack.c.b16 %v1374, %v1368
    %v2059 = vpack.c.b16 %v1375, %v1369
    %v2060 = vpack.c.b16 %v1376, %v1370
    %v2061 = vpack.c.b16 %v1377, %v1371
    %v2062 = vpack.c.b16 %v1378, %v1372
    %v2063 = vpack.c.b16 %v1385, %v1379
    %v2064 = vpack.c.b16 %v1386, %v1380
    %v2065 = vpack.c.b16 %v1387, %v1381
    %v2066 = vpack.c.b16 %v1388, %v1382
    %v2067 = vpack.c.b16 %v1389, %v1383
    %v2068 = vpack.c.b16 %v1390, %v1384
    %v2069 = vpack.c.b16 %v1397, %v1391
    %v2070 = vpack.c.b16 %v1398, %v1392
    %v2071 = vpack.c.b16 %v1399, %v1393
    %v2072 = vpack.c.b16 %v1400, %v1394
    %v2073 = vpack.c.b16 %v1401, %v1395
    %v2074 = vpack.c.b16 %v1402, %v1396
    %v2075 = vpack.c.b16 %v1409, %v1403
    %v2076 = vpack.c.b16 %v1410, %v1404
    %v2077 = vpack.c.b16 %v1411, %v1405
    %v2078 = vpack.c.b16 %v1412, %v1406
    %v2079 = vpack.c.b16 %v1413, %v1407
    %v2080 = vpack.c.b16 %v1414, %v1408
    %v2081 = vpack.c.b16 %v1421, %v1415
    %v2082 = vpack.c.b16 %v1422, %v1416
    %v2083 = vpack.c.b16 %v1423, %v1417
    %v2084 = vpack.c.b16 %v1424, %v1418
    %v2085 = vpack.c.b16 %v1425, %v1419
    %v2086 = vpack.c.b16 %v1426, %v1420
    %v2087 = vpack.c.b16 %v1433, %v1427
    %v2088 = vpack.c.b16 %v1434, %v1428
    %v2089 = vpack.c.b16 %v1435, %v1429
    %v2090 = vpack.c.b16 %v1436, %v1430
    %v2091 = vpack.c.b16 %v1437, %v1431
    %v2092 = vpack.c.b16 %v1438, %v1432
    %v2093 = vpack.c.b16 %v1445, %v1439
    %v2094 = vpack.c.b16 %v1446, %v1440
    %v2095 = vpack.c.b16 %v1447, %v1441
    %v2096 = vpack.c.b16 %v1448, %v1442
    %v2097 = vpack.c.b16 %v1449, %v1443
    %v2098 = vpack.c.b16 %v1450, %v1444
    %v2099 = vpack.c.b16 %v1457, %v1451
    %v2100 = vpack.c.b16 %v1458, %v1452
    %v2101 = vpack.c.b16 %v1459, %v1453
    %v2102 = vpack.c.b16 %v1460, %v1454
    %v2103 = vpack.c.b16 %v1461, %v1455
    %v2104 = vpack.c.b16 %v1462, %v1456
    %v2105 = vpack.c.b16 %v1469, %v1463
    %v2106 = vpack.c.b16 %v1470, %v1464
    %v2107 = vpack.c.b16 %v1471, %v1465
    %v2108 = vpack.c.b16 %v1472, %v1466
    %v2109 = vpack.c.b16 %v1473, %v1467
    %v2110 = vpack.c.b16 %v1474, %v1468
    %v2111 = vpack.c.b16 %v1481, %v1475
    %v2112 = vpack.c.b16 %v1482, %v1476
    %v2113 = vpack.c.b16 %v1483, %v1477
    %v2114 = vpack.c.b16 %v1484, %v1478
    %v2115 = vpack.c.b16 %v1485, %v1479
    %v2116 = vpack.c.b16 %v1486, %v1480
    %v2117 = vpack.c.b16 %v1493, %v1487
    %v2118 = vpack.c.b16 %v1494, %v1488
    %v2119 = vpack.c.b16 %v1495, %v1489
    %v2120 = vpack.c.b16 %v1496, %v1490
    %v2121 = vpack.c.b16 %v1497, %v1491
    %v2122 = vpack.c.b16 %v1498, %v1492
    %v2123 = vpack.c.b16 %v1505, %v1499
    %v2124 = vpack.c.b16 %v1506, %v1500
    %v2125 = vpack.c.b16 %v1507, %v1501
    %v2126 = vpack.c.b16 %v1508, %v1502
    %v2127 = vpack.c.b16 %v1509, %v1503
    %v2128 = vpack.c.b16 %v1510, %v1504
    %v2129 = vpack.c.b16 %v1517, %v1511
    %v2130 = vpack.c.b16 %v1518, %v1512
    %v2131 = vpack.c.b16 %v1519, %v1513
    %v2132 = vpack.c.b16 %v1520, %v1514
    %v2133 = vpack.c.b16 %v1521, %v1515
    %v2134 = vpack.c.b16 %v1522, %v1516
    %v2135 = vpack.c.b16 %v1529, %v1523
    %v2136 = vpack.c.b16 %v1530, %v1524
    %v2137 = vpack.c.b16 %v1531, %v1525
    %v2138 = vpack.c.b16 %v1532, %v1526
    %v2139 = vpack.c.b16 %v1533, %v1527
    %v2140 = vpack.c.b16 %v1534, %v1528
    %v2141 = vpack.c.b16 %v1541, %v1535
    %v2142 = vpack.c.b16 %v1542, %v1536
    %v2143 = vpack.c.b16 %v1543, %v1537
    %v2144 = vpack.c.b16 %v1544, %v1538
    %v2145 = vpack.c.b16 %v1545, %v1539
    %v2146 = vpack.c.b16 %v1546, %v1540
    %v2147 = vpack.c.b16 %v1553, %v1547
    %v2148 = vpack.c.b16 %v1554, %v1548
    %v2149 = vpack.c.b16 %v1555, %v1549
    %v2150 = vpack.c.b16 %v1556, %v1550
    %v2151 = vpack.c.b16 %v1557, %v1551
    %v2152 = vpack.c.b16 %v1558, %v1552
    %v2153 = vpack.c.b16 %v1565, %v1559
    %v2154 = vpack.c.b16 %v1566, %v1560
    %v2155 = vpack.c.b16 %v1567, %v1561
    %v2156 = vpack.c.b16 %v1568, %v1562
    %v2157 = vpack.c.b16 %v1569, %v1563
    %v2158 = vpack.c.b16 %v1570, %v1564
    %v2159 = vpack.c.b16 %v1577, %v1571
    %v2160 = vpack.c.b16 %v1578, %v1572
    %v2161 = vpack.c.b16 %v1579, %v1573
    %v2162 = vpack.c.b16 %v1580, %v1574
    %v2163 = vpack.c.b16 %v1581, %v1575
    %v2164 = vpack.c.b16 %v1582, %v1576
    %v2165 = vpack.c.b16 %v1589, %v1583
    %v2166 = vpack.c.b16 %v1590, %v1584
    %v2167 = vpack.c.b16 %v1591, %v1585
    %v2168 = vpack.c.b16 %v1592, %v1586
    %v2169 = vpack.c.b16 %v1593, %v1587
    %v2170 = vpack.c.b16 %v1594, %v1588
    %v2171 = vpack.c.b16 %v1601, %v1595
    %v2172 = vpack.c.b16 %v1602, %v1596
    %v2173 = vpack.c.b16 %v1603, %v1597
    %v2174 = vpack.c.b16 %v1604, %v1598
    %v2175 = vpack.c.b16 %v1605, %v1599
    %v2176 = vpack.c.b16 %v1606, %v1600
    %v2177 = vpack.c.b16 %v1613, %v1607
    %v2178 = vpack.c.b16 %v1614, %v1608
    %v2179 = vpack.c.b16 %v1615, %v1609
    %v2180 = vpack.c.b16 %v1616, %v1610
    %v2181 = vpack.c.b16 %v1617, %v1611
    %v2182 = vpack.c.b16 %v1618, %v1612
    %v2183 = vpack.c.b16 %v1625, %v1619
    %v2184 = vpack.c.b16 %v1626, %v1620
    %v2185 = vpack.c.b16 %v1627, %v1621
    %v2186 = vpack.c.b16 %v1628, %v1622
    %v2187 = vpack.c.b16 %v1629, %v1623
    %v2188 = vpack.c.b16 %v1630, %v1624
    %v2189 = vpack.c.b16 %v1637, %v1631
    %v2190 = vpack.c.b16 %v1638, %v1632
    %v2191 = vpack.c.b16 %v1639, %v1633
    %v2192 = vpack.c.b16 %v1640, %v1634
    %v2193 = vpack.c.b16 %v1641, %v1635
    %v2194 = vpack.c.b16 %v1642, %v1636
    %v2195 = vpack.c.b16 %v1649, %v1643
    %v2196 = vpack.c.b16 %v1650, %v1644
    %v2197 = vpack.c.b16 %v1651, %v1645
    %v2198 = vpack.c.b16 %v1652, %v1646
    %v2199 = vpack.c.b16 %v1653, %v1647
    %v2200 = vpack.c.b16 %v1654, %v1648
    %v2201 = vpack.c.b16 %v1661, %v1655
    %v2202 = vpack.c.b16 %v1662, %v1656
    %v2203 = vpack.c.b16 %v1663, %v1657
    %v2204 = vpack.c.b16 %v1664, %v1658
    %v2205 = vpack.c.b16 %v1665, %v1659
    %v2206 = vpack.c.b16 %v1666, %v1660
    %v2207 = vpack.c.b16 %v1673, %v1667
    %v2208 = vpack.c.b16 %v1674, %v1668
    %v2209 = vpack.c.b16 %v1675, %v1669
    %v2210 = vpack.c.b16 %v1676, %v1670
    %v2211 = vpack.c.b16 %v1677, %v1671
    %v2212 = vpack.c.b16 %v1678, %v1672
    %v2213 = vpack.c.b16 %v1685, %v1679
    %v2214 = vpack.c.b16 %v1686, %v1680
    %v2215 = vpack.c.b16 %v1687, %v1681
    %v2216 = vpack.c.b16 %v1688, %v1682
    %v2217 = vpack.c.b16 %v1689, %v1683
    %v2218 = vpack.c.b16 %v1690, %v1684
    %v2219 = vpack.c.b16 %v1697, %v1691
    %v2220 = vpack.c.b16 %v1698, %v1692
    %v2221 = vpack.c.b16 %v1699, %v1693
    %v2222 = vpack.c.b16 %v1700, %v1694
    %v2223 = vpack.c.b16 %v1701, %v1695
    %v2224 = vpack.c.b16 %v1702, %v1696
    %v2225 = vpack.c.b16 %v1709, %v1703
    %v2226 = vpack.c.b16 %v1710, %v1704
    %v2227 = vpack.c.b16 %v1711, %v1705
    %v2228 = vpack.c.b16 %v1712, %v1706
    %v2229 = vpack.c.b16 %v1713, %v1707
    %v2230 = vpack.c.b16 %v1714, %v1708
    %v2231 = vpack.c.b16 %v1721, %v1715
    %v2232 = vpack.c.b16 %v1722, %v1716
    %v2233 = vpack.c.b16 %v1723, %v1717
    %v2234 = vpack.c.b16 %v1724, %v1718
    %v2235 = vpack.c.b16 %v1725, %v1719
    %v2236 = vpack.c.b16 %v1726, %v1720
    %v2237 = vpack.c.b16 %v1733, %v1727
    %v2238 = vpack.c.b16 %v1734, %v1728
    %v2239 = vpack.c.b16 %v1735, %v1729
    %v2240 = vpack.c.b16 %v1736, %v1730
    %v2241 = vpack.c.b16 %v1737, %v1731
    %v2242 = vpack.c.b16 %v1738, %v1732
    %v2243 = vpack.c.b16 %v1745, %v1739
    %v2244 = vpack.c.b16 %v1746, %v1740
    %v2245 = vpack.c.b16 %v1747, %v1741
    %v2246 = vpack.c.b16 %v1748, %v1742
    %v2247 = vpack.c.b16 %v1749, %v1743
    %v2248 = vpack.c.b16 %v1750, %v1744
    %v2249 = vpack.c.b16 %v1757, %v1751
    %v2250 = vpack.c.b16 %v1758, %v1752
    %v2251 = vpack.c.b16 %v1759, %v1753
    %v2252 = vpack.c.b16 %v1760, %v1754
    %v2253 = vpack.c.b16 %v1761, %v1755
    %v2254 = vpack.c.b16 %v1762, %v1756
    %v2255 = vpack.c.b16 %v1769, %v1763
    %v2256 = vpack.c.b16 %v1770, %v1764
    %v2257 = vpack.c.b16 %v1771, %v1765
    %v2258 = vpack.c.b16 %v1772, %v1766
    %v2259 = vpack.c.b16 %v1773, %v1767
    %v2260 = vpack.c.b16 %v1774, %v1768
    %v2261 = vpack.c.b16 %v1781, %v1775
    %v2262 = vpack.c.b16 %v1782, %v1776
    %v2263 = vpack.c.b16 %v1783, %v1777
    %v2264 = vpack.c.b16 %v1784, %v1778
    %v2265 = vpack.c.b16 %v1785, %v1779
    %v2266 = vpack.c.b16 %v1786, %v1780
    %v2267 = vpack.c.b16 %v1793, %v1787
    %v2268 = vpack.c.b16 %v1794, %v1788
    %v2269 = vpack.c.b16 %v1795, %v1789
    %v2270 = vpack.c.b16 %v1796, %v1790
    %v2271 = vpack.c.b16 %v1797, %v1791
    %v2272 = vpack.c.b16 %v1798, %v1792
    %v2273 = vpack.c.b16 %v1805, %v1799
    %v2274 = vpack.c.b16 %v1806, %v1800
    %v2275 = vpack.c.b16 %v1807, %v1801
    %v2276 = vpack.c.b16 %v1808, %v1802
    %v2277 = vpack.c.b16 %v1809, %v1803
    %v2278 = vpack.c.b16 %v1810, %v1804
    %v2279 = vpack.c.b16 %v1817, %v1811
    %v2280 = vpack.c.b16 %v1818, %v1812
    %v2281 = vpack.c.b16 %v1819, %v1813
    %v2282 = vpack.c.b16 %v1820, %v1814
    %v2283 = vpack.c.b16 %v1821, %v1815
    %v2284 = vpack.c.b16 %v1822, %v1816
    %v2285 = vpack.c.b16 %v1829, %v1823
    %v2286 = vpack.c.b16 %v1830, %v1824
    %v2287 = vpack.c.b16 %v1831, %v1825
    %v2288 = vpack.c.b16 %v1832, %v1826
    %v2289 = vpack.c.b16 %v1833, %v1827
    %v2290 = vpack.c.b16 %v1834, %v1828
    %v2291 = vpack.c.b16 %v1841, %v1835
    %v2292 = vpack.c.b16 %v1842, %v1836
    %v2293 = vpack.c.b16 %v1843, %v1837
    %v2294 = vpack.c.b16 %v1844, %v1838
    %v2295 = vpack.c.b16 %v1845, %v1839
    %v2296 = vpack.c.b16 %v1846, %v1840
    %v2297 = vpack.c.b16 %v1853, %v1847
    %v2298 = vpack.c.b16 %v1854, %v1848
    %v2299 = vpack.c.b16 %v1855, %v1849
    %v2300 = vpack.c.b16 %v1856, %v1850
    %v2301 = vpack.c.b16 %v1857, %v1851
    %v2302 = vpack.c.b16 %v1858, %v1852
    %v2303 = vpack.c.b16 %v1865, %v1859
    %v2304 = vpack.c.b16 %v1866, %v1860
    %v2305 = vpack.c.b16 %v1867, %v1861
    %v2306 = vpack.c.b16 %v1868, %v1862
    %v2307 = vpack.c.b16 %v1869, %v1863
    %v2308 = vpack.c.b16 %v1870, %v1864
    %v2309 = vpack.c.b16 %v1877, %v1871
    %v2310 = vpack.c.b16 %v1878, %v1872
    %v2311 = vpack.c.b16 %v1879, %v1873
    %v2312 = vpack.c.b16 %v1880, %v1874
    %v2313 = vpack.c.b16 %v1881, %v1875
    %v2314 = vpack.c.b16 %v1882, %v1876
    %v2315 = vpack.c.b16 %v1889, %v1883
    %v2316 = vpack.c.b16 %v1890, %v1884
    %v2317 = vpack.c.b16 %v1891, %v1885
    %v2318 = vpack.c.b16 %v1892, %v1886
    %v2319 = vpack.c.b16 %v1893, %v1887
    %v2320 = vpack.c.b16 %v1894, %v1888
    %v2321 = vpack.c.b16 %v1901, %v1895
    %v2322 = vpack.c.b16 %v1902, %v1896
    %v2323 = vpack.c.b16 %v1903, %v1897
    %v2324 = vpack.c.b16 %v1904, %v1898
    %v2325 = vpack.c.b16 %v1905, %v1899
    %v2326 = vpack.c.b16 %v1906, %v1900
    %v2327 = vpack.c.b16 %v1913, %v1907
    %v2328 = vpack.c.b16 %v1914, %v1908
    %v2329 = vpack.c.b16 %v1915, %v1909
    %v2330 = vpack.c.b16 %v1916, %v1910
    %v2331 = vpack.c.b16 %v1917, %v1911
    %v2332 = vpack.c.b16 %v1918, %v1912
    %v2333 = vpack.c.b16 %v1925, %v1919
    %v2334 = vpack.c.b16 %v1926, %v1920
    %v2335 = vpack.c.b16 %v1927, %v1921
    %v2336 = vpack.c.b16 %v1928, %v1922
    %v2337 = vpack.c.b16 %v1929, %v1923
    %v2338 = vpack.c.b16 %v1930, %v1924
    %v2339 = vpack.c.b16 %v1937, %v1931
    %v2340 = vpack.c.b16 %v1938, %v1932
    %v2341 = vpack.c.b16 %v1939, %v1933
    %v2342 = vpack.c.b16 %v1940, %v1934
    %v2343 = vpack.c.b16 %v1941, %v1935
    %v2344 = vpack.c.b16 %v1942, %v1936
    %v2345 = vpack.c.b16 %v1949, %v1943
    %v2346 = vpack.c.b16 %v1950, %v1944
    %v2347 = vpack.c.b16 %v1951, %v1945
    %v2348 = vpack.c.b16 %v1952, %v1946
    %v2349 = vpack.c.b16 %v1953, %v1947
    %v2350 = vpack.c.b16 %v1954, %v1948
    %v2351 = vpack.c.b16 %v1961, %v1955
    %v2352 = vpack.c.b16 %v1962, %v1956
    %v2353 = vpack.c.b16 %v1963, %v1957
    %v2354 = vpack.c.b16 %v1964, %v1958
    %v2355 = vpack.c.b16 %v1965, %v1959
    %v2356 = vpack.c.b16 %v1966, %v1960
    %v2357 = vpack.c.b16 %v1973, %v1967
    %v2358 = vpack.c.b16 %v1974, %v1968
    %v2359 = vpack.c.b16 %v1975, %v1969
    %v2360 = vpack.c.b16 %v1976, %v1970
    %v2361 = vpack.c.b16 %v1977, %v1971
    %v2362 = vpack.c.b16 %v1978, %v1972
    %2747 = vmatprep.subr.bf16.mxu0 %v1980
    %2748 = vmatpush1.bf16.msra.mxu0 %v1979
    %2749 = vmatprep.subr.bf16.mxu0 %v1986
    %2750 = vmatpush1.bf16.msra.mxu0 %v1985
    %2751 = vmatprep.subr.bf16.mxu0 %v1992
    %2752 = vmatpush1.bf16.msra.mxu0 %v1991
    %2753 = vmatprep.subr.bf16.mxu0 %v1998
    %2754 = vmatpush1.bf16.msra.mxu0 %v1997
    %2755 = vmatprep.subr.bf16.mxu0 %v2004
    %2756 = vmatpush1.bf16.msra.mxu0 %v2003
    %2757 = vmatprep.subr.bf16.mxu0 %v2010
    %2758 = vmatpush1.bf16.msra.mxu0 %v2009
    %2759 = vmatprep.subr.bf16.mxu0 %v2016
    %2760 = vmatpush1.bf16.msra.mxu0 %v2015
    %2761 = vmatprep.subr.bf16.mxu0 %v2022
    %2762 = vmatpush1.bf16.msra.mxu0 %v2021
    %2763 = vmatprep.subr.bf16.mxu0 %v2028
    %2764 = vmatpush1.bf16.msra.mxu0 %v2027
    %2765 = vmatprep.subr.bf16.mxu0 %v2034
    %2766 = vmatpush1.bf16.msra.mxu0 %v2033
    %2767 = vmatprep.subr.bf16.mxu0 %v2040
    %2768 = vmatpush1.bf16.msra.mxu0 %v2039
    %2769 = vmatprep.subr.bf16.mxu0 %v2046
    %2770 = vmatpush1.bf16.msra.mxu0 %v2045
    %2771 = vmatprep.subr.bf16.mxu0 %v2052
    %2772 = vmatpush1.bf16.msra.mxu0 %v2051
    %2773 = vmatprep.subr.bf16.mxu0 %v2058
    %2774 = vmatpush1.bf16.msra.mxu0 %v2057
    %2775 = vmatprep.subr.bf16.mxu0 %v2064
    %2776 = vmatpush1.bf16.msra.mxu0 %v2063
    %2777 = vmatprep.subr.bf16.mxu0 %v2070
    %2778 = vmatpush1.bf16.msra.mxu0 %v2069
    %2779 = vmatprep.mubr.bf16.mxu0 %v404
    %2780 = vmatmul.mubr.bf16.gmra.mrb[0].mxu0 %v403
    %v2781 = vpop.f32.mrb[0].mxu0
    %v2782 = vadd.f32 %v800, %v2781
    %v2783 = vpop.f32.mrb[0].mxu0
    %v2784 = vadd.f32 %v804, %v2783
    %v2785 = vpop.f32.mrb[0].mxu0
    %v2786 = vadd.f32 %v800, %v2785
    %v2787 = vpop.f32.mrb[0].mxu0
    %v2788 = vadd.f32 %v804, %v2787
    %2789 = vdwg.mxu0
    %2790 = vmatprep.subr.bf16.mxu0 %v2076
    %2791 = vmatpush1.bf16.msra.mxu0 %v2075
    %2792 = vmatprep.subr.bf16.mxu0 %v2082
    %2793 = vmatpush1.bf16.msra.mxu0 %v2081
    %2794 = vmatprep.subr.bf16.mxu0 %v2088
    %2795 = vmatpush1.bf16.msra.mxu0 %v2087
    %2796 = vmatprep.subr.bf16.mxu0 %v2094
    %2797 = vmatpush1.bf16.msra.mxu0 %v2093
    %2798 = vmatprep.subr.bf16.mxu0 %v2100
    %2799 = vmatpush1.bf16.msra.mxu0 %v2099
    %2800 = vmatprep.subr.bf16.mxu0 %v2106
    %2801 = vmatpush1.bf16.msra.mxu0 %v2105
    %2802 = vmatprep.subr.bf16.mxu0 %v2112
    %2803 = vmatpush1.bf16.msra.mxu0 %v2111
    %2804 = vmatprep.subr.bf16.mxu0 %v2118
    %2805 = vmatpush1.bf16.msra.mxu0 %v2117
    %2806 = vmatprep.subr.bf16.mxu0 %v2124
    %2807 = vmatpush1.bf16.msra.mxu0 %v2123
    %2808 = vmatprep.subr.bf16.mxu0 %v2130
    %2809 = vmatpush1.bf16.msra.mxu0 %v2129
    %2810 = vmatprep.subr.bf16.mxu0 %v2136
    %2811 = vmatpush1.bf16.msra.mxu0 %v2135
    %2812 = vmatprep.subr.bf16.mxu0 %v2142
    %2813 = vmatpush1.bf16.msra.mxu0 %v2141
    %2814 = vmatprep.subr.bf16.mxu0 %v2148
    %2815 = vmatpush1.bf16.msra.mxu0 %v2147
    %2816 = vmatprep.subr.bf16.mxu0 %v2154
    %2817 = vmatpush1.bf16.msra.mxu0 %v2153
    %2818 = vmatprep.subr.bf16.mxu0 %v2160
    %2819 = vmatpush1.bf16.msra.mxu0 %v2159
    %2820 = vmatprep.subr.bf16.mxu0 %v2166
    %2821 = vmatpush1.bf16.msra.mxu0 %v2165
    %2822 = vmatprep.mubr.bf16.mxu0 %v406
    %2823 = vmatmul.mubr.bf16.gmra.mrb[0].mxu0 %v405
    %v2824 = vpop.f32.mrb[0].mxu0
    %v2825 = vadd.f32 %v2782, %v2824
    %v2826 = vpop.f32.mrb[0].mxu0
    %v2827 = vadd.f32 %v2784, %v2826
    %v2828 = vpop.f32.mrb[0].mxu0
    %v2829 = vadd.f32 %v2786, %v2828
    %v2830 = vpop.f32.mrb[0].mxu0
    %v2831 = vadd.f32 %v2788, %v2830
    %2832 = vdwg.mxu0
    %2833 = vmatprep.subr.bf16.mxu0 %v2172
    %2834 = vmatpush1.bf16.msra.mxu0 %v2171
    %2835 = vmatprep.subr.bf16.mxu0 %v2178
    %2836 = vmatpush1.bf16.msra.mxu0 %v2177
    %2837 = vmatprep.subr.bf16.mxu0 %v2184
    %2838 = vmatpush1.bf16.msra.mxu0 %v2183
    %2839 = vmatprep.subr.bf16.mxu0 %v2190
    %2840 = vmatpush1.bf16.msra.mxu0 %v2189
    %2841 = vmatprep.subr.bf16.mxu0 %v2196
    %2842 = vmatpush1.bf16.msra.mxu0 %v2195
    %2843 = vmatprep.subr.bf16.mxu0 %v2202
    %2844 = vmatpush1.bf16.msra.mxu0 %v2201
    %2845 = vmatprep.subr.bf16.mxu0 %v2208
    %2846 = vmatpush1.bf16.msra.mxu0 %v2207
    %2847 = vmatprep.subr.bf16.mxu0 %v2214
    %2848 = vmatpush1.bf16.msra.mxu0 %v2213
    %2849 = vmatprep.subr.bf16.mxu0 %v2220
    %2850 = vmatpush1.bf16.msra.mxu0 %v2219
    %2851 = vmatprep.subr.bf16.mxu0 %v2226
    %2852 = vmatpush1.bf16.msra.mxu0 %v2225
    %2853 = vmatprep.subr.bf16.mxu0 %v2232
    %2854 = vmatpush1.bf16.msra.mxu0 %v2231
    %2855 = vmatprep.subr.bf16.mxu0 %v2238
    %2856 = vmatpush1.bf16.msra.mxu0 %v2237
    %2857 = vmatprep.subr.bf16.mxu0 %v2244
    %2858 = vmatpush1.bf16.msra.mxu0 %v2243
    %2859 = vmatprep.subr.bf16.mxu0 %v2250
    %2860 = vmatpush1.bf16.msra.mxu0 %v2249
    %2861 = vmatprep.subr.bf16.mxu0 %v2256
    %2862 = vmatpush1.bf16.msra.mxu0 %v2255
    %2863 = vmatprep.subr.bf16.mxu0 %v2262
    %2864 = vmatpush1.bf16.msra.mxu0 %v2261
    %2865 = vmatprep.mubr.bf16.mxu0 %v408
    %2866 = vmatmul.mubr.bf16.gmra.mrb[0].mxu0 %v407
    %v2867 = vpop.f32.mrb[0].mxu0
    %v2868 = vadd.f32 %v2825, %v2867
    %v2869 = vpop.f32.mrb[0].mxu0
    %v2870 = vadd.f32 %v2827, %v2869
    %v2871 = vpop.f32.mrb[0].mxu0
    %v2872 = vadd.f32 %v2829, %v2871
    %v2873 = vpop.f32.mrb[0].mxu0
    %v2874 = vadd.f32 %v2831, %v2873
    %2875 = vdwg.mxu0
    %2876 = vmatprep.subr.bf16.mxu0 %v2268
    %2877 = vmatpush1.bf16.msra.mxu0 %v2267
    %2878 = vmatprep.subr.bf16.mxu0 %v2274
    %2879 = vmatpush1.bf16.msra.mxu0 %v2273
    %2880 = vmatprep.subr.bf16.mxu0 %v2280
    %2881 = vmatpush1.bf16.msra.mxu0 %v2279
    %2882 = vmatprep.subr.bf16.mxu0 %v2286
    %2883 = vmatpush1.bf16.msra.mxu0 %v2285
    %2884 = vmatprep.subr.bf16.mxu0 %v2292
    %2885 = vmatpush1.bf16.msra.mxu0 %v2291
    %2886 = vmatprep.subr.bf16.mxu0 %v2298
    %2887 = vmatpush1.bf16.msra.mxu0 %v2297
    %2888 = vmatprep.subr.bf16.mxu0 %v2304
    %2889 = vmatpush1.bf16.msra.mxu0 %v2303
    %2890 = vmatprep.subr.bf16.mxu0 %v2310
    %2891 = vmatpush1.bf16.msra.mxu0 %v2309
    %2892 = vmatprep.subr.bf16.mxu0 %v2316
    %2893 = vmatpush1.bf16.msra.mxu0 %v2315
    %2894 = vmatprep.subr.bf16.mxu0 %v2322
    %2895 = vmatpush1.bf16.msra.mxu0 %v2321
    %2896 = vmatprep.subr.bf16.mxu0 %v2328
    %2897 = vmatpush1.bf16.msra.mxu0 %v2327
    %2898 = vmatprep.subr.bf16.mxu0 %v2334
    %2899 = vmatpush1.bf16.msra.mxu0 %v2333
    %2900 = vmatprep.subr.bf16.mxu0 %v2340
    %2901 = vmatpush1.bf16.msra.mxu0 %v2339
    %2902 = vmatprep.subr.bf16.mxu0 %v2346
    %2903 = vmatpush1.bf16.msra.mxu0 %v2345
    %2904 = vmatprep.subr.bf16.mxu0 %v2352
    %2905 = vmatpush1.bf16.msra.mxu0 %v2351
    %2906 = vmatprep.subr.bf16.mxu0 %v2358
    %2907 = vmatpush1.bf16.msra.mxu0 %v2357
    %2908 = vmatprep.mubr.bf16.mxu0 %v410
    %2909 = vmatmul.mubr.bf16.gmra.mrb[0].mxu0 %v409
    %v2910 = vpop.f32.mrb[0].mxu0
    %v2911 = vadd.f32 %v2868, %v2910
    %v2912 = vpop.f32.mrb[0].mxu0
    %v2913 = vadd.f32 %v2870, %v2912
    %v2914 = vpop.f32.mrb[0].mxu0
    %v2915 = vadd.f32 %v2872, %v2914
    %v2916 = vpop.f32.mrb[0].mxu0
    %v2917 = vadd.f32 %v2874, %v2916
    %2918 = vdwg.mxu0
    %2919 = vmatprep.subr.bf16.mxu0 %v1982
    %2920 = vmatpush1.bf16.msra.mxu0 %v1981
    %2921 = vmatprep.subr.bf16.mxu0 %v1988
    %2922 = vmatpush1.bf16.msra.mxu0 %v1987
    %2923 = vmatprep.subr.bf16.mxu0 %v1994
    %2924 = vmatpush1.bf16.msra.mxu0 %v1993
    %2925 = vmatprep.subr.bf16.mxu0 %v2000
    %2926 = vmatpush1.bf16.msra.mxu0 %v1999
    %2927 = vmatprep.subr.bf16.mxu0 %v2006
    %2928 = vmatpush1.bf16.msra.mxu0 %v2005
    %2929 = vmatprep.subr.bf16.mxu0 %v2012
    %2930 = vmatpush1.bf16.msra.mxu0 %v2011
    %2931 = vmatprep.subr.bf16.mxu0 %v2018
    %2932 = vmatpush1.bf16.msra.mxu0 %v2017
    %2933 = vmatprep.subr.bf16.mxu0 %v2024
    %2934 = vmatpush1.bf16.msra.mxu0 %v2023
    %2935 = vmatprep.subr.bf16.mxu0 %v2030
    %2936 = vmatpush1.bf16.msra.mxu0 %v2029
    %2937 = vmatprep.subr.bf16.mxu0 %v2036
    %2938 = vmatpush1.bf16.msra.mxu0 %v2035
    %2939 = vmatprep.subr.bf16.mxu0 %v2042
    %2940 = vmatpush1.bf16.msra.mxu0 %v2041
    %2941 = vmatprep.subr.bf16.mxu0 %v2048
    %2942 = vmatpush1.bf16.msra.mxu0 %v2047
    %2943 = vmatprep.subr.bf16.mxu0 %v2054
    %2944 = vmatpush1.bf16.msra.mxu0 %v2053
    %2945 = vmatprep.subr.bf16.mxu0 %v2060
    %2946 = vmatpush1.bf16.msra.mxu0 %v2059
    %2947 = vmatprep.subr.bf16.mxu0 %v2066
    %2948 = vmatpush1.bf16.msra.mxu0 %v2065
    %2949 = vmatprep.subr.bf16.mxu0 %v2072
    %2950 = vmatpush1.bf16.msra.mxu0 %v2071
    %2951 = vmatprep.mubr.bf16.mxu0 %v404
    %2952 = vmatmul.mubr.bf16.gmra.mrb[0].mxu0 %v403
    %v2953 = vpop.f32.mrb[0].mxu0
    %v2954 = vadd.f32 %v808, %v2953
    %v2955 = vpop.f32.mrb[0].mxu0
    %v2956 = vadd.f32 %v812, %v2955
    %v2957 = vpop.f32.mrb[0].mxu0
    %v2958 = vadd.f32 %v808, %v2957
    %v2959 = vpop.f32.mrb[0].mxu0
    %v2960 = vadd.f32 %v812, %v2959
    %2961 = vdwg.mxu0
    %2962 = vmatprep.subr.bf16.mxu0 %v2078
    %2963 = vmatpush1.bf16.msra.mxu0 %v2077
    %2964 = vmatprep.subr.bf16.mxu0 %v2084
    %2965 = vmatpush1.bf16.msra.mxu0 %v2083
    %2966 = vmatprep.subr.bf16.mxu0 %v2090
    %2967 = vmatpush1.bf16.msra.mxu0 %v2089
    %2968 = vmatprep.subr.bf16.mxu0 %v2096
    %2969 = vmatpush1.bf16.msra.mxu0 %v2095
    %2970 = vmatprep.subr.bf16.mxu0 %v2102
    %2971 = vmatpush1.bf16.msra.mxu0 %v2101
    %2972 = vmatprep.subr.bf16.mxu0 %v2108
    %2973 = vmatpush1.bf16.msra.mxu0 %v2107
    %2974 = vmatprep.subr.bf16.mxu0 %v2114
    %2975 = vmatpush1.bf16.msra.mxu0 %v2113
    %2976 = vmatprep.subr.bf16.mxu0 %v2120
    %2977 = vmatpush1.bf16.msra.mxu0 %v2119
    %2978 = vmatprep.subr.bf16.mxu0 %v2126
    %2979 = vmatpush1.bf16.msra.mxu0 %v2125
    %2980 = vmatprep.subr.bf16.mxu0 %v2132
    %2981 = vmatpush1.bf16.msra.mxu0 %v2131
    %2982 = vmatprep.subr.bf16.mxu0 %v2138
    %2983 = vmatpush1.bf16.msra.mxu0 %v2137
    %2984 = vmatprep.subr.bf16.mxu0 %v2144
    %2985 = vmatpush1.bf16.msra.mxu0 %v2143
    %2986 = vmatprep.subr.bf16.mxu0 %v2150
    %2987 = vmatpush1.bf16.msra.mxu0 %v2149
    %2988 = vmatprep.subr.bf16.mxu0 %v2156
    %2989 = vmatpush1.bf16.msra.mxu0 %v2155
    %2990 = vmatprep.subr.bf16.mxu0 %v2162
    %2991 = vmatpush1.bf16.msra.mxu0 %v2161
    %2992 = vmatprep.subr.bf16.mxu0 %v2168
    %2993 = vmatpush1.bf16.msra.mxu0 %v2167
    %2994 = vmatprep.mubr.bf16.mxu0 %v406
    %2995 = vmatmul.mubr.bf16.gmra.mrb[0].mxu0 %v405
    %v2996 = vpop.f32.mrb[0].mxu0
    %v2997 = vadd.f32 %v2954, %v2996
    %v2998 = vpop.f32.mrb[0].mxu0
    %v2999 = vadd.f32 %v2956, %v2998
    %v3000 = vpop.f32.mrb[0].mxu0
    %v3001 = vadd.f32 %v2958, %v3000
    %v3002 = vpop.f32.mrb[0].mxu0
    %v3003 = vadd.f32 %v2960, %v3002
    %3004 = vdwg.mxu0
    %3005 = vmatprep.subr.bf16.mxu0 %v2174
    %3006 = vmatpush1.bf16.msra.mxu0 %v2173
    %3007 = vmatprep.subr.bf16.mxu0 %v2180
    %3008 = vmatpush1.bf16.msra.mxu0 %v2179
    %3009 = vmatprep.subr.bf16.mxu0 %v2186
    %3010 = vmatpush1.bf16.msra.mxu0 %v2185
    %3011 = vmatprep.subr.bf16.mxu0 %v2192
    %3012 = vmatpush1.bf16.msra.mxu0 %v2191
    %3013 = vmatprep.subr.bf16.mxu0 %v2198
    %3014 = vmatpush1.bf16.msra.mxu0 %v2197
    %3015 = vmatprep.subr.bf16.mxu0 %v2204
    %3016 = vmatpush1.bf16.msra.mxu0 %v2203
    %3017 = vmatprep.subr.bf16.mxu0 %v2210
    %3018 = vmatpush1.bf16.msra.mxu0 %v2209
    %3019 = vmatprep.subr.bf16.mxu0 %v2216
    %3020 = vmatpush1.bf16.msra.mxu0 %v2215
    %3021 = vmatprep.subr.bf16.mxu0 %v2222
    %3022 = vmatpush1.bf16.msra.mxu0 %v2221
    %3023 = vmatprep.subr.bf16.mxu0 %v2228
    %3024 = vmatpush1.bf16.msra.mxu0 %v2227
    %3025 = vmatprep.subr.bf16.mxu0 %v2234
    %3026 = vmatpush1.bf16.msra.mxu0 %v2233
    %3027 = vmatprep.subr.bf16.mxu0 %v2240
    %3028 = vmatpush1.bf16.msra.mxu0 %v2239
    %3029 = vmatprep.subr.bf16.mxu0 %v2246
    %3030 = vmatpush1.bf16.msra.mxu0 %v2245
    %3031 = vmatprep.subr.bf16.mxu0 %v2252
    %3032 = vmatpush1.bf16.msra.mxu0 %v2251
    %3033 = vmatprep.subr.bf16.mxu0 %v2258
    %3034 = vmatpush1.bf16.msra.mxu0 %v2257
    %3035 = vmatprep.subr.bf16.mxu0 %v2264
    %3036 = vmatpush1.bf16.msra.mxu0 %v2263
    %3037 = vmatprep.mubr.bf16.mxu0 %v408
    %3038 = vmatmul.mubr.bf16.gmra.mrb[0].mxu0 %v407
    %v3039 = vpop.f32.mrb[0].mxu0
    %v3040 = vadd.f32 %v2997, %v3039
    %v3041 = vpop.f32.mrb[0].mxu0
    %v3042 = vadd.f32 %v2999, %v3041
    %v3043 = vpop.f32.mrb[0].mxu0
    %v3044 = vadd.f32 %v3001, %v3043
    %v3045 = vpop.f32.mrb[0].mxu0
    %v3046 = vadd.f32 %v3003, %v3045
    %3047 = vdwg.mxu0
    %3048 = vmatprep.subr.bf16.mxu0 %v2270
    %3049 = vmatpush1.bf16.msra.mxu0 %v2269
    %3050 = vmatprep.subr.bf16.mxu0 %v2276
    %3051 = vmatpush1.bf16.msra.mxu0 %v2275
    %3052 = vmatprep.subr.bf16.mxu0 %v2282
    %3053 = vmatpush1.bf16.msra.mxu0 %v2281
    %3054 = vmatprep.subr.bf16.mxu0 %v2288
    %3055 = vmatpush1.bf16.msra.mxu0 %v2287
    %3056 = vmatprep.subr.bf16.mxu0 %v2294
    %3057 = vmatpush1.bf16.msra.mxu0 %v2293
    %3058 = vmatprep.subr.bf16.mxu0 %v2300
    %3059 = vmatpush1.bf16.msra.mxu0 %v2299
    %3060 = vmatprep.subr.bf16.mxu0 %v2306
    %3061 = vmatpush1.bf16.msra.mxu0 %v2305
    %3062 = vmatprep.subr.bf16.mxu0 %v2312
    %3063 = vmatpush1.bf16.msra.mxu0 %v2311
    %3064 = vmatprep.subr.bf16.mxu0 %v2318
    %3065 = vmatpush1.bf16.msra.mxu0 %v2317
    %3066 = vmatprep.subr.bf16.mxu0 %v2324
    %3067 = vmatpush1.bf16.msra.mxu0 %v2323
    %3068 = vmatprep.subr.bf16.mxu0 %v2330
    %3069 = vmatpush1.bf16.msra.mxu0 %v2329
    %3070 = vmatprep.subr.bf16.mxu0 %v2336
    %3071 = vmatpush1.bf16.msra.mxu0 %v2335
    %3072 = vmatprep.subr.bf16.mxu0 %v2342
    %3073 = vmatpush1.bf16.msra.mxu0 %v2341
    %3074 = vmatprep.subr.bf16.mxu0 %v2348
    %3075 = vmatpush1.bf16.msra.mxu0 %v2347
    %3076 = vmatprep.subr.bf16.mxu0 %v2354
    %3077 = vmatpush1.bf16.msra.mxu0 %v2353
    %3078 = vmatprep.subr.bf16.mxu0 %v2360
    %3079 = vmatpush1.bf16.msra.mxu0 %v2359
    %3080 = vmatprep.mubr.bf16.mxu0 %v410
    %3081 = vmatmul.mubr.bf16.gmra.mrb[0].mxu0 %v409
    %v3082 = vpop.f32.mrb[0].mxu0
    %v3083 = vadd.f32 %v3040, %v3082
    %v3084 = vpop.f32.mrb[0].mxu0
    %v3085 = vadd.f32 %v3042, %v3084
    %v3086 = vpop.f32.mrb[0].mxu0
    %v3087 = vadd.f32 %v3044, %v3086
    %v3088 = vpop.f32.mrb[0].mxu0
    %v3089 = vadd.f32 %v3046, %v3088
    %3090 = vdwg.mxu0
    %3091 = vmatprep.subr.bf16.mxu0 %v1984
    %3092 = vmatpush1.bf16.msra.mxu0 %v1983
    %3093 = vmatprep.subr.bf16.mxu0 %v1990
    %3094 = vmatpush1.bf16.msra.mxu0 %v1989
    %3095 = vmatprep.subr.bf16.mxu0 %v1996
    %3096 = vmatpush1.bf16.msra.mxu0 %v1995
    %3097 = vmatprep.subr.bf16.mxu0 %v2002
    %3098 = vmatpush1.bf16.msra.mxu0 %v2001
    %3099 = vmatprep.subr.bf16.mxu0 %v2008
    %3100 = vmatpush1.bf16.msra.mxu0 %v2007
    %3101 = vmatprep.subr.bf16.mxu0 %v2014
    %3102 = vmatpush1.bf16.msra.mxu0 %v2013
    %3103 = vmatprep.subr.bf16.mxu0 %v2020
    %3104 = vmatpush1.bf16.msra.mxu0 %v2019
    %3105 = vmatprep.subr.bf16.mxu0 %v2026
    %3106 = vmatpush1.bf16.msra.mxu0 %v2025
    %3107 = vmatprep.subr.bf16.mxu0 %v2032
    %3108 = vmatpush1.bf16.msra.mxu0 %v2031
    %3109 = vmatprep.subr.bf16.mxu0 %v2038
    %3110 = vmatpush1.bf16.msra.mxu0 %v2037
    %3111 = vmatprep.subr.bf16.mxu0 %v2044
    %3112 = vmatpush1.bf16.msra.mxu0 %v2043
    %3113 = vmatprep.subr.bf16.mxu0 %v2050
    %3114 = vmatpush1.bf16.msra.mxu0 %v2049
    %3115 = vmatprep.subr.bf16.mxu0 %v2056
    %3116 = vmatpush1.bf16.msra.mxu0 %v2055
    %3117 = vmatprep.subr.bf16.mxu0 %v2062
    %3118 = vmatpush1.bf16.msra.mxu0 %v2061
    %3119 = vmatprep.subr.bf16.mxu0 %v2068
    %3120 = vmatpush1.bf16.msra.mxu0 %v2067
    %3121 = vmatprep.subr.bf16.mxu0 %v2074
    %3122 = vmatpush1.bf16.msra.mxu0 %v2073
    %3123 = vmatprep.mubr.bf16.mxu0 %v404
    %3124 = vmatmul.mubr.bf16.gmra.mrb[0].mxu0 %v403
    %v3125 = vpop.f32.mrb[0].mxu0
    %v3126 = vadd.f32 %v816, %v3125
    %v3127 = vpop.f32.mrb[0].mxu0
    %v3128 = vadd.f32 %v820, %v3127
    %v3129 = vpop.f32.mrb[0].mxu0
    %v3130 = vadd.f32 %v816, %v3129
    %v3131 = vpop.f32.mrb[0].mxu0
    %v3132 = vadd.f32 %v820, %v3131
    %3133 = vdwg.mxu0
    %3134 = vmatprep.subr.bf16.mxu0 %v2080
    %3135 = vmatpush1.bf16.msra.mxu0 %v2079
    %3136 = vmatprep.subr.bf16.mxu0 %v2086
    %3137 = vmatpush1.bf16.msra.mxu0 %v2085
    %3138 = vmatprep.subr.bf16.mxu0 %v2092
    %3139 = vmatpush1.bf16.msra.mxu0 %v2091
    %3140 = vmatprep.subr.bf16.mxu0 %v2098
    %3141 = vmatpush1.bf16.msra.mxu0 %v2097
    %3142 = vmatprep.subr.bf16.mxu0 %v2104
    %3143 = vmatpush1.bf16.msra.mxu0 %v2103
    %3144 = vmatprep.subr.bf16.mxu0 %v2110
    %3145 = vmatpush1.bf16.msra.mxu0 %v2109
    %3146 = vmatprep.subr.bf16.mxu0 %v2116
    %3147 = vmatpush1.bf16.msra.mxu0 %v2115
    %3148 = vmatprep.subr.bf16.mxu0 %v2122
    %3149 = vmatpush1.bf16.msra.mxu0 %v2121
    %3150 = vmatprep.subr.bf16.mxu0 %v2128
    %3151 = vmatpush1.bf16.msra.mxu0 %v2127
    %3152 = vmatprep.subr.bf16.mxu0 %v2134
    %3153 = vmatpush1.bf16.msra.mxu0 %v2133
    %3154 = vmatprep.subr.bf16.mxu0 %v2140
    %3155 = vmatpush1.bf16.msra.mxu0 %v2139
    %3156 = vmatprep.subr.bf16.mxu0 %v2146
    %3157 = vmatpush1.bf16.msra.mxu0 %v2145
    %3158 = vmatprep.subr.bf16.mxu0 %v2152
    %3159 = vmatpush1.bf16.msra.mxu0 %v2151
    %3160 = vmatprep.subr.bf16.mxu0 %v2158
    %3161 = vmatpush1.bf16.msra.mxu0 %v2157
    %3162 = vmatprep.subr.bf16.mxu0 %v2164
    %3163 = vmatpush1.bf16.msra.mxu0 %v2163
    %3164 = vmatprep.subr.bf16.mxu0 %v2170
    %3165 = vmatpush1.bf16.msra.mxu0 %v2169
    %3166 = vmatprep.mubr.bf16.mxu0 %v406
    %3167 = vmatmul.mubr.bf16.gmra.mrb[0].mxu0 %v405
    %v3168 = vpop.f32.mrb[0].mxu0
    %v3169 = vadd.f32 %v3126, %v3168
    %v3170 = vpop.f32.mrb[0].mxu0
    %v3171 = vadd.f32 %v3128, %v3170
    %v3172 = vpop.f32.mrb[0].mxu0
    %v3173 = vadd.f32 %v3130, %v3172
    %v3174 = vpop.f32.mrb[0].mxu0
    %v3175 = vadd.f32 %v3132, %v3174
    %3176 = vdwg.mxu0
    %3177 = vmatprep.subr.bf16.mxu0 %v2176
    %3178 = vmatpush1.bf16.msra.mxu0 %v2175
    %3179 = vmatprep.subr.bf16.mxu0 %v2182
    %3180 = vmatpush1.bf16.msra.mxu0 %v2181
    %3181 = vmatprep.subr.bf16.mxu0 %v2188
    %3182 = vmatpush1.bf16.msra.mxu0 %v2187
    %3183 = vmatprep.subr.bf16.mxu0 %v2194
    %3184 = vmatpush1.bf16.msra.mxu0 %v2193
    %3185 = vmatprep.subr.bf16.mxu0 %v2200
    %3186 = vmatpush1.bf16.msra.mxu0 %v2199
    %3187 = vmatprep.subr.bf16.mxu0 %v2206
    %3188 = vmatpush1.bf16.msra.mxu0 %v2205
    %3189 = vmatprep.subr.bf16.mxu0 %v2212
    %3190 = vmatpush1.bf16.msra.mxu0 %v2211
    %3191 = vmatprep.subr.bf16.mxu0 %v2218
    %3192 = vmatpush1.bf16.msra.mxu0 %v2217
    %3193 = vmatprep.subr.bf16.mxu0 %v2224
    %3194 = vmatpush1.bf16.msra.mxu0 %v2223
    %3195 = vmatprep.subr.bf16.mxu0 %v2230
    %3196 = vmatpush1.bf16.msra.mxu0 %v2229
    %3197 = vmatprep.subr.bf16.mxu0 %v2236
    %3198 = vmatpush1.bf16.msra.mxu0 %v2235
    %3199 = vmatprep.subr.bf16.mxu0 %v2242
    %3200 = vmatpush1.bf16.msra.mxu0 %v2241
    %3201 = vmatprep.subr.bf16.mxu0 %v2248
    %3202 = vmatpush1.bf16.msra.mxu0 %v2247
    %3203 = vmatprep.subr.bf16.mxu0 %v2254
    %3204 = vmatpush1.bf16.msra.mxu0 %v2253
    %3205 = vmatprep.subr.bf16.mxu0 %v2260
    %3206 = vmatpush1.bf16.msra.mxu0 %v2259
    %3207 = vmatprep.subr.bf16.mxu0 %v2266
    %3208 = vmatpush1.bf16.msra.mxu0 %v2265
    %3209 = vmatprep.mubr.bf16.mxu0 %v408
    %3210 = vmatmul.mubr.bf16.gmra.mrb[0].mxu0 %v407
    %v3211 = vpop.f32.mrb[0].mxu0
    %v3212 = vadd.f32 %v3169, %v3211
    %v3213 = vpop.f32.mrb[0].mxu0
    %v3214 = vadd.f32 %v3171, %v3213
    %v3215 = vpop.f32.mrb[0].mxu0
    %v3216 = vadd.f32 %v3173, %v3215
    %v3217 = vpop.f32.mrb[0].mxu0
    %v3218 = vadd.f32 %v3175, %v3217
    %3219 = vdwg.mxu0
    %3220 = vmatprep.subr.bf16.mxu0 %v2272
    %3221 = vmatpush1.bf16.msra.mxu0 %v2271
    %3222 = vmatprep.subr.bf16.mxu0 %v2278
    %3223 = vmatpush1.bf16.msra.mxu0 %v2277
    %3224 = vmatprep.subr.bf16.mxu0 %v2284
    %3225 = vmatpush1.bf16.msra.mxu0 %v2283
    %3226 = vmatprep.subr.bf16.mxu0 %v2290
    %3227 = vmatpush1.bf16.msra.mxu0 %v2289
    %3228 = vmatprep.subr.bf16.mxu0 %v2296
    %3229 = vmatpush1.bf16.msra.mxu0 %v2295
    %3230 = vmatprep.subr.bf16.mxu0 %v2302
    %3231 = vmatpush1.bf16.msra.mxu0 %v2301
    %3232 = vmatprep.subr.bf16.mxu0 %v2308
    %3233 = vmatpush1.bf16.msra.mxu0 %v2307
    %3234 = vmatprep.subr.bf16.mxu0 %v2314
    %3235 = vmatpush1.bf16.msra.mxu0 %v2313
    %3236 = vmatprep.subr.bf16.mxu0 %v2320
    %3237 = vmatpush1.bf16.msra.mxu0 %v2319
    %3238 = vmatprep.subr.bf16.mxu0 %v2326
    %3239 = vmatpush1.bf16.msra.mxu0 %v2325
    %3240 = vmatprep.subr.bf16.mxu0 %v2332
    %3241 = vmatpush1.bf16.msra.mxu0 %v2331
    %3242 = vmatprep.subr.bf16.mxu0 %v2338
    %3243 = vmatpush1.bf16.msra.mxu0 %v2337
    %3244 = vmatprep.subr.bf16.mxu0 %v2344
    %3245 = vmatpush1.bf16.msra.mxu0 %v2343
    %3246 = vmatprep.subr.bf16.mxu0 %v2350
    %3247 = vmatpush1.bf16.msra.mxu0 %v2349
    %3248 = vmatprep.subr.bf16.mxu0 %v2356
    %3249 = vmatpush1.bf16.msra.mxu0 %v2355
    %3250 = vmatprep.subr.bf16.mxu0 %v2362
    %3251 = vmatpush1.bf16.msra.mxu0 %v2361
    %3252 = vmatprep.mubr.bf16.mxu0 %v410
    %3253 = vmatmul.mubr.bf16.gmra.mrb[0].mxu0 %v409
    %v3254 = vpop.f32.mrb[0].mxu0
    %v3255 = vadd.f32 %v3212, %v3254
    %v3256 = vpop.f32.mrb[0].mxu0
    %v3257 = vadd.f32 %v3214, %v3256
    %v3258 = vpop.f32.mrb[0].mxu0
    %v3259 = vadd.f32 %v3216, %v3258
    %v3260 = vpop.f32.mrb[0].mxu0
    %v3261 = vadd.f32 %v3218, %v3260
    %3262 = vdwg.mxu0
    %v3263 = vmax.f32 %v2911, 0.0
    %v3264 = vmax.f32 %v2913, 0.0
    %v3265 = vmax.f32 %v3083, 0.0
    %v3266 = vmax.f32 %v3085, 0.0
    %v3267 = vmax.f32 %v3255, 0.0
    %v3268 = vmax.f32 %v3257, 0.0
    %v3269 = vmax.f32 %v2915, 0.0
    %v3270 = vmax.f32 %v2917, 0.0
    %v3271 = vmax.f32 %v3087, 0.0
    %v3272 = vmax.f32 %v3089, 0.0
    %v3273 = vmax.f32 %v3259, 0.0
    %v3274 = vmax.f32 %v3261, 0.0
    %v3275 = vpack.c.bf16 %v3269, %v3263
    %v3276 = vpack.c.bf16 %v3270, %v3264
    %v3277 = vpack.c.bf16 %v3271, %v3265
    %v3278 = vpack.c.bf16 %v3272, %v3266
    %v3279 = vpack.c.bf16 %v3273, %v3267
    %v3280 = vld [vmem:[#allocation7] sm:$0xf]
    %v3281 = vld [vmem:[#allocation7 + $0x4] sm:$0xf]
    %v3282 = vld [vmem:[#allocation7 + $0x8] sm:$0xf]
    %v3283 = vld [vmem:[#allocation7 + $0xc] sm:$0xf]
    %v3284 = vld [vmem:[#allocation7 + $0x10] sm:$0xf]
    %v3285 = vld [vmem:[#allocation7 + $0x14] sm:$0xf]
    %v3286 = vld [vmem:[#allocation7 + $0x18] sm:$0xf]
    %v3287 = vld [vmem:[#allocation7 + $0x1c] sm:$0xf]
    %v3288 = vld [vmem:[#allocation7 + $0x20] sm:$0xf]
    %v3289 = vld [vmem:[#allocation7 + $0x24] sm:$0xf]
    %v3290 = vld [vmem:[#allocation7 + $0x28] sm:$0xf]
    %v3291 = vld [vmem:[#allocation7 + $0x2c] sm:$0xf]
    %v3292 = vld [vmem:[#allocation7 + $0x30] sm:$0xf]
    %v3293 = vld [vmem:[#allocation7 + $0x34] sm:$0xf]
    %v3294 = vld [vmem:[#allocation7 + $0x38] sm:$0xf]
    %v3295 = vld [vmem:[#allocation7 + $0x3c] sm:$0xf]
    %v3296 = vld [vmem:[#allocation7 + $0x40] sm:$0xf]
    %v3297 = vld [vmem:[#allocation7 + $0x44] sm:$0xf]
    %v3298 = vld [vmem:[#allocation7 + $0x48] sm:$0xf]
    %v3299 = vld [vmem:[#allocation7 + $0x4c] sm:$0xf]
    %v3300 = vld [vmem:[#allocation7 + $0x50] sm:$0xf]
    %v3301 = vld [vmem:[#allocation7 + $0x54] sm:$0xf]
    %v3302 = vld [vmem:[#allocation7 + $0x58] sm:$0xf]
    %v3303 = vld [vmem:[#allocation7 + $0x5c] sm:$0xf]
    %v3304 = vld [vmem:[#allocation7 + $0x60] sm:$0xf]
    %v3305 = vld [vmem:[#allocation7 + $0x64] sm:$0xf]
    %v3306 = vld [vmem:[#allocation7 + $0x68] sm:$0xf]
    %v3307 = vld [vmem:[#allocation7 + $0x6c] sm:$0xf]
    %v3308 = vld [vmem:[#allocation7 + $0x70] sm:$0xf]
    %v3309 = vld [vmem:[#allocation7 + $0x74] sm:$0xf]
    %v3310 = vld [vmem:[#allocation7 + $0x78] sm:$0xf]
    %v3311 = vld [vmem:[#allocation7 + $0x7c] sm:$0xf]
    %v3312 = vld [vmem:[#allocation7 + $0x80] sm:$0xf]
    %v3313 = vld [vmem:[#allocation7 + $0x84] sm:$0xf]
    %v3314 = vld [vmem:[#allocation7 + $0x88] sm:$0xf]
    %v3315 = vld [vmem:[#allocation7 + $0x8c] sm:$0xf]
    %v3316 = vld [vmem:[#allocation7 + $0x90] sm:$0xf]
    %v3317 = vld [vmem:[#allocation7 + $0x94] sm:$0xf]
    %v3318 = vld [vmem:[#allocation7 + $0x98] sm:$0xf]
    %v3319 = vld [vmem:[#allocation7 + $0x9c] sm:$0xf]
    %v3320 = vld [vmem:[#allocation7 + $0xa0] sm:$0xf]
    %v3321 = vld [vmem:[#allocation7 + $0xa4] sm:$0xf]
    %v3322 = vld [vmem:[#allocation7 + $0xa8] sm:$0xf]
    %v3323 = vld [vmem:[#allocation7 + $0xac] sm:$0xf]
    %v3324 = vld [vmem:[#allocation7 + $0xb0] sm:$0xf]
    %v3325 = vld [vmem:[#allocation7 + $0xb4] sm:$0xf]
    %v3326 = vld [vmem:[#allocation7 + $0xb8] sm:$0xf]
    %v3327 = vld [vmem:[#allocation7 + $0xbc] sm:$0xf]
    %v3328 = vld [vmem:[#allocation7 + $0xc0] sm:$0xf]
    %v3329 = vld [vmem:[#allocation7 + $0xc4] sm:$0xf]
    %v3330 = vld [vmem:[#allocation7 + $0xc8] sm:$0xf]
    %v3331 = vld [vmem:[#allocation7 + $0xcc] sm:$0xf]
    %v3332 = vld [vmem:[#allocation7 + $0xd0] sm:$0xf]
    %v3333 = vld [vmem:[#allocation7 + $0xd4] sm:$0xf]
    %v3334 = vld [vmem:[#allocation7 + $0xd8] sm:$0xf]
    %v3335 = vld [vmem:[#allocation7 + $0xdc] sm:$0xf]
    %v3336 = vld [vmem:[#allocation7 + $0xe0] sm:$0xf]
    %v3337 = vld [vmem:[#allocation7 + $0xe4] sm:$0xf]
    %v3338 = vld [vmem:[#allocation7 + $0xe8] sm:$0xf]
    %v3339 = vld [vmem:[#allocation7 + $0xec] sm:$0xf]
    %v3340 = vld [vmem:[#allocation7 + $0xf0] sm:$0xf]
    %v3341 = vld [vmem:[#allocation7 + $0xf4] sm:$0xf]
    %v3342 = vld [vmem:[#allocation7 + $0xf8] sm:$0xf]
    %v3343 = vld [vmem:[#allocation7 + $0xfc] sm:$0xf]
    %v3344 = vld [vmem:[#allocation7 + $0x100] sm:$0xf]
    %v3345 = vld [vmem:[#allocation7 + $0x104] sm:$0xf]
    %v3346 = vld [vmem:[#allocation7 + $0x108] sm:$0xf]
    %v3347 = vld [vmem:[#allocation7 + $0x10c] sm:$0xf]
    %v3348 = vld [vmem:[#allocation7 + $0x110] sm:$0xf]
    %v3349 = vld [vmem:[#allocation7 + $0x114] sm:$0xf]
    %v3350 = vld [vmem:[#allocation7 + $0x118] sm:$0xf]
    %v3351 = vld [vmem:[#allocation7 + $0x11c] sm:$0xf]
    %v3352 = vld [vmem:[#allocation7 + $0x120] sm:$0xf]
    %v3353 = vld [vmem:[#allocation7 + $0x124] sm:$0xf]
    %v3354 = vld [vmem:[#allocation7 + $0x128] sm:$0xf]
    %v3355 = vld [vmem:[#allocation7 + $0x12c] sm:$0xf]
    %v3356 = vld [vmem:[#allocation7 + $0x130] sm:$0xf]
    %v3357 = vld [vmem:[#allocation7 + $0x134] sm:$0xf]
    %v3358 = vld [vmem:[#allocation7 + $0x138] sm:$0xf]
    %v3359 = vld [vmem:[#allocation7 + $0x13c] sm:$0xf]
    %v3440 = vunpack.c.l.b16 %v3280
    %v3441 = vunpack.c.l.b16 %v3281
    %v3442 = vunpack.c.l.b16 %v3282
    %v3443 = vunpack.c.l.b16 %v3283
    %v3444 = vunpack.c.l.b16 %v3284
    %v3445 = vunpack.c.l.b16 %v3285
    %v3446 = vunpack.c.l.b16 %v3286
    %v3447 = vunpack.c.l.b16 %v3287
    %v3448 = vunpack.c.l.b16 %v3288
    %v3449 = vunpack.c.l.b16 %v3289
    %v3450 = vunpack.c.l.b16 %v3290
    %v3451 = vunpack.c.l.b16 %v3291
    %v3452 = vunpack.c.l.b16 %v3292
    %v3453 = vunpack.c.l.b16 %v3293
    %v3454 = vunpack.c.l.b16 %v3294
    %v3455 = vunpack.c.l.b16 %v3295
    %v3456 = vunpack.c.l.b16 %v3296
    %v3457 = vunpack.c.l.b16 %v3297
    %v3458 = vunpack.c.l.b16 %v3298
    %v3459 = vunpack.c.l.b16 %v3299
    %v3460 = vunpack.c.l.b16 %v3300
    %v3461 = vunpack.c.l.b16 %v3301
    %v3462 = vunpack.c.l.b16 %v3302
    %v3463 = vunpack.c.l.b16 %v3303
    %v3464 = vunpack.c.l.b16 %v3304
    %v3465 = vunpack.c.l.b16 %v3305
    %v3466 = vunpack.c.l.b16 %v3306
    %v3467 = vunpack.c.l.b16 %v3307
    %v3468 = vunpack.c.l.b16 %v3308
    %v3469 = vunpack.c.l.b16 %v3309
    %v3470 = vunpack.c.l.b16 %v3310
    %v3471 = vunpack.c.l.b16 %v3311
    %v3472 = vunpack.c.l.b16 %v3312
    %v3473 = vunpack.c.l.b16 %v3313
    %v3474 = vunpack.c.l.b16 %v3314
    %v3475 = vunpack.c.l.b16 %v3315
    %v3476 = vunpack.c.l.b16 %v3316
    %v3477 = vunpack.c.l.b16 %v3317
    %v3478 = vunpack.c.l.b16 %v3318
    %v3479 = vunpack.c.l.b16 %v3319
    %v3480 = vunpack.c.l.b16 %v3320
    %v3481 = vunpack.c.l.b16 %v3321
    %v3482 = vunpack.c.l.b16 %v3322
    %v3483 = vunpack.c.l.b16 %v3323
    %v3484 = vunpack.c.l.b16 %v3324
    %v3485 = vunpack.c.l.b16 %v3325
    %v3486 = vunpack.c.l.b16 %v3326
    %v3487 = vunpack.c.l.b16 %v3327
    %v3488 = vunpack.c.l.b16 %v3328
    %v3489 = vunpack.c.l.b16 %v3329
    %v3490 = vunpack.c.l.b16 %v3330
    %v3491 = vunpack.c.l.b16 %v3331
    %v3492 = vunpack.c.l.b16 %v3332
    %v3493 = vunpack.c.l.b16 %v3333
    %v3494 = vunpack.c.l.b16 %v3334
    %v3495 = vunpack.c.l.b16 %v3335
    %v3496 = vunpack.c.l.b16 %v3336
    %v3497 = vunpack.c.l.b16 %v3337
    %v3498 = vunpack.c.l.b16 %v3338
    %v3499 = vunpack.c.l.b16 %v3339
    %v3500 = vunpack.c.l.b16 %v3340
    %v3501 = vunpack.c.l.b16 %v3341
    %v3502 = vunpack.c.l.b16 %v3342
    %v3503 = vunpack.c.l.b16 %v3343
    %v3504 = vunpack.c.l.b16 %v3344
    %v3505 = vunpack.c.l.b16 %v3345
    %v3506 = vunpack.c.l.b16 %v3346
    %v3507 = vunpack.c.l.b16 %v3347
    %v3508 = vunpack.c.l.b16 %v3348
    %v3509 = vunpack.c.l.b16 %v3349
    %v3510 = vunpack.c.l.b16 %v3350
    %v3511 = vunpack.c.l.b16 %v3351
    %v3512 = vunpack.c.l.b16 %v3352
    %v3513 = vunpack.c.l.b16 %v3353
    %v3514 = vunpack.c.l.b16 %v3354
    %v3515 = vunpack.c.l.b16 %v3355
    %v3516 = vunpack.c.l.b16 %v3356
    %v3517 = vunpack.c.l.b16 %v3357
    %v3518 = vunpack.c.l.b16 %v3358
    %v3519 = vunpack.c.l.b16 %v3359
    %v3520 = vpack.c.b16 %v3441, %v3440
    %v3521 = vpack.c.b16 %v3443, %v3442
    %v3522 = vpack.c.b16 %v3445, %v3444
    %v3523 = vpack.c.b16 %v3447, %v3446
    %v3524 = vpack.c.b16 %v3449, %v3448
    %v3525 = vpack.c.b16 %v3451, %v3450
    %v3526 = vpack.c.b16 %v3453, %v3452
    %v3527 = vpack.c.b16 %v3455, %v3454
    %v3528 = vpack.c.b16 %v3457, %v3456
    %v3529 = vpack.c.b16 %v3459, %v3458
    %v3530 = vpack.c.b16 %v3461, %v3460
    %v3531 = vpack.c.b16 %v3463, %v3462
    %v3532 = vpack.c.b16 %v3465, %v3464
    %v3533 = vpack.c.b16 %v3467, %v3466
    %v3534 = vpack.c.b16 %v3469, %v3468
    %v3535 = vpack.c.b16 %v3471, %v3470
    %v3536 = vpack.c.b16 %v3473, %v3472
    %v3537 = vpack.c.b16 %v3475, %v3474
    %v3538 = vpack.c.b16 %v3477, %v3476
    %v3539 = vpack.c.b16 %v3479, %v3478
    %v3540 = vpack.c.b16 %v3481, %v3480
    %v3541 = vpack.c.b16 %v3483, %v3482
    %v3542 = vpack.c.b16 %v3485, %v3484
    %v3543 = vpack.c.b16 %v3487, %v3486
    %v3544 = vpack.c.b16 %v3489, %v3488
    %v3545 = vpack.c.b16 %v3491, %v3490
    %v3546 = vpack.c.b16 %v3493, %v3492
    %v3547 = vpack.c.b16 %v3495, %v3494
    %v3548 = vpack.c.b16 %v3497, %v3496
    %v3549 = vpack.c.b16 %v3499, %v3498
    %v3550 = vpack.c.b16 %v3501, %v3500
    %v3551 = vpack.c.b16 %v3503, %v3502
    %v3552 = vpack.c.b16 %v3505, %v3504
    %v3553 = vpack.c.b16 %v3507, %v3506
    %v3554 = vpack.c.b16 %v3509, %v3508
    %v3555 = vpack.c.b16 %v3511, %v3510
    %v3556 = vpack.c.b16 %v3513, %v3512
    %v3557 = vpack.c.b16 %v3515, %v3514
    %v3558 = vpack.c.b16 %v3517, %v3516
    %v3559 = vpack.c.b16 %v3519, %v3518
    %3600 = vmatprep.subr.bf16.mxu0 0
    %3601 = vmatpush1.bf16.msra.mxu0 %v3520
    %3602 = vmatprep.subr.bf16.mxu0 0
    %3603 = vmatpush1.bf16.msra.mxu0 %v3521
    %3604 = vmatprep.subr.bf16.mxu0 0
    %3605 = vmatpush1.bf16.msra.mxu0 %v3522
    %3606 = vmatprep.subr.bf16.mxu0 0
    %3607 = vmatpush1.bf16.msra.mxu0 %v3523
    %3608 = vmatprep.subr.bf16.mxu0 0
    %3609 = vmatpush1.bf16.msra.mxu0 %v3524
    %3610 = vmatprep.subr.bf16.mxu0 0
    %3611 = vmatpush1.bf16.msra.mxu0 %v3525
    %3612 = vmatprep.subr.bf16.mxu0 0
    %3613 = vmatpush1.bf16.msra.mxu0 %v3526
    %3614 = vmatprep.subr.bf16.mxu0 0
    %3615 = vmatpush1.bf16.msra.mxu0 %v3527
    %3616 = vmatprep.subr.bf16.mxu0 0
    %3617 = vmatpush1.bf16.msra.mxu0 %v3528
    %3618 = vmatprep.subr.bf16.mxu0 0
    %3619 = vmatpush1.bf16.msra.mxu0 %v3529
    %3620 = vmatprep.subr.bf16.mxu0 0
    %3621 = vmatpush1.bf16.msra.mxu0 %v3530
    %3622 = vmatprep.subr.bf16.mxu0 0
    %3623 = vmatpush1.bf16.msra.mxu0 %v3531
    %3624 = vmatprep.subr.bf16.mxu0 0
    %3625 = vmatpush1.bf16.msra.mxu0 %v3532
    %3626 = vmatprep.subr.bf16.mxu0 0
    %3627 = vmatpush1.bf16.msra.mxu0 %v3533
    %3628 = vmatprep.subr.bf16.mxu0 0
    %3629 = vmatpush1.bf16.msra.mxu0 %v3534
    %3630 = vmatprep.subr.bf16.mxu0 0
    %3631 = vmatpush1.bf16.msra.mxu0 %v3535
    %3632 = vmatprep.mubr.bf16.mxu0 %v3276
    %3633 = vmatmul.mubr.bf16.gmra.mrb[0].mxu0 %v3275
    %v3634 = vpop.f32.mrb[0].mxu0
    %v3635 = vadd.f32 %v3268, %v3634
    %v3636 = vpop.f32.mrb[0].mxu0
    %v3637 = vpop.f32.mrb[0].mxu0
    %v3638 = vadd.f32 %v3274, %v3637
    %v3639 = vpop.f32.mrb[0].mxu0
    %3640 = vdwg.mxu0
    %3641 = vmatprep.subr.bf16.mxu0 0
    %3642 = vmatpush1.bf16.msra.mxu0 %v3536
    %3643 = vmatprep.subr.bf16.mxu0 0
    %3644 = vmatpush1.bf16.msra.mxu0 %v3537
    %3645 = vmatprep.subr.bf16.mxu0 0
    %3646 = vmatpush1.bf16.msra.mxu0 %v3538
    %3647 = vmatprep.subr.bf16.mxu0 0
    %3648 = vmatpush1.bf16.msra.mxu0 %v3539
    %3649 = vmatprep.subr.bf16.mxu0 0
    %3650 = vmatpush1.bf16.msra.mxu0 %v3540
    %3651 = vmatprep.subr.bf16.mxu0 0
    %3652 = vmatpush1.bf16.msra.mxu0 %v3541
    %3653 = vmatprep.subr.bf16.mxu0 0
    %3654 = vmatpush1.bf16.msra.mxu0 %v3542
    %3655 = vmatprep.subr.bf16.mxu0 0
    %3656 = vmatpush1.bf16.msra.mxu0 %v3543
    %3657 = vmatprep.subr.bf16.mxu0 0
    %3658 = vmatpush1.bf16.msra.mxu0 %v3544
    %3659 = vmatprep.subr.bf16.mxu0 0
    %3660 = vmatpush1.bf16.msra.mxu0 %v3545
    %3661 = vmatprep.subr.bf16.mxu0 0
    %3662 = vmatpush1.bf16.msra.mxu0 %v3546
    %3663 = vmatprep.subr.bf16.mxu0 0
    %3664 = vmatpush1.bf16.msra.mxu0 %v3547
    %3665 = vmatprep.subr.bf16.mxu0 0
    %3666 = vmatpush1.bf16.msra.mxu0 %v3548
    %3667 = vmatprep.subr.bf16.mxu0 0
    %3668 = vmatpush1.bf16.msra.mxu0 %v3549
    %3669 = vmatprep.subr.bf16.mxu0 0
    %3670 = vmatpush1.bf16.msra.mxu0 %v3550
    %3671 = vmatprep.subr.bf16.mxu0 0
    %3672 = vmatpush1.bf16.msra.mxu0 %v3551
    %3673 = vmatprep.mubr.bf16.mxu0 %v3278
    %3674 = vmatmul.mubr.bf16.gmra.mrb[0].mxu0 %v3277
    %v3675 = vpop.f32.mrb[0].mxu0
    %v3676 = vadd.f32 %v3635, %v3675
    %v3677 = vpop.f32.mrb[0].mxu0
    %v3678 = vpop.f32.mrb[0].mxu0
    %v3679 = vadd.f32 %v3638, %v3678
    %v3680 = vpop.f32.mrb[0].mxu0
    %3681 = vdwg.mxu0
    %3682 = vmatprep.subr.bf16.mxu0 0
    %3683 = vmatpush1.bf16.msra.mxu0 %v3552
    %3684 = vmatprep.subr.bf16.mxu0 0
    %3685 = vmatpush1.bf16.msra.mxu0 %v3553
    %3686 = vmatprep.subr.bf16.mxu0 0
    %3687 = vmatpush1.bf16.msra.mxu0 %v3554
    %3688 = vmatprep.subr.bf16.mxu0 0
    %3689 = vmatpush1.bf16.msra.mxu0 %v3555
    %3690 = vmatprep.subr.bf16.mxu0 0
    %3691 = vmatpush1.bf16.msra.mxu0 %v3556
    %3692 = vmatprep.subr.bf16.mxu0 0
    %3693 = vmatpush1.bf16.msra.mxu0 %v3557
    %3694 = vmatprep.subr.bf16.mxu0 0
    %3695 = vmatpush1.bf16.msra.mxu0 %v3558
    %3696 = vmatprep.subr.bf16.mxu0 0
    %3697 = vmatpush1.bf16.msra.mxu0 %v3559
    %3698 = vmatprep.subr.bf16.mxu0 0
    %3699 = vmatpush1.bf16.msra.mxu0 0
    %3700 = vmatprep.subr.bf16.mxu0 0
    %3701 = vmatpush1.bf16.msra.mxu0 0
    %3702 = vmatprep.subr.bf16.mxu0 0
    %3703 = vmatpush1.bf16.msra.mxu0 0
    %3704 = vmatprep.subr.bf16.mxu0 0
    %3705 = vmatpush1.bf16.msra.mxu0 0
    %3706 = vmatprep.subr.bf16.mxu0 0
    %3707 = vmatpush1.bf16.msra.mxu0 0
    %3708 = vmatprep.subr.bf16.mxu0 0
    %3709 = vmatpush1.bf16.msra.mxu0 0
    %3710 = vmatprep.subr.bf16.mxu0 0
    %3711 = vmatpush1.bf16.msra.mxu0 0
    %3712 = vmatprep.subr.bf16.mxu0 0
    %3713 = vmatpush1.bf16.msra.mxu0 0
    %3714 = vmatprep.mubr.bf16.mxu0 0
    %3715 = vmatmul.mubr.bf16.gmra.mrb[0].mxu0 %v3279
    %v3716 = vpop.f32.mrb[0].mxu0
    %v3717 = vadd.f32 %v3676, %v3716
    %v3718 = vpop.f32.mrb[0].mxu0
    %v3719 = vpop.f32.mrb[0].mxu0
    %v3720 = vadd.f32 %v3679, %v3719
    %v3721 = vpop.f32.mrb[0].mxu0
    %3722 = vdwg.mxu0
    %3723 = vmax.xlane.f32.xlu0 %v3717
    %v3724 = vpop.xlane.xlu0 %3723
    %3725 = vmax.xlane.f32.xlu0 %v3720
    %v3726 = vpop.xlane.xlu0 %3725
    %v3727 = vsub.f32 %v3717, %v3724
    %v3728 = vsub.f32 %v3720, %v3726
    %v3729 = vmul.f32 %v3727, 1.442695
    %v3730 = vpow.pop %v3729
    %v3731 = vmul.f32 %v3728, 1.442695
    %v3732 = vpow.pop %v3731
    %3733 = vadd.xlane.f32.xlu0 %v3730
    %v3734 = vpop.xlane.xlu0 %3733
    %3735 = vadd.xlane.f32.xlu0 %v3732
    %v3736 = vpop.xlane.xlu0 %3735
    %v3737 = vlog2.pop %v3734
    %v3738 = vmul.f32 %v3737, 0.6931472
    %v3739 = vlog2.pop %v3736
    %v3740 = vmul.f32 %v3739, 0.6931472
    %v3741 = vsub.f32 %v3727, %v3738
    %v3742 = vsub.f32 %v3728, %v3740
    %3743 = vst [vmem:[#allocation8] sm:$0xff] %v3741
    %3744 = vst [vmem:[#allocation8 + $0x8] sm:$0xff] %v3742
    // Predicated region
    $region30: #{tpu_custom_call.1} parent=1 // pred_check
      _
    $region31: #{tpu_custom_call.1} parent=1 // pred_check_branch
      %3746 = sbr.rel (0) target = $region33
    $region32: #{tpu_custom_call.1} parent=1 // pred_region
      %s3748 = ssub.s32 256, 256
      %3749 = vsyncadd [#allocation4], %s3748
      %s3750 = sshll.u32 [#allocation8], 4
      %s3751 = int_to_ptr.vmem [resolvable:$true] %s3750
      %3756 = dma.vmem_to_hbm [thread:$0]  %s3751, 256, %s4, [#allocation4], 128, 128, 8
    $region33: #{tpu_custom_call.1} parent=1 // pred_fallthru
      _
    // Predicated region
    $region34: #{tpu_custom_call.1} parent=1 // pred_check
      _
    $region35: #{tpu_custom_call.1} parent=1 // pred_check_branch
      %3758 = sbr.rel (0) target = $region37
    $region36: #{tpu_custom_call.1} parent=1 // pred_region
      %3759 = dma.done [#allocation4], 256
    $region37: #{tpu_custom_call.1} parent=1 // pred_fallthru
      _
    %3760 = vsyncpa [#allocation3], 1
    %3761 = vsyncpa [#allocation6], 1
    %3762 = vsyncpa [#allocation4], 1

</llo_original>
